<compile_context>
chip_gen: v6e
topology: v6e:2x2x1
jax: 0.10.0
libtpu: 0.0.40
codegen_flags: <defaults>
</compile_context>

<pallas_src>
import functools

import numpy as np
import jax
import jax.numpy as jnp
from jax.experimental import pallas as pl
from jax.experimental.pallas import tpu as pltpu

OUT_SIZE = 331  # fixed by the module (pad target 331 x 331)


def _nearest_src_indices(out_size, in_size):
    """Emulate PyTorch F.interpolate(mode='nearest') source-index computation:
    scale = in/out in float32, src = floor(o * scale), clamped to in-1.
    # TODO(synk): exact float-rounding parity with torch should be re-verified for
    # unusual (in, out) ratios; for the module's ranges the indices agree."""
    scale = np.float32(in_size) / np.float32(out_size)
    idx = np.floor(np.arange(out_size, dtype=np.float32) * scale).astype(np.int64)
    return np.minimum(idx, in_size - 1)


def _build_selectors(h_in, w_in, rnd, pad_h, pad_w):
    """W_sel (w_in, 331): W_sel[k, pad_w+o] = 1 iff nearest src col of o is k.
       H_sel (331, h_in): H_sel[pad_h+o, k] = 1 iff nearest src row of o is k.
       All other entries are zero -> they produce the zero padding."""
    wsrc = _nearest_src_indices(rnd, w_in)
    hsrc = _nearest_src_indices(rnd, h_in)
    w_sel = np.zeros((w_in, OUT_SIZE), dtype=np.float32)
    w_sel[wsrc, pad_w + np.arange(rnd)] = 1.0
    h_sel = np.zeros((OUT_SIZE, h_in), dtype=np.float32)
    h_sel[pad_h + np.arange(rnd), hsrc] = 1.0
    return w_sel, h_sel


def _rand_resize_pad_kernel(x_ref, wsel_ref, hsel_ref, o_ref, *, plane_batch):
    """x_ref:    (B, h_in, w_in)   -- B image planes
       wsel_ref: (w_in, 331)       -- width  resize+pad selector (VMEM-resident)
       hsel_ref: (331, h_in)       -- height resize+pad selector (VMEM-resident)
       o_ref:    (B, 331, 331)"""
    wsel = wsel_ref[...]
    hsel = hsel_ref[...]
    cdt = wsel.dtype
    odt = o_ref.dtype
    for p in range(plane_batch):                      # static, short (<= ~16)
        xp = x_ref[p].astype(cdt)                     # (h, w)
        # Width nearest-resize + width zero-pad on the MXU.
        tmp = jnp.dot(xp, wsel, preferred_element_type=jnp.float32)      # (h, 331)
        # Height nearest-resize + height zero-pad on the MXU (exact: selector is 0/1).
        out_p = jnp.dot(hsel, tmp.astype(cdt),
                        preferred_element_type=jnp.float32)              # (331, 331)
        # One dense, lane/sublane-contiguous store per plane.
        o_ref[p] = out_p.astype(odt)


def _pick_plane_batch(num_planes, target):
    """Largest B <= min(target, num_planes//2) dividing num_planes.
    Exact divisor -> no plane padding and no post-kernel slice; the //2 cap keeps
    at least 2 grid steps so v7x can shard the 'parallel' axis over both cores."""
    if num_planes <= 1:
        return 1
    cap = max(1, min(target, num_planes // 2))
    for b in range(cap, 0, -1):
        if num_planes % b == 0:
            return b
    return 1


def randomization_forward(x, resize_shape, padding_left, padding_right,
                          padding_top, padding_bottom, *, plane_batch_target=8):
    """x: (N, C, H, W) float array. Returns (N, C, 331, 331) in x.dtype."""
    n, c, h, w = x.shape
    assert resize_shape + padding_left + padding_right == OUT_SIZE
    assert resize_shape + padding_top + padding_bottom == OUT_SIZE

    # F.pad([pt, pb, pl_, pr]): last dim (W) gets (pt, pb), H gets (pl_, pr).
    pad_h, pad_w = padding_left, padding_top

    nc = n * c
    x_planes = x.reshape(nc, h, w)

    # Keep matmuls in the input dtype when it is a supported MXU float type.
    if x.dtype in (jnp.dtype(jnp.bfloat16), jnp.dtype(jnp.float32)):
        compute_dtype = x.dtype
    else:
        compute_dtype = jnp.float32

    w_sel_np, h_sel_np = _build_selectors(h, w, resize_shape, pad_h, pad_w)
    w_sel = jnp.asarray(w_sel_np, dtype=compute_dtype)      # (w, 331)
    h_sel = jnp.asarray(h_sel_np, dtype=compute_dtype)      # (331, h)

    B = _pick_plane_batch(nc, plane_batch_target)
    grid = (nc // B,)

    kernel = functools.partial(_rand_resize_pad_kernel, plane_batch=B)

    itemsize = jnp.dtype(x.dtype).itemsize
    sel_itemsize = jnp.dtype(compute_dtype).itemsize
    cost = pl.CostEstimate(
        flops=int(nc * (2 * h * w * OUT_SIZE + 2 * OUT_SIZE * h * OUT_SIZE)),
        transcendentals=0,
        bytes_accessed=int(nc * h * w * itemsize
                           + nc * OUT_SIZE * OUT_SIZE * itemsize
                           + (w * OUT_SIZE + OUT_SIZE * h) * sel_itemsize),
    )

    out = pl.pallas_call(
        kernel,
        out_shape=jax.ShapeDtypeStruct((nc, OUT_SIZE, OUT_SIZE), x.dtype),
        grid_spec=pltpu.PrefetchScalarGridSpec(
            num_scalar_prefetch=0,
            grid=grid,
            in_specs=[
                pl.BlockSpec((B, h, w), lambda i: (i, 0, 0)),          # B planes
                pl.BlockSpec((w, OUT_SIZE), lambda i: (0, 0)),         # resident W selector
                pl.BlockSpec((OUT_SIZE, h), lambda i: (0, 0)),         # resident H selector
            ],
            out_specs=pl.BlockSpec((B, OUT_SIZE, OUT_SIZE), lambda i: (i, 0, 0)),
        ),
        compiler_params=pltpu.CompilerParams(
            dimension_semantics=("parallel",),
            vmem_limit_bytes=48 << 20,
        ),
        cost_estimate=cost,
    )(x_planes, w_sel, h_sel)

    return out.reshape(n, c, OUT_SIZE, OUT_SIZE)


def _reference_numpy(x, rnd, pad_l, pad_r, pad_t, pad_b):
    """Pure-numpy reference of the PyTorch forward (nearest resize + pad)."""
    n, c, h, w = x.shape
    hi = _nearest_src_indices(rnd, h)
    wi = _nearest_src_indices(rnd, w)
    resized = x[:, :, hi[:, None], wi[None, :]]
    out = np.zeros((n, c, OUT_SIZE, OUT_SIZE), dtype=x.dtype)
    out[:, :, pad_l:pad_l + rnd, pad_t:pad_t + rnd] = resized
    return out


if __name__ == "__main__":
    # Deterministic re-creation of the module's __init__ randomness.
    init_rng = np.random.RandomState(0)
    resize_shape = int(init_rng.randint(299, 331))
    padding_left = int(init_rng.randint(0, 331 - resize_shape + 1))
    padding_top = int(init_rng.randint(0, 331 - resize_shape + 1))
    padding_right = 331 - resize_shape - padding_left
    padding_bottom = 331 - resize_shape - padding_top

    key = jax.random.PRNGKey(0)
    k1, k2, k3 = jax.random.split(key, 3)

    # Case 1: f32, nc=8 -> B=4, grid=(2,): two parallel steps (v7x megacore-friendly).
    x1 = jax.random.normal(k1, (2, 4, 16, 16), dtype=jnp.float32)
    out1 = jax.block_until_ready(randomization_forward(
        x1, resize_shape, padding_left, padding_right, padding_top, padding_bottom))
    ref1 = _reference_numpy(np.asarray(x1), resize_shape,
                            padding_left, padding_right, padding_top, padding_bottom)
    assert out1.shape == (2, 4, OUT_SIZE, OUT_SIZE), out1.shape
    np.testing.assert_allclose(np.asarray(out1), ref1, rtol=1e-6, atol=1e-6)

    # Case 2: f32, odd H and odd plane count: nc=9 -> B=3, grid=(3,); no padding,
    # no alignment fallback needed.
    x2 = jax.random.normal(k2, (3, 3, 13, 16), dtype=jnp.float32)
    out2 = jax.block_until_ready(randomization_forward(
        x2, resize_shape, padding_left, padding_right, padding_top, padding_bottom))
    ref2 = _reference_numpy(np.asarray(x2), resize_shape,
                            padding_left, padding_right, padding_top, padding_bottom)
    assert out2.shape == (3, 3, OUT_SIZE, OUT_SIZE), out2.shape
    np.testing.assert_allclose(np.asarray(out2), ref2, rtol=1e-6, atol=1e-6)

    # Case 3: bf16 path (selectors cast to bf16; result exact since selectors are 0/1).
    x3 = jax.random.normal(k3, (1, 4, 16, 16), dtype=jnp.float32).astype(jnp.bfloat16)
    out3 = jax.block_until_ready(randomization_forward(
        x3, resize_shape, padding_left, padding_right, padding_top, padding_bottom))
    ref3 = _reference_numpy(np.asarray(x3.astype(jnp.float32)), resize_shape,
                            padding_left, padding_right, padding_top, padding_bottom)
    assert out3.shape == (1, 4, OUT_SIZE, OUT_SIZE), out3.shape
    np.testing.assert_allclose(np.asarray(out3.astype(jnp.float32)), ref3,
                               rtol=1e-6, atol=1e-6)

    print("KERNEL_OK")
</pallas_src>

<mosaic_0001>
module attributes {stable_mosaic.version = 11 : i64} {
  func.func @_rand_resize_pad_kernel(%arg0: i32, %arg1: memref<4x16x16xf32, #tpu.memory_space<vmem>>, %arg2: memref<16x331xf32, #tpu.memory_space<vmem>>, %arg3: memref<331x16xf32, #tpu.memory_space<vmem>>, %arg4: memref<4x331x331xf32, #tpu.memory_space<vmem>>) attributes {dimension_semantics = [#tpu.dimension_semantics<parallel>], iteration_bounds = array<i64: 2>, scalar_prefetch = 0 : i64, scratch_operands = 0 : i64, tpu.core_type = #tpu.core_type<tc>, window_params = [{transform_indices = @transform_0, window_bounds = array<i64: 4, 16, 16>}, {pipeline_mode = #tpu.pipeline_mode<synchronous>, transform_indices = @transform_1, window_bounds = array<i64: 16, 331>}, {pipeline_mode = #tpu.pipeline_mode<synchronous>, transform_indices = @transform_2, window_bounds = array<i64: 331, 16>}, {transform_indices = @transform_3, window_bounds = array<i64: 4, 331, 331>}]} {
    %c0 = arith.constant 0 : index
    %c0_0 = arith.constant 0 : index
    %0 = vector.load %arg2[%c0, %c0_0] : memref<16x331xf32, #tpu.memory_space<vmem>>, vector<16x331xf32>
    %c0_1 = arith.constant 0 : index
    %c0_2 = arith.constant 0 : index
    %1 = vector.load %arg3[%c0_1, %c0_2] : memref<331x16xf32, #tpu.memory_space<vmem>>, vector<331x16xf32>
    %c0_3 = arith.constant 0 : index
    %c0_4 = arith.constant 0 : index
    %c0_5 = arith.constant 0 : index
    %2 = vector.load %arg1[%c0_3, %c0_4, %c0_5] : memref<4x16x16xf32, #tpu.memory_space<vmem>>, vector<1x16x16xf32>
    %3 = vector.shape_cast %2 : vector<1x16x16xf32> to vector<16x16xf32>
    %cst = arith.constant dense<0.000000e+00> : vector<16x331xf32>
    %4 = tpu.matmul %3, %0, %cst {dimension_numbers = #tpu.dot_dimension_numbers<[1], [0], [0], [1], [0, 0, 1, 1], [], []>} : vector<16x16xf32>, vector<16x331xf32>, vector<16x331xf32> -> vector<16x331xf32>
    %cst_6 = arith.constant dense<0.000000e+00> : vector<331x331xf32>
    %5 = tpu.matmul %1, %4, %cst_6 {dimension_numbers = #tpu.dot_dimension_numbers<[1], [0], [0], [1], [0, 0, 1, 1], [], []>} : vector<331x16xf32>, vector<16x331xf32>, vector<331x331xf32> -> vector<331x331xf32>
    %c0_7 = arith.constant 0 : index
    %c0_8 = arith.constant 0 : index
    %c0_9 = arith.constant 0 : index
    %6 = vector.load %arg4[%c0_7, %c0_8, %c0_9] : memref<4x331x331xf32, #tpu.memory_space<vmem>>, vector<1x331x331xf32>
    %7 = vector.shape_cast %6 : vector<1x331x331xf32> to vector<331x331xf32>
    %8 = vector.shape_cast %5 : vector<331x331xf32> to vector<1x331x331xf32>
    tpu.vector_store %arg4[%c0_7, %c0_8, %c0_9], %8 {strides = array<i32>} : memref<4x331x331xf32, #tpu.memory_space<vmem>>, vector<1x331x331xf32>,
    %c1 = arith.constant 1 : index
    %c0_10 = arith.constant 0 : index
    %c0_11 = arith.constant 0 : index
    %9 = vector.load %arg1[%c1, %c0_10, %c0_11] : memref<4x16x16xf32, #tpu.memory_space<vmem>>, vector<1x16x16xf32>
    %10 = vector.shape_cast %9 : vector<1x16x16xf32> to vector<16x16xf32>
    %cst_12 = arith.constant dense<0.000000e+00> : vector<16x331xf32>
    %11 = tpu.matmul %10, %0, %cst_12 {dimension_numbers = #tpu.dot_dimension_numbers<[1], [0], [0], [1], [0, 0, 1, 1], [], []>} : vector<16x16xf32>, vector<16x331xf32>, vector<16x331xf32> -> vector<16x331xf32>
    %cst_13 = arith.constant dense<0.000000e+00> : vector<331x331xf32>
    %12 = tpu.matmul %1, %11, %cst_13 {dimension_numbers = #tpu.dot_dimension_numbers<[1], [0], [0], [1], [0, 0, 1, 1], [], []>} : vector<331x16xf32>, vector<16x331xf32>, vector<331x331xf32> -> vector<331x331xf32>
    %c1_14 = arith.constant 1 : index
    %c0_15 = arith.constant 0 : index
    %c0_16 = arith.constant 0 : index
    %13 = vector.load %arg4[%c1_14, %c0_15, %c0_16] : memref<4x331x331xf32, #tpu.memory_space<vmem>>, vector<1x331x331xf32>
    %14 = vector.shape_cast %13 : vector<1x331x331xf32> to vector<331x331xf32>
    %15 = vector.shape_cast %12 : vector<331x331xf32> to vector<1x331x331xf32>
    tpu.vector_store %arg4[%c1_14, %c0_15, %c0_16], %15 {strides = array<i32>} : memref<4x331x331xf32, #tpu.memory_space<vmem>>, vector<1x331x331xf32>,
    %c2 = arith.constant 2 : index
    %c0_17 = arith.constant 0 : index
    %c0_18 = arith.constant 0 : index
    %16 = vector.load %arg1[%c2, %c0_17, %c0_18] : memref<4x16x16xf32, #tpu.memory_space<vmem>>, vector<1x16x16xf32>
    %17 = vector.shape_cast %16 : vector<1x16x16xf32> to vector<16x16xf32>
    %cst_19 = arith.constant dense<0.000000e+00> : vector<16x331xf32>
    %18 = tpu.matmul %17, %0, %cst_19 {dimension_numbers = #tpu.dot_dimension_numbers<[1], [0], [0], [1], [0, 0, 1, 1], [], []>} : vector<16x16xf32>, vector<16x331xf32>, vector<16x331xf32> -> vector<16x331xf32>
    %cst_20 = arith.constant dense<0.000000e+00> : vector<331x331xf32>
    %19 = tpu.matmul %1, %18, %cst_20 {dimension_numbers = #tpu.dot_dimension_numbers<[1], [0], [0], [1], [0, 0, 1, 1], [], []>} : vector<331x16xf32>, vector<16x331xf32>, vector<331x331xf32> -> vector<331x331xf32>
    %c2_21 = arith.constant 2 : index
    %c0_22 = arith.constant 0 : index
    %c0_23 = arith.constant 0 : index
    %20 = vector.load %arg4[%c2_21, %c0_22, %c0_23] : memref<4x331x331xf32, #tpu.memory_space<vmem>>, vector<1x331x331xf32>
    %21 = vector.shape_cast %20 : vector<1x331x331xf32> to vector<331x331xf32>
    %22 = vector.shape_cast %19 : vector<331x331xf32> to vector<1x331x331xf32>
    tpu.vector_store %arg4[%c2_21, %c0_22, %c0_23], %22 {strides = array<i32>} : memref<4x331x331xf32, #tpu.memory_space<vmem>>, vector<1x331x331xf32>,
    %c3 = arith.constant 3 : index
    %c0_24 = arith.constant 0 : index
    %c0_25 = arith.constant 0 : index
    %23 = vector.load %arg1[%c3, %c0_24, %c0_25] : memref<4x16x16xf32, #tpu.memory_space<vmem>>, vector<1x16x16xf32>
    %24 = vector.shape_cast %23 : vector<1x16x16xf32> to vector<16x16xf32>
    %cst_26 = arith.constant dense<0.000000e+00> : vector<16x331xf32>
    %25 = tpu.matmul %24, %0, %cst_26 {dimension_numbers = #tpu.dot_dimension_numbers<[1], [0], [0], [1], [0, 0, 1, 1], [], []>} : vector<16x16xf32>, vector<16x331xf32>, vector<16x331xf32> -> vector<16x331xf32>
    %cst_27 = arith.constant dense<0.000000e+00> : vector<331x331xf32>
    %26 = tpu.matmul %1, %25, %cst_27 {dimension_numbers = #tpu.dot_dimension_numbers<[1], [0], [0], [1], [0, 0, 1, 1], [], []>} : vector<331x16xf32>, vector<16x331xf32>, vector<331x331xf32> -> vector<331x331xf32>
    %c3_28 = arith.constant 3 : index
    %c0_29 = arith.constant 0 : index
    %c0_30 = arith.constant 0 : index
    %27 = vector.load %arg4[%c3_28, %c0_29, %c0_30] : memref<4x331x331xf32, #tpu.memory_space<vmem>>, vector<1x331x331xf32>
    %28 = vector.shape_cast %27 : vector<1x331x331xf32> to vector<331x331xf32>
    %29 = vector.shape_cast %26 : vector<331x331xf32> to vector<1x331x331xf32>
    tpu.vector_store %arg4[%c3_28, %c0_29, %c0_30], %29 {strides = array<i32>} : memref<4x331x331xf32, #tpu.memory_space<vmem>>, vector<1x331x331xf32>,
    return
  }
  func.func @transform_0(%arg0: i32) -> (i32, i32, i32) {
    %c0_i32 = arith.constant 0 : i32
    %c0_i32_0 = arith.constant 0 : i32
    %c0_i32_1 = arith.constant 0 : i32
    return %arg0, %c0_i32, %c0_i32_0 : i32, i32, i32
  }
  func.func @transform_1(%arg0: i32) -> (i32, i32) {
    %c0_i32 = arith.constant 0 : i32
    %c0_i32_0 = arith.constant 0 : i32
    %c0_i32_1 = arith.constant 0 : i32
    return %c0_i32, %c0_i32_0 : i32, i32
  }
  func.func @transform_2(%arg0: i32) -> (i32, i32) {
    %c0_i32 = arith.constant 0 : i32
    %c0_i32_0 = arith.constant 0 : i32
    %c0_i32_1 = arith.constant 0 : i32
    return %c0_i32, %c0_i32_0 : i32, i32
  }
  func.func @transform_3(%arg0: i32) -> (i32, i32, i32) {
    %c0_i32 = arith.constant 0 : i32
    %c0_i32_0 = arith.constant 0 : i32
    %c0_i32_1 = arith.constant 0 : i32
    return %arg0, %c0_i32, %c0_i32_0 : i32, i32, i32
  }
}

</mosaic_0001>

<llo_original>
// kernel: tpu_custom_call.1
$region0: #{tpu_custom_call.1}
  #allocation0 [shape = 'u32[]', space=smem, size = 0x4, offset = 0x4, fixed_abs, tag = 'smem constant byte address 0x4 - core index']
  #allocation1 [shape = 'u32[144,128]{1,0:T(1,128)}', space=vmem, size = 0x12000, scoped, tag = 'internal scratch']
  %s0 = inlined_call_operand.hbm [shape: f32[8,16,16], index: 0, kind: input, shape index: {}]
  %s1 = inlined_call_operand.hbm [shape: f32[16,331], index: 1, kind: input, shape index: {}]
  %s2 = inlined_call_operand.vmem [shape: f32[331,16], index: 2, kind: input, shape index: {}]
  %s3 = inlined_call_operand.vmem [shape: f32[8,331,331], index: 3, kind: output, shape index: {}]
  %s4 = sld [smem:[#allocation0]]
  $region53: #{tpu_custom_call.1} parent=0
    _
  %s6 = ssub.s32 1, %s4
  %s7 = scalar_select 0, %s6, %s4
  $region1: #{tpu_custom_call.1} parent=0
    #allocation2 [shape = 'u8[65536]{0}', space=vmem, size = 0x10000, scoped, tag = 'input window, operand 0']
    #allocation3 [shape = 's32[2]{0}', space=sflag, size = 0x8, scoped, tag = 'scoped memory for tpu_custom_call.1']
    #allocation4 [shape = 'u8[24576]{0}', space=vmem, size = 0x6000, scoped, tag = 'input window, operand 1, single buffered']
    #allocation5 [shape = 's32[1]{0}', space=sflag, size = 0x4, scoped, tag = 'scoped memory for tpu_custom_call.1']
    %8 = vsyncpa [#allocation3], 0
    %s9 = scalar_lea.sflag [#allocation3], 1
    %10 = vsyncpa %s9, 0
    %11 = vsyncpa [#allocation5], 0
    loop: start=0, step=1, limit=4
    $region2: #{tpu_custom_call.1} parent=1 // loop_pre_header
      _
    $region3: #{tpu_custom_call.1} parent=1 // loop_header
      %s13 = sphi 0, %s17
      %p14 = scmp.ge.s32.totalorder %s13, 4
      %s23 = sphi 0, %s25
      %s26 = sphi 0, %s23
      %s27 = sphi 0, %s26
      %s43 = sphi 0, %s27
      %s47 = sphi 0, %s47
      %s49 = sphi 0, %s47
      %s50 = sphi 0, %s49
      %s64 = sphi 0, %s50
      %s68 = sphi 0, %s68
      %s70 = sphi 0, %s68
      %s71 = sphi 0, %s70
      %s85 = sphi 0, %s71
      %s91 = sphi 0, %s93
      %s94 = sphi 0, %s91
      %s95 = sphi 0, %s94
      %s111 = sphi 0, %s95
    $region4: #{tpu_custom_call.1} parent=1 // loop_header_branch
      %16 = sbr.rel (%p14) target = $region8
    $region5: #{tpu_custom_call.1} parent=1 // loop_body
      %s18 = ssub.s32 %s13, 1
      %s19 = ssub.s32 %s13, 2
      %s20 = sadd.s32 %s13, 1
      %s21 = ssub.s32 %s13, %s20
      %p22 = scmp.eq.s32.totalorder %s21, 0
      %s24 = sadd.s32 %s23, 1
      %s25 = scalar_select %p22, %s23, %s24
      %p28 = pneg %p22
      %p29 = scmp.eq.s32.totalorder %s13, 1
      %p30 = por %p28, %p29
      %p31 = scmp.ne.s32.totalorder %s23, %s26
      %p32 = scmp.eq.s32.totalorder %s13, 0
      %p33 = por %p31, %p32
      %p34 = scmp.ne.s32.totalorder %s23, %s26
      %p35 = scmp.eq.s32.totalorder %s18, 1
      %p36 = por %p34, %p35
      %p37 = scmp.ne.s32.totalorder %s26, %s27
      %p38 = scmp.eq.s32.totalorder %s18, 0
      %p39 = por %p37, %p38
      %p40 = scmp.ne.s32.totalorder %s26, %s27
      %p41 = scmp.eq.s32.totalorder %s19, 1
      %p42 = por %p40, %p41
      %p44 = scmp.ne.s32.totalorder %s27, %s43
      %p45 = scmp.eq.s32.totalorder %s19, 0
      %p46 = por %p44, %p45
      %s48 = sadd.s32 %s47, 1
      %p51 = scmp.eq.s32.totalorder %s13, 1
      %p52 = scmp.ne.s32.totalorder %s47, %s49
      %p53 = scmp.eq.s32.totalorder %s13, 0
      %p54 = por %p52, %p53
      %p55 = scmp.ne.s32.totalorder %s47, %s49
      %p56 = scmp.eq.s32.totalorder %s18, 1
      %p57 = por %p55, %p56
      %p58 = scmp.ne.s32.totalorder %s49, %s50
      %p59 = scmp.eq.s32.totalorder %s18, 0
      %p60 = por %p58, %p59
      %p61 = scmp.ne.s32.totalorder %s49, %s50
      %p62 = scmp.eq.s32.totalorder %s19, 1
      %p63 = por %p61, %p62
      %p65 = scmp.ne.s32.totalorder %s50, %s64
      %p66 = scmp.eq.s32.totalorder %s19, 0
      %p67 = por %p65, %p66
      %s69 = sadd.s32 %s68, 1
      %p72 = scmp.eq.s32.totalorder %s13, 1
      %p73 = scmp.ne.s32.totalorder %s68, %s70
      %p74 = scmp.eq.s32.totalorder %s13, 0
      %p75 = por %p73, %p74
      %p76 = scmp.ne.s32.totalorder %s68, %s70
      %p77 = scmp.eq.s32.totalorder %s18, 1
      %p78 = por %p76, %p77
      %p79 = scmp.ne.s32.totalorder %s70, %s71
      %p80 = scmp.eq.s32.totalorder %s18, 0
      %p81 = por %p79, %p80
      %p82 = scmp.ne.s32.totalorder %s70, %s71
      %p83 = scmp.eq.s32.totalorder %s19, 1
      %p84 = por %p82, %p83
      %p86 = scmp.ne.s32.totalorder %s71, %s85
      %p87 = scmp.eq.s32.totalorder %s19, 0
      %p88 = por %p86, %p87
      %s89 = ssub.s32 %s13, %s20
      %p90 = scmp.eq.s32.totalorder %s89, 0
      %s92 = sadd.s32 %s91, 1
      %s93 = scalar_select %p90, %s91, %s92
      %p96 = pneg %p90
      %p97 = scmp.eq.s32.totalorder %s13, 1
      %p98 = por %p96, %p97
      %p99 = scmp.ne.s32.totalorder %s91, %s94
      %p100 = scmp.eq.s32.totalorder %s13, 0
      %p101 = por %p99, %p100
      %p102 = scmp.ne.s32.totalorder %s91, %s94
      %p103 = scmp.eq.s32.totalorder %s18, 1
      %p104 = por %p102, %p103
      %p105 = scmp.ne.s32.totalorder %s94, %s95
      %p106 = scmp.eq.s32.totalorder %s18, 0
      %p107 = por %p105, %p106
      %p108 = scmp.ne.s32.totalorder %s94, %s95
      %p109 = scmp.eq.s32.totalorder %s19, 1
      %p110 = por %p108, %p109
      %p112 = scmp.ne.s32.totalorder %s95, %s111
      %p113 = scmp.eq.s32.totalorder %s19, 0
      %p114 = por %p112, %p113
      %p115 = scmp.le.s32.totalorder 1, %s13
      %p116 = scmp.lt.s32.totalorder %s13, 3
      %p117 = pnand %p115, %p116
      %p118 = pneg %p117
      // Predicated region
      $region9: #{tpu_custom_call.1} parent=5 // pred_check
        _
      $region10: #{tpu_custom_call.1} parent=5 // pred_check_branch
        %120 = sbr.rel (%p117) target = $region12
      $region11: #{tpu_custom_call.1} parent=5 // pred_region
        %s121 = ssub.s32 %s13, 1
        // Predicated region
        $region13: #{tpu_custom_call.1} parent=11 // pred_check
          %p122 = pneg %p60
        $region14: #{tpu_custom_call.1} parent=11 // pred_check_branch
          %124 = sbr.rel (%p122) target = $region16
        $region15: #{tpu_custom_call.1} parent=11 // pred_region
          %s126 = ssub.s32 768, 768
          %127 = vsyncadd [#allocation5], %s126
          %s128 = sshll.u32 [#allocation4], 4
          %s129 = int_to_ptr.vmem [resolvable:$true] %s128
          %134 = dma.hbm_to_vmem [thread:$0]  %s1, 768, %s129, [#allocation5], 384, 384, 24
        $region16: #{tpu_custom_call.1} parent=11 // pred_fallthru
          _
        // Predicated region
        $region17: #{tpu_custom_call.1} parent=11 // pred_check
          %p135 = pneg %p81
        $region18: #{tpu_custom_call.1} parent=11 // pred_check_branch
          %137 = sbr.rel (%p135) target = $region20
        $region19: #{tpu_custom_call.1} parent=11 // pred_region
          _
        $region20: #{tpu_custom_call.1} parent=11 // pred_fallthru
          _
      $region12: #{tpu_custom_call.1} parent=5 // pred_fallthru
        _
      %p138 = scmp.lt.s32.totalorder %s13, 2
      // Predicated region
      $region21: #{tpu_custom_call.1} parent=5 // pred_check
        %p139 = pneg %p138
      $region22: #{tpu_custom_call.1} parent=5 // pred_check_branch
        %141 = sbr.rel (%p139) target = $region24
      $region23: #{tpu_custom_call.1} parent=5 // pred_region
        // Predicated region
        $region25: #{tpu_custom_call.1} parent=23 // pred_check
          %p142 = pneg %p33
        $region26: #{tpu_custom_call.1} parent=23 // pred_check_branch
          %144 = sbr.rel (%p142) target = $region28
        $region27: #{tpu_custom_call.1} parent=23 // pred_region
          %s145 = sand.u32 %s23, 1
          %s146 = scalar_lea.sflag [#allocation3], %s145
          %s147 = sand.u32 %s23, 1
          %s148 = smul.addr %s147, 64
          %s149 = scalar_lea.vmem [#allocation2], %s148
          %s150 = smul.u32 4, %s13
          %s152 = ssub.s32 1024, 1024
          %153 = vsyncadd %s146, %s152
          %s154 = smul.addr %s150, 2
          %s155 = smul.addr %s154, 128
          %s156 = scalar_lea.hbm %s0, %s155
          %s157 = sshll.u32 %s149, 4
          %s158 = int_to_ptr.vmem [resolvable:$true] %s157
          %163 = dma.hbm_to_vmem [thread:$0]  %s156, 1024, %s158, %s146, 128, 128, 8
        $region28: #{tpu_custom_call.1} parent=23 // pred_fallthru
          _
      $region24: #{tpu_custom_call.1} parent=5 // pred_fallthru
        _
      %p164 = scmp.le.s32.totalorder 1, %s13
      %p165 = scmp.lt.s32.totalorder %s13, 3
      %p166 = pnand %p164, %p165
      %p167 = pneg %p166
      // Predicated region
      $region29: #{tpu_custom_call.1} parent=5 // pred_check
        _
      $region30: #{tpu_custom_call.1} parent=5 // pred_check_branch
        %169 = sbr.rel (%p166) target = $region32
      $region31: #{tpu_custom_call.1} parent=5 // pred_region
        %s170 = ssub.s32 %s13, 1
        %s171 = sand.u32 %s26, 1
        %s172 = scalar_lea.sflag [#allocation3], %s171
        %s173 = sand.u32 %s26, 1
        %s174 = smul.addr %s173, 64
        %s175 = scalar_lea.vmem [#allocation2], %s174
        // Predicated region
        $region33: #{tpu_custom_call.1} parent=31 // pred_check
          %p176 = pneg %p39
        $region34: #{tpu_custom_call.1} parent=31 // pred_check_branch
          %178 = sbr.rel (%p176) target = $region36
        $region35: #{tpu_custom_call.1} parent=31 // pred_region
          %179 = dma.done %s172, 1024
        $region36: #{tpu_custom_call.1} parent=31 // pred_fallthru
          _
        // Predicated region
        $region37: #{tpu_custom_call.1} parent=31 // pred_check
          %p180 = pneg %p60
        $region38: #{tpu_custom_call.1} parent=31 // pred_check_branch
          %182 = sbr.rel (%p180) target = $region40
        $region39: #{tpu_custom_call.1} parent=31 // pred_region
          %183 = dma.done [#allocation5], 768
        $region40: #{tpu_custom_call.1} parent=31 // pred_fallthru
          _
        %s184 = sand.u32 %s26, 1
        %s185 = scalar_lea.sflag [#allocation3], %s184
        %s186 = sand.u32 %s26, 1
        %s187 = smul.addr %s186, 64
        %s188 = scalar_lea.vmem [#allocation2], %s187
        %p189 = pneg %p39
        %p190 = pneg %p36
        %p191 = pneg %p60
        %p192 = pneg %p57
        %p193 = pneg %p81
        %p194 = pneg %p78
        %p195 = pneg %p107
        %p196 = pneg %p104
        %s197 = smul.u32 4, %s18
        %p198 = scmp.lt.s32.totalorder %s197, 7
        %s199 = scalar_select %p198, %s197, 7
        %s200 = smul.addr %s199, 126
        %s201 = smul.addr %s200, 8
        %s202 = scalar_lea.vmem %s3, %s201
        %s203 = smul.u32 4, %s18
        %s204 = smul.u32 4, %s18
        %p205 = scmp.lt.s32.totalorder %s204, 7
        %s206 = scalar_select %p205, %s204, 7
        %s207 = smul.addr %s206, 126
        %s208 = smul.addr %s207, 8
        %s209 = scalar_lea.vmem %s3, %s208
        %s210 = smul.u32 4, %s18
        %v211 = vld [vmem:[#allocation4] sm:$0xff]
        %v212 = vld [vmem:[#allocation4 + $0x8] sm:$0xff]
        %v213 = vld [vmem:[#allocation4 + $0x10] sm:$0xff]
        %v214 = vld [vmem:[#allocation4 + $0x18] sm:$0xff]
        %v215 = vld [vmem:[#allocation4 + $0x20] sm:$0xff]
        %v216 = vld [vmem:[#allocation4 + $0x28] sm:$0xff]
        %v217 = vld [vmem:[%s2] sm:$0xff]
        %v218 = vld [vmem:[%s2 + $0x8] sm:$0xff]
        %v219 = vld [vmem:[%s2 + $0x10] sm:$0xff]
        %v220 = vld [vmem:[%s2 + $0x18] sm:$0xff]
        %v221 = vld [vmem:[%s2 + $0x20] sm:$0xff]
        %v222 = vld [vmem:[%s2 + $0x28] sm:$0xff]
        %v223 = vld [vmem:[%s2 + $0x30] sm:$0xff]
        %v224 = vld [vmem:[%s2 + $0x38] sm:$0xff]
        %v225 = vld [vmem:[%s2 + $0x40] sm:$0xff]
        %v226 = vld [vmem:[%s2 + $0x48] sm:$0xff]
        %v227 = vld [vmem:[%s2 + $0x50] sm:$0xff]
        %v228 = vld [vmem:[%s2 + $0x58] sm:$0xff]
        %v229 = vld [vmem:[%s2 + $0x60] sm:$0xff]
        %v230 = vld [vmem:[%s2 + $0x68] sm:$0xff]
        %v231 = vld [vmem:[%s2 + $0x70] sm:$0xff]
        %v232 = vld [vmem:[%s2 + $0x78] sm:$0xff]
        %v233 = vld [vmem:[%s2 + $0x80] sm:$0xff]
        %v234 = vld [vmem:[%s2 + $0x88] sm:$0xff]
        %v235 = vld [vmem:[%s2 + $0x90] sm:$0xff]
        %v236 = vld [vmem:[%s2 + $0x98] sm:$0xff]
        %v237 = vld [vmem:[%s2 + $0xa0] sm:$0xff]
        %v238 = vld [vmem:[%s2 + $0xa8] sm:$0xff]
        %v239 = vld [vmem:[%s2 + $0xb0] sm:$0xff]
        %v240 = vld [vmem:[%s2 + $0xb8] sm:$0xff]
        %v241 = vld [vmem:[%s2 + $0xc0] sm:$0xff]
        %v242 = vld [vmem:[%s2 + $0xc8] sm:$0xff]
        %v243 = vld [vmem:[%s2 + $0xd0] sm:$0xff]
        %v244 = vld [vmem:[%s2 + $0xd8] sm:$0xff]
        %v245 = vld [vmem:[%s2 + $0xe0] sm:$0xff]
        %v246 = vld [vmem:[%s2 + $0xe8] sm:$0xff]
        %v247 = vld [vmem:[%s2 + $0xf0] sm:$0xff]
        %v248 = vld [vmem:[%s2 + $0xf8] sm:$0xff]
        %v249 = vld [vmem:[%s2 + $0x100] sm:$0xff]
        %v250 = vld [vmem:[%s2 + $0x108] sm:$0xff]
        %v251 = vld [vmem:[%s2 + $0x110] sm:$0xff]
        %v252 = vld [vmem:[%s2 + $0x118] sm:$0xff]
        %v253 = vld [vmem:[%s2 + $0x120] sm:$0xff]
        %v254 = vld [vmem:[%s2 + $0x128] sm:$0xff]
        %v255 = vld [vmem:[%s2 + $0x130] sm:$0xff]
        %v256 = vld [vmem:[%s2 + $0x138] sm:$0xff]
        %v257 = vld [vmem:[%s2 + $0x140] sm:$0xff]
        %v258 = vld [vmem:[%s2 + $0x148] sm:$0x7]
        %v259 = vld [vmem:[%s175] sm:$0xff]
        %v260 = vld [vmem:[%s175 + $0x8] sm:$0xff]
        %vm261 = vcmask 130048
        %v263 = vsel %vm261, %v259, 0
        %v266 = vsel %vm261, %v260, 0
        %268 = vmatprep.subr.mxu0 0.0
        %269 = vmatpush1.msra.mxu0 0.0
        %270 = vmatprep.subr.mxu0 0.0
        %271 = vmatpush1.msra.mxu0 0.0
        %272 = vmatprep.subr.mxu0 0.0
        %273 = vmatpush1.msra.mxu0 0.0
        %274 = vmatprep.subr.mxu0 0.0
        %275 = vmatpush1.msra.mxu0 0.0
        %276 = vmatprep.subr.mxu0 0.0
        %277 = vmatpush1.msra.mxu0 0.0
        %278 = vmatprep.subr.mxu0 0.0
        %279 = vmatpush1.msra.mxu0 0.0
        %280 = vmatprep.subr.mxu0 0.0
        %281 = vmatpush1.msra.mxu0 0.0
        %282 = vmatprep.subr.mxu0 0.0
        %283 = vmatpush1.msra.mxu0 0.0
        %284 = vmatprep.subr.mxu0 0.0
        %285 = vmatpush1.msra.mxu0 0.0
        %286 = vmatprep.subr.mxu0 0.0
        %287 = vmatpush1.msra.mxu0 0.0
        %288 = vmatprep.subr.mxu0 0.0
        %289 = vmatpush1.msra.mxu0 0.0
        %290 = vmatprep.subr.mxu0 0.0
        %291 = vmatpush1.msra.mxu0 0.0
        %292 = vmatprep.subr.mxu0 0.0
        %293 = vmatpush1.msra.mxu0 0.0
        %294 = vmatprep.subr.mxu0 0.0
        %295 = vmatpush1.msra.mxu0 0.0
        %296 = vmatprep.subr.mxu0 %v215
        %297 = vmatpush1.msra.mxu0 %v214
        %298 = vmatprep.subr.mxu0 %v212
        %299 = vmatpush1.msra.mxu0 %v211
        %300 = vmatprep.subr.mxu0 0.0
        %301 = vmatpush2.msra.mxu0 0.0
        %302 = vmatprep.subr.mxu0 0.0
        %303 = vmatpush2.msra.mxu0 0.0
        %304 = vmatprep.subr.mxu0 0.0
        %305 = vmatpush2.msra.mxu0 0.0
        %306 = vmatprep.subr.mxu0 0.0
        %307 = vmatpush2.msra.mxu0 0.0
        %308 = vmatprep.subr.mxu0 0.0
        %309 = vmatpush2.msra.mxu0 0.0
        %310 = vmatprep.subr.mxu0 0.0
        %311 = vmatpush2.msra.mxu0 0.0
        %312 = vmatprep.subr.mxu0 0.0
        %313 = vmatpush2.msra.mxu0 0.0
        %314 = vmatprep.subr.mxu0 0.0
        %315 = vmatpush2.msra.mxu0 0.0
        %316 = vmatprep.subr.mxu0 0.0
        %317 = vmatpush2.msra.mxu0 0.0
        %318 = vmatprep.subr.mxu0 0.0
        %319 = vmatpush2.msra.mxu0 0.0
        %320 = vmatprep.subr.mxu0 0.0
        %321 = vmatpush2.msra.mxu0 0.0
        %322 = vmatprep.subr.mxu0 0.0
        %323 = vmatpush2.msra.mxu0 0.0
        %324 = vmatprep.subr.mxu0 0.0
        %325 = vmatpush2.msra.mxu0 0.0
        %326 = vmatprep.subr.mxu0 0.0
        %327 = vmatpush2.msra.mxu0 0.0
        %328 = vmatprep.subr.mxu0 0.0
        %329 = vmatpush2.msra.mxu0 0.0
        %330 = vmatprep.subr.mxu0 0.0
        %331 = vmatpush2.msra.mxu0 0.0
        %332 = vmatprep.mubr.f32.mxu0 0.0
        %333 = vmatmul.mubr.f32.gmra.mxu0 %v263
        %v334 = vpop.f32.mrf.mxu0
        %v335 = vadd.f32 0.0, %v334
        %v336 = vpop.f32.mrf.mxu0
        %v337 = vadd.f32 0.0, %v336
        %338 = vmatprep.mubr.f32.mxu0 0.0
        %339 = vmatmul.mubr.f32.gmra.mxu0 %v266
        %v340 = vpop.f32.mrf.mxu0
        %v341 = vadd.f32 0.0, %v340
        %v342 = vpop.f32.mrf.mxu0
        %v343 = vadd.f32 0.0, %v342
        %344 = vdwg.mxu0
        %345 = vmatprep.subr.mxu0 0.0
        %346 = vmatpush1.msra.mxu0 0.0
        %347 = vmatprep.subr.mxu0 0.0
        %348 = vmatpush1.msra.mxu0 0.0
        %349 = vmatprep.subr.mxu0 0.0
        %350 = vmatpush1.msra.mxu0 0.0
        %351 = vmatprep.subr.mxu0 0.0
        %352 = vmatpush1.msra.mxu0 0.0
        %353 = vmatprep.subr.mxu0 0.0
        %354 = vmatpush1.msra.mxu0 0.0
        %355 = vmatprep.subr.mxu0 0.0
        %356 = vmatpush1.msra.mxu0 0.0
        %357 = vmatprep.subr.mxu0 0.0
        %358 = vmatpush1.msra.mxu0 0.0
        %359 = vmatprep.subr.mxu0 0.0
        %360 = vmatpush1.msra.mxu0 0.0
        %361 = vmatprep.subr.mxu0 0.0
        %362 = vmatpush1.msra.mxu0 0.0
        %363 = vmatprep.subr.mxu0 0.0
        %364 = vmatpush1.msra.mxu0 0.0
        %365 = vmatprep.subr.mxu0 0.0
        %366 = vmatpush1.msra.mxu0 0.0
        %367 = vmatprep.subr.mxu0 0.0
        %368 = vmatpush1.msra.mxu0 0.0
        %369 = vmatprep.subr.mxu0 0.0
        %370 = vmatpush1.msra.mxu0 0.0
        %371 = vmatprep.subr.mxu0 0.0
        %372 = vmatpush1.msra.mxu0 0.0
        %373 = vmatprep.subr.mxu0 0.0
        %374 = vmatpush1.msra.mxu0 %v216
        %375 = vmatprep.subr.mxu0 0.0
        %376 = vmatpush1.msra.mxu0 %v213
        %377 = vmatprep.subr.mxu0 0.0
        %378 = vmatpush2.msra.mxu0 0.0
        %379 = vmatprep.subr.mxu0 0.0
        %380 = vmatpush2.msra.mxu0 0.0
        %381 = vmatprep.subr.mxu0 0.0
        %382 = vmatpush2.msra.mxu0 0.0
        %383 = vmatprep.subr.mxu0 0.0
        %384 = vmatpush2.msra.mxu0 0.0
        %385 = vmatprep.subr.mxu0 0.0
        %386 = vmatpush2.msra.mxu0 0.0
        %387 = vmatprep.subr.mxu0 0.0
        %388 = vmatpush2.msra.mxu0 0.0
        %389 = vmatprep.subr.mxu0 0.0
        %390 = vmatpush2.msra.mxu0 0.0
        %391 = vmatprep.subr.mxu0 0.0
        %392 = vmatpush2.msra.mxu0 0.0
        %393 = vmatprep.subr.mxu0 0.0
        %394 = vmatpush2.msra.mxu0 0.0
        %395 = vmatprep.subr.mxu0 0.0
        %396 = vmatpush2.msra.mxu0 0.0
        %397 = vmatprep.subr.mxu0 0.0
        %398 = vmatpush2.msra.mxu0 0.0
        %399 = vmatprep.subr.mxu0 0.0
        %400 = vmatpush2.msra.mxu0 0.0
        %401 = vmatprep.subr.mxu0 0.0
        %402 = vmatpush2.msra.mxu0 0.0
        %403 = vmatprep.subr.mxu0 0.0
        %404 = vmatpush2.msra.mxu0 0.0
        %405 = vmatprep.subr.mxu0 0.0
        %406 = vmatpush2.msra.mxu0 0.0
        %407 = vmatprep.subr.mxu0 0.0
        %408 = vmatpush2.msra.mxu0 0.0
        %409 = vmatprep.mubr.f32.mxu0 0.0
        %410 = vmatmul.mubr.f32.gmra.mxu0 %v263
        %v411 = vpop.f32.mrf.mxu0
        %v412 = vadd.f32 0.0, %v411
        %v413 = vpop.f32.mrf.mxu0
        %414 = vmatprep.mubr.f32.mxu0 0.0
        %415 = vmatmul.mubr.f32.gmra.mxu0 %v266
        %v416 = vpop.f32.mrf.mxu0
        %v417 = vadd.f32 0.0, %v416
        %v418 = vpop.f32.mrf.mxu0
        %419 = vdwg.mxu0
        %v421 = vsel %vm261, %v217, 0
        %v424 = vsel %vm261, %v218, 0
        %v427 = vsel %vm261, %v219, 0
        %v430 = vsel %vm261, %v220, 0
        %v433 = vsel %vm261, %v221, 0
        %v436 = vsel %vm261, %v222, 0
        %v439 = vsel %vm261, %v223, 0
        %v442 = vsel %vm261, %v224, 0
        %v445 = vsel %vm261, %v225, 0
        %v448 = vsel %vm261, %v226, 0
        %v451 = vsel %vm261, %v227, 0
        %v454 = vsel %vm261, %v228, 0
        %v457 = vsel %vm261, %v229, 0
        %v460 = vsel %vm261, %v230, 0
        %v463 = vsel %vm261, %v231, 0
        %v466 = vsel %vm261, %v232, 0
        %v469 = vsel %vm261, %v233, 0
        %v472 = vsel %vm261, %v234, 0
        %v475 = vsel %vm261, %v235, 0
        %v478 = vsel %vm261, %v236, 0
        %v481 = vsel %vm261, %v237, 0
        %v484 = vsel %vm261, %v238, 0
        %v487 = vsel %vm261, %v239, 0
        %v490 = vsel %vm261, %v240, 0
        %v493 = vsel %vm261, %v241, 0
        %v496 = vsel %vm261, %v242, 0
        %v499 = vsel %vm261, %v243, 0
        %v502 = vsel %vm261, %v244, 0
        %v505 = vsel %vm261, %v245, 0
        %v508 = vsel %vm261, %v246, 0
        %v511 = vsel %vm261, %v247, 0
        %v514 = vsel %vm261, %v248, 0
        %v517 = vsel %vm261, %v249, 0
        %v520 = vsel %vm261, %v250, 0
        %v523 = vsel %vm261, %v251, 0
        %v526 = vsel %vm261, %v252, 0
        %v529 = vsel %vm261, %v253, 0
        %v532 = vsel %vm261, %v254, 0
        %v535 = vsel %vm261, %v255, 0
        %v538 = vsel %vm261, %v256, 0
        %v541 = vsel %vm261, %v257, 0
        %v544 = vsel %vm261, %v258, 0
        %546 = vmatprep.subr.mxu0 0.0
        %547 = vmatpush1.msra.mxu0 0.0
        %548 = vmatprep.subr.mxu0 0.0
        %549 = vmatpush1.msra.mxu0 0.0
        %550 = vmatprep.subr.mxu0 0.0
        %551 = vmatpush1.msra.mxu0 0.0
        %552 = vmatprep.subr.mxu0 0.0
        %553 = vmatpush1.msra.mxu0 0.0
        %554 = vmatprep.subr.mxu0 0.0
        %555 = vmatpush1.msra.mxu0 0.0
        %556 = vmatprep.subr.mxu0 0.0
        %557 = vmatpush1.msra.mxu0 0.0
        %558 = vmatprep.subr.mxu0 0.0
        %559 = vmatpush1.msra.mxu0 0.0
        %560 = vmatprep.subr.mxu0 0.0
        %561 = vmatpush1.msra.mxu0 0.0
        %562 = vmatprep.subr.mxu0 0.0
        %563 = vmatpush1.msra.mxu0 0.0
        %564 = vmatprep.subr.mxu0 0.0
        %565 = vmatpush1.msra.mxu0 0.0
        %566 = vmatprep.subr.mxu0 0.0
        %567 = vmatpush1.msra.mxu0 0.0
        %568 = vmatprep.subr.mxu0 0.0
        %569 = vmatpush1.msra.mxu0 0.0
        %570 = vmatprep.subr.mxu0 0.0
        %571 = vmatpush1.msra.mxu0 0.0
        %572 = vmatprep.subr.mxu0 0.0
        %573 = vmatpush1.msra.mxu0 0.0
        %574 = vmatprep.subr.mxu0 %v343
        %575 = vmatpush1.msra.mxu0 %v341
        %576 = vmatprep.subr.mxu0 %v337
        %577 = vmatpush1.msra.mxu0 %v335
        %578 = vmatprep.subr.mxu0 0.0
        %579 = vmatpush2.msra.mxu0 0.0
        %580 = vmatprep.subr.mxu0 0.0
        %581 = vmatpush2.msra.mxu0 0.0
        %582 = vmatprep.subr.mxu0 0.0
        %583 = vmatpush2.msra.mxu0 0.0
        %584 = vmatprep.subr.mxu0 0.0
        %585 = vmatpush2.msra.mxu0 0.0
        %586 = vmatprep.subr.mxu0 0.0
        %587 = vmatpush2.msra.mxu0 0.0
        %588 = vmatprep.subr.mxu0 0.0
        %589 = vmatpush2.msra.mxu0 0.0
        %590 = vmatprep.subr.mxu0 0.0
        %591 = vmatpush2.msra.mxu0 0.0
        %592 = vmatprep.subr.mxu0 0.0
        %593 = vmatpush2.msra.mxu0 0.0
        %594 = vmatprep.subr.mxu0 0.0
        %595 = vmatpush2.msra.mxu0 0.0
        %596 = vmatprep.subr.mxu0 0.0
        %597 = vmatpush2.msra.mxu0 0.0
        %598 = vmatprep.subr.mxu0 0.0
        %599 = vmatpush2.msra.mxu0 0.0
        %600 = vmatprep.subr.mxu0 0.0
        %601 = vmatpush2.msra.mxu0 0.0
        %602 = vmatprep.subr.mxu0 0.0
        %603 = vmatpush2.msra.mxu0 0.0
        %604 = vmatprep.subr.mxu0 0.0
        %605 = vmatpush2.msra.mxu0 0.0
        %606 = vmatprep.subr.mxu0 0.0
        %607 = vmatpush2.msra.mxu0 0.0
        %608 = vmatprep.subr.mxu0 0.0
        %609 = vmatpush2.msra.mxu0 0.0
        %610 = vmatprep.mubr.f32.mxu0 0.0
        %611 = vmatmul.mubr.f32.gmra.mxu0 %v421
        %v612 = vpop.f32.mrf.mxu0
        %v613 = vadd.f32 0.0, %v612
        %v614 = vpop.f32.mrf.mxu0
        %v615 = vadd.f32 0.0, %v614
        %616 = vmatprep.mubr.f32.mxu0 0.0
        %617 = vmatmul.mubr.f32.gmra.mxu0 %v424
        %v618 = vpop.f32.mrf.mxu0
        %v619 = vadd.f32 0.0, %v618
        %v620 = vpop.f32.mrf.mxu0
        %v621 = vadd.f32 0.0, %v620
        %622 = vmatprep.mubr.f32.mxu0 0.0
        %623 = vmatmul.mubr.f32.gmra.mxu0 %v427
        %v624 = vpop.f32.mrf.mxu0
        %v625 = vadd.f32 0.0, %v624
        %v626 = vpop.f32.mrf.mxu0
        %v627 = vadd.f32 0.0, %v626
        %628 = vmatprep.mubr.f32.mxu0 0.0
        %629 = vmatmul.mubr.f32.gmra.mxu0 %v430
        %v630 = vpop.f32.mrf.mxu0
        %v631 = vadd.f32 0.0, %v630
        %v632 = vpop.f32.mrf.mxu0
        %v633 = vadd.f32 0.0, %v632
        %634 = vmatprep.mubr.f32.mxu0 0.0
        %635 = vmatmul.mubr.f32.gmra.mxu0 %v433
        %v636 = vpop.f32.mrf.mxu0
        %v637 = vadd.f32 0.0, %v636
        %v638 = vpop.f32.mrf.mxu0
        %v639 = vadd.f32 0.0, %v638
        %640 = vmatprep.mubr.f32.mxu0 0.0
        %641 = vmatmul.mubr.f32.gmra.mxu0 %v436
        %v642 = vpop.f32.mrf.mxu0
        %v643 = vadd.f32 0.0, %v642
        %v644 = vpop.f32.mrf.mxu0
        %v645 = vadd.f32 0.0, %v644
        %646 = vmatprep.mubr.f32.mxu0 0.0
        %647 = vmatmul.mubr.f32.gmra.mxu0 %v439
        %v648 = vpop.f32.mrf.mxu0
        %v649 = vadd.f32 0.0, %v648
        %v650 = vpop.f32.mrf.mxu0
        %v651 = vadd.f32 0.0, %v650
        %652 = vmatprep.mubr.f32.mxu0 0.0
        %653 = vmatmul.mubr.f32.gmra.mxu0 %v442
        %v654 = vpop.f32.mrf.mxu0
        %v655 = vadd.f32 0.0, %v654
        %v656 = vpop.f32.mrf.mxu0
        %v657 = vadd.f32 0.0, %v656
        %658 = vmatprep.mubr.f32.mxu0 0.0
        %659 = vmatmul.mubr.f32.gmra.mxu0 %v445
        %v660 = vpop.f32.mrf.mxu0
        %v661 = vadd.f32 0.0, %v660
        %v662 = vpop.f32.mrf.mxu0
        %v663 = vadd.f32 0.0, %v662
        %664 = vmatprep.mubr.f32.mxu0 0.0
        %665 = vmatmul.mubr.f32.gmra.mxu0 %v448
        %v666 = vpop.f32.mrf.mxu0
        %v667 = vadd.f32 0.0, %v666
        %v668 = vpop.f32.mrf.mxu0
        %v669 = vadd.f32 0.0, %v668
        %670 = vmatprep.mubr.f32.mxu0 0.0
        %671 = vmatmul.mubr.f32.gmra.mxu0 %v451
        %v672 = vpop.f32.mrf.mxu0
        %v673 = vadd.f32 0.0, %v672
        %v674 = vpop.f32.mrf.mxu0
        %v675 = vadd.f32 0.0, %v674
        %676 = vmatprep.mubr.f32.mxu0 0.0
        %677 = vmatmul.mubr.f32.gmra.mxu0 %v454
        %v678 = vpop.f32.mrf.mxu0
        %v679 = vadd.f32 0.0, %v678
        %v680 = vpop.f32.mrf.mxu0
        %v681 = vadd.f32 0.0, %v680
        %682 = vmatprep.mubr.f32.mxu0 0.0
        %683 = vmatmul.mubr.f32.gmra.mxu0 %v457
        %v684 = vpop.f32.mrf.mxu0
        %v685 = vadd.f32 0.0, %v684
        %v686 = vpop.f32.mrf.mxu0
        %v687 = vadd.f32 0.0, %v686
        %688 = vmatprep.mubr.f32.mxu0 0.0
        %689 = vmatmul.mubr.f32.gmra.mxu0 %v460
        %v690 = vpop.f32.mrf.mxu0
        %v691 = vadd.f32 0.0, %v690
        %v692 = vpop.f32.mrf.mxu0
        %v693 = vadd.f32 0.0, %v692
        %694 = vmatprep.mubr.f32.mxu0 0.0
        %695 = vmatmul.mubr.f32.gmra.mxu0 %v463
        %v696 = vpop.f32.mrf.mxu0
        %v697 = vadd.f32 0.0, %v696
        %v698 = vpop.f32.mrf.mxu0
        %v699 = vadd.f32 0.0, %v698
        %700 = vmatprep.mubr.f32.mxu0 0.0
        %701 = vmatmul.mubr.f32.gmra.mxu0 %v466
        %v702 = vpop.f32.mrf.mxu0
        %v703 = vadd.f32 0.0, %v702
        %v704 = vpop.f32.mrf.mxu0
        %v705 = vadd.f32 0.0, %v704
        %706 = vmatprep.mubr.f32.mxu0 0.0
        %707 = vmatmul.mubr.f32.gmra.mxu0 %v469
        %v708 = vpop.f32.mrf.mxu0
        %v709 = vadd.f32 0.0, %v708
        %v710 = vpop.f32.mrf.mxu0
        %v711 = vadd.f32 0.0, %v710
        %712 = vmatprep.mubr.f32.mxu0 0.0
        %713 = vmatmul.mubr.f32.gmra.mxu0 %v472
        %v714 = vpop.f32.mrf.mxu0
        %v715 = vadd.f32 0.0, %v714
        %v716 = vpop.f32.mrf.mxu0
        %v717 = vadd.f32 0.0, %v716
        %718 = vmatprep.mubr.f32.mxu0 0.0
        %719 = vmatmul.mubr.f32.gmra.mxu0 %v475
        %v720 = vpop.f32.mrf.mxu0
        %v721 = vadd.f32 0.0, %v720
        %v722 = vpop.f32.mrf.mxu0
        %v723 = vadd.f32 0.0, %v722
        %724 = vmatprep.mubr.f32.mxu0 0.0
        %725 = vmatmul.mubr.f32.gmra.mxu0 %v478
        %v726 = vpop.f32.mrf.mxu0
        %v727 = vadd.f32 0.0, %v726
        %v728 = vpop.f32.mrf.mxu0
        %v729 = vadd.f32 0.0, %v728
        %730 = vmatprep.mubr.f32.mxu0 0.0
        %731 = vmatmul.mubr.f32.gmra.mxu0 %v481
        %v732 = vpop.f32.mrf.mxu0
        %v733 = vadd.f32 0.0, %v732
        %v734 = vpop.f32.mrf.mxu0
        %v735 = vadd.f32 0.0, %v734
        %736 = vmatprep.mubr.f32.mxu0 0.0
        %737 = vmatmul.mubr.f32.gmra.mxu0 %v484
        %v738 = vpop.f32.mrf.mxu0
        %v739 = vadd.f32 0.0, %v738
        %v740 = vpop.f32.mrf.mxu0
        %v741 = vadd.f32 0.0, %v740
        %742 = vmatprep.mubr.f32.mxu0 0.0
        %743 = vmatmul.mubr.f32.gmra.mxu0 %v487
        %v744 = vpop.f32.mrf.mxu0
        %v745 = vadd.f32 0.0, %v744
        %v746 = vpop.f32.mrf.mxu0
        %v747 = vadd.f32 0.0, %v746
        %748 = vmatprep.mubr.f32.mxu0 0.0
        %749 = vmatmul.mubr.f32.gmra.mxu0 %v490
        %v750 = vpop.f32.mrf.mxu0
        %v751 = vadd.f32 0.0, %v750
        %v752 = vpop.f32.mrf.mxu0
        %v753 = vadd.f32 0.0, %v752
        %754 = vmatprep.mubr.f32.mxu0 0.0
        %755 = vmatmul.mubr.f32.gmra.mxu0 %v493
        %v756 = vpop.f32.mrf.mxu0
        %v757 = vadd.f32 0.0, %v756
        %v758 = vpop.f32.mrf.mxu0
        %v759 = vadd.f32 0.0, %v758
        %760 = vmatprep.mubr.f32.mxu0 0.0
        %761 = vmatmul.mubr.f32.gmra.mxu0 %v496
        %v762 = vpop.f32.mrf.mxu0
        %v763 = vadd.f32 0.0, %v762
        %v764 = vpop.f32.mrf.mxu0
        %v765 = vadd.f32 0.0, %v764
        %766 = vmatprep.mubr.f32.mxu0 0.0
        %767 = vmatmul.mubr.f32.gmra.mxu0 %v499
        %v768 = vpop.f32.mrf.mxu0
        %v769 = vadd.f32 0.0, %v768
        %v770 = vpop.f32.mrf.mxu0
        %v771 = vadd.f32 0.0, %v770
        %772 = vmatprep.mubr.f32.mxu0 0.0
        %773 = vmatmul.mubr.f32.gmra.mxu0 %v502
        %v774 = vpop.f32.mrf.mxu0
        %v775 = vadd.f32 0.0, %v774
        %v776 = vpop.f32.mrf.mxu0
        %v777 = vadd.f32 0.0, %v776
        %778 = vmatprep.mubr.f32.mxu0 0.0
        %779 = vmatmul.mubr.f32.gmra.mxu0 %v505
        %v780 = vpop.f32.mrf.mxu0
        %v781 = vadd.f32 0.0, %v780
        %v782 = vpop.f32.mrf.mxu0
        %v783 = vadd.f32 0.0, %v782
        %784 = vmatprep.mubr.f32.mxu0 0.0
        %785 = vmatmul.mubr.f32.gmra.mxu0 %v508
        %v786 = vpop.f32.mrf.mxu0
        %v787 = vadd.f32 0.0, %v786
        %v788 = vpop.f32.mrf.mxu0
        %v789 = vadd.f32 0.0, %v788
        %790 = vmatprep.mubr.f32.mxu0 0.0
        %791 = vmatmul.mubr.f32.gmra.mxu0 %v511
        %v792 = vpop.f32.mrf.mxu0
        %v793 = vadd.f32 0.0, %v792
        %v794 = vpop.f32.mrf.mxu0
        %v795 = vadd.f32 0.0, %v794
        %796 = vmatprep.mubr.f32.mxu0 0.0
        %797 = vmatmul.mubr.f32.gmra.mxu0 %v514
        %v798 = vpop.f32.mrf.mxu0
        %v799 = vadd.f32 0.0, %v798
        %v800 = vpop.f32.mrf.mxu0
        %v801 = vadd.f32 0.0, %v800
        %802 = vmatprep.mubr.f32.mxu0 0.0
        %803 = vmatmul.mubr.f32.gmra.mxu0 %v517
        %v804 = vpop.f32.mrf.mxu0
        %v805 = vadd.f32 0.0, %v804
        %v806 = vpop.f32.mrf.mxu0
        %v807 = vadd.f32 0.0, %v806
        %808 = vmatprep.mubr.f32.mxu0 0.0
        %809 = vmatmul.mubr.f32.gmra.mxu0 %v520
        %v810 = vpop.f32.mrf.mxu0
        %v811 = vadd.f32 0.0, %v810
        %v812 = vpop.f32.mrf.mxu0
        %v813 = vadd.f32 0.0, %v812
        %814 = vmatprep.mubr.f32.mxu0 0.0
        %815 = vmatmul.mubr.f32.gmra.mxu0 %v523
        %v816 = vpop.f32.mrf.mxu0
        %v817 = vadd.f32 0.0, %v816
        %v818 = vpop.f32.mrf.mxu0
        %v819 = vadd.f32 0.0, %v818
        %820 = vmatprep.mubr.f32.mxu0 0.0
        %821 = vmatmul.mubr.f32.gmra.mxu0 %v526
        %v822 = vpop.f32.mrf.mxu0
        %v823 = vadd.f32 0.0, %v822
        %v824 = vpop.f32.mrf.mxu0
        %v825 = vadd.f32 0.0, %v824
        %826 = vmatprep.mubr.f32.mxu0 0.0
        %827 = vmatmul.mubr.f32.gmra.mxu0 %v529
        %v828 = vpop.f32.mrf.mxu0
        %v829 = vadd.f32 0.0, %v828
        %v830 = vpop.f32.mrf.mxu0
        %v831 = vadd.f32 0.0, %v830
        %832 = vmatprep.mubr.f32.mxu0 0.0
        %833 = vmatmul.mubr.f32.gmra.mxu0 %v532
        %v834 = vpop.f32.mrf.mxu0
        %v835 = vadd.f32 0.0, %v834
        %v836 = vpop.f32.mrf.mxu0
        %v837 = vadd.f32 0.0, %v836
        %838 = vmatprep.mubr.f32.mxu0 0.0
        %839 = vmatmul.mubr.f32.gmra.mxu0 %v535
        %v840 = vpop.f32.mrf.mxu0
        %v841 = vadd.f32 0.0, %v840
        %v842 = vpop.f32.mrf.mxu0
        %v843 = vadd.f32 0.0, %v842
        %844 = vmatprep.mubr.f32.mxu0 0.0
        %845 = vmatmul.mubr.f32.gmra.mxu0 %v538
        %v846 = vpop.f32.mrf.mxu0
        %v847 = vadd.f32 0.0, %v846
        %v848 = vpop.f32.mrf.mxu0
        %v849 = vadd.f32 0.0, %v848
        %850 = vmatprep.mubr.f32.mxu0 0.0
        %851 = vmatmul.mubr.f32.gmra.mxu0 %v541
        %v852 = vpop.f32.mrf.mxu0
        %v853 = vadd.f32 0.0, %v852
        %v854 = vpop.f32.mrf.mxu0
        %v855 = vadd.f32 0.0, %v854
        %856 = vmatprep.mubr.f32.mxu0 0.0
        %857 = vmatmul.mubr.f32.gmra.mxu0 %v544
        %v858 = vpop.f32.mrf.mxu0
        %v859 = vadd.f32 0.0, %v858
        %v860 = vpop.f32.mrf.mxu0
        %v861 = vadd.f32 0.0, %v860
        %862 = vdwg.mxu0
        %863 = vmatprep.subr.mxu0 0.0
        %864 = vmatpush1.msra.mxu0 0.0
        %865 = vmatprep.subr.mxu0 0.0
        %866 = vmatpush1.msra.mxu0 0.0
        %867 = vmatprep.subr.mxu0 0.0
        %868 = vmatpush1.msra.mxu0 0.0
        %869 = vmatprep.subr.mxu0 0.0
        %870 = vmatpush1.msra.mxu0 0.0
        %871 = vmatprep.subr.mxu0 0.0
        %872 = vmatpush1.msra.mxu0 0.0
        %873 = vmatprep.subr.mxu0 0.0
        %874 = vmatpush1.msra.mxu0 0.0
        %875 = vmatprep.subr.mxu0 0.0
        %876 = vmatpush1.msra.mxu0 0.0
        %877 = vmatprep.subr.mxu0 0.0
        %878 = vmatpush1.msra.mxu0 0.0
        %879 = vmatprep.subr.mxu0 0.0
        %880 = vmatpush1.msra.mxu0 0.0
        %881 = vmatprep.subr.mxu0 0.0
        %882 = vmatpush1.msra.mxu0 0.0
        %883 = vmatprep.subr.mxu0 0.0
        %884 = vmatpush1.msra.mxu0 0.0
        %885 = vmatprep.subr.mxu0 0.0
        %886 = vmatpush1.msra.mxu0 0.0
        %887 = vmatprep.subr.mxu0 0.0
        %888 = vmatpush1.msra.mxu0 0.0
        %889 = vmatprep.subr.mxu0 0.0
        %890 = vmatpush1.msra.mxu0 0.0
        %891 = vmatprep.subr.mxu0 0.0
        %892 = vmatpush1.msra.mxu0 %v417
        %893 = vmatprep.subr.mxu0 0.0
        %894 = vmatpush1.msra.mxu0 %v412
        %895 = vmatprep.subr.mxu0 0.0
        %896 = vmatpush2.msra.mxu0 0.0
        %897 = vmatprep.subr.mxu0 0.0
        %898 = vmatpush2.msra.mxu0 0.0
        %899 = vmatprep.subr.mxu0 0.0
        %900 = vmatpush2.msra.mxu0 0.0
        %901 = vmatprep.subr.mxu0 0.0
        %902 = vmatpush2.msra.mxu0 0.0
        %903 = vmatprep.subr.mxu0 0.0
        %904 = vmatpush2.msra.mxu0 0.0
        %905 = vmatprep.subr.mxu0 0.0
        %906 = vmatpush2.msra.mxu0 0.0
        %907 = vmatprep.subr.mxu0 0.0
        %908 = vmatpush2.msra.mxu0 0.0
        %909 = vmatprep.subr.mxu0 0.0
        %910 = vmatpush2.msra.mxu0 0.0
        %911 = vmatprep.subr.mxu0 0.0
        %912 = vmatpush2.msra.mxu0 0.0
        %913 = vmatprep.subr.mxu0 0.0
        %914 = vmatpush2.msra.mxu0 0.0
        %915 = vmatprep.subr.mxu0 0.0
        %916 = vmatpush2.msra.mxu0 0.0
        %917 = vmatprep.subr.mxu0 0.0
        %918 = vmatpush2.msra.mxu0 0.0
        %919 = vmatprep.subr.mxu0 0.0
        %920 = vmatpush2.msra.mxu0 0.0
        %921 = vmatprep.subr.mxu0 0.0
        %922 = vmatpush2.msra.mxu0 0.0
        %923 = vmatprep.subr.mxu0 0.0
        %924 = vmatpush2.msra.mxu0 0.0
        %925 = vmatprep.subr.mxu0 0.0
        %926 = vmatpush2.msra.mxu0 0.0
        %927 = vmatprep.mubr.f32.mxu0 0.0
        %928 = vmatmul.mubr.f32.gmra.mxu0 %v421
        %v929 = vpop.f32.mrf.mxu0
        %v930 = vadd.f32 0.0, %v929
        %v931 = vpop.f32.mrf.mxu0
        %932 = vmatprep.mubr.f32.mxu0 0.0
        %933 = vmatmul.mubr.f32.gmra.mxu0 %v424
        %v934 = vpop.f32.mrf.mxu0
        %v935 = vadd.f32 0.0, %v934
        %v936 = vpop.f32.mrf.mxu0
        %937 = vmatprep.mubr.f32.mxu0 0.0
        %938 = vmatmul.mubr.f32.gmra.mxu0 %v427
        %v939 = vpop.f32.mrf.mxu0
        %v940 = vadd.f32 0.0, %v939
        %v941 = vpop.f32.mrf.mxu0
        %942 = vmatprep.mubr.f32.mxu0 0.0
        %943 = vmatmul.mubr.f32.gmra.mxu0 %v430
        %v944 = vpop.f32.mrf.mxu0
        %v945 = vadd.f32 0.0, %v944
        %v946 = vpop.f32.mrf.mxu0
        %947 = vmatprep.mubr.f32.mxu0 0.0
        %948 = vmatmul.mubr.f32.gmra.mxu0 %v433
        %v949 = vpop.f32.mrf.mxu0
        %v950 = vadd.f32 0.0, %v949
        %v951 = vpop.f32.mrf.mxu0
        %952 = vmatprep.mubr.f32.mxu0 0.0
        %953 = vmatmul.mubr.f32.gmra.mxu0 %v436
        %v954 = vpop.f32.mrf.mxu0
        %v955 = vadd.f32 0.0, %v954
        %v956 = vpop.f32.mrf.mxu0
        %957 = vmatprep.mubr.f32.mxu0 0.0
        %958 = vmatmul.mubr.f32.gmra.mxu0 %v439
        %v959 = vpop.f32.mrf.mxu0
        %v960 = vadd.f32 0.0, %v959
        %v961 = vpop.f32.mrf.mxu0
        %962 = vmatprep.mubr.f32.mxu0 0.0
        %963 = vmatmul.mubr.f32.gmra.mxu0 %v442
        %v964 = vpop.f32.mrf.mxu0
        %v965 = vadd.f32 0.0, %v964
        %v966 = vpop.f32.mrf.mxu0
        %967 = vmatprep.mubr.f32.mxu0 0.0
        %968 = vmatmul.mubr.f32.gmra.mxu0 %v445
        %v969 = vpop.f32.mrf.mxu0
        %v970 = vadd.f32 0.0, %v969
        %v971 = vpop.f32.mrf.mxu0
        %972 = vmatprep.mubr.f32.mxu0 0.0
        %973 = vmatmul.mubr.f32.gmra.mxu0 %v448
        %v974 = vpop.f32.mrf.mxu0
        %v975 = vadd.f32 0.0, %v974
        %v976 = vpop.f32.mrf.mxu0
        %977 = vmatprep.mubr.f32.mxu0 0.0
        %978 = vmatmul.mubr.f32.gmra.mxu0 %v451
        %v979 = vpop.f32.mrf.mxu0
        %v980 = vadd.f32 0.0, %v979
        %v981 = vpop.f32.mrf.mxu0
        %982 = vmatprep.mubr.f32.mxu0 0.0
        %983 = vmatmul.mubr.f32.gmra.mxu0 %v454
        %v984 = vpop.f32.mrf.mxu0
        %v985 = vadd.f32 0.0, %v984
        %v986 = vpop.f32.mrf.mxu0
        %987 = vmatprep.mubr.f32.mxu0 0.0
        %988 = vmatmul.mubr.f32.gmra.mxu0 %v457
        %v989 = vpop.f32.mrf.mxu0
        %v990 = vadd.f32 0.0, %v989
        %v991 = vpop.f32.mrf.mxu0
        %992 = vmatprep.mubr.f32.mxu0 0.0
        %993 = vmatmul.mubr.f32.gmra.mxu0 %v460
        %v994 = vpop.f32.mrf.mxu0
        %v995 = vadd.f32 0.0, %v994
        %v996 = vpop.f32.mrf.mxu0
        %997 = vmatprep.mubr.f32.mxu0 0.0
        %998 = vmatmul.mubr.f32.gmra.mxu0 %v463
        %v999 = vpop.f32.mrf.mxu0
        %v1000 = vadd.f32 0.0, %v999
        %v1001 = vpop.f32.mrf.mxu0
        %1002 = vmatprep.mubr.f32.mxu0 0.0
        %1003 = vmatmul.mubr.f32.gmra.mxu0 %v466
        %v1004 = vpop.f32.mrf.mxu0
        %v1005 = vadd.f32 0.0, %v1004
        %v1006 = vpop.f32.mrf.mxu0
        %1007 = vmatprep.mubr.f32.mxu0 0.0
        %1008 = vmatmul.mubr.f32.gmra.mxu0 %v469
        %v1009 = vpop.f32.mrf.mxu0
        %v1010 = vadd.f32 0.0, %v1009
        %v1011 = vpop.f32.mrf.mxu0
        %1012 = vmatprep.mubr.f32.mxu0 0.0
        %1013 = vmatmul.mubr.f32.gmra.mxu0 %v472
        %v1014 = vpop.f32.mrf.mxu0
        %v1015 = vadd.f32 0.0, %v1014
        %v1016 = vpop.f32.mrf.mxu0
        %1017 = vmatprep.mubr.f32.mxu0 0.0
        %1018 = vmatmul.mubr.f32.gmra.mxu0 %v475
        %v1019 = vpop.f32.mrf.mxu0
        %v1020 = vadd.f32 0.0, %v1019
        %v1021 = vpop.f32.mrf.mxu0
        %1022 = vmatprep.mubr.f32.mxu0 0.0
        %1023 = vmatmul.mubr.f32.gmra.mxu0 %v478
        %v1024 = vpop.f32.mrf.mxu0
        %v1025 = vadd.f32 0.0, %v1024
        %v1026 = vpop.f32.mrf.mxu0
        %1027 = vmatprep.mubr.f32.mxu0 0.0
        %1028 = vmatmul.mubr.f32.gmra.mxu0 %v481
        %v1029 = vpop.f32.mrf.mxu0
        %v1030 = vadd.f32 0.0, %v1029
        %v1031 = vpop.f32.mrf.mxu0
        %1032 = vmatprep.mubr.f32.mxu0 0.0
        %1033 = vmatmul.mubr.f32.gmra.mxu0 %v484
        %v1034 = vpop.f32.mrf.mxu0
        %v1035 = vadd.f32 0.0, %v1034
        %v1036 = vpop.f32.mrf.mxu0
        %1037 = vmatprep.mubr.f32.mxu0 0.0
        %1038 = vmatmul.mubr.f32.gmra.mxu0 %v487
        %v1039 = vpop.f32.mrf.mxu0
        %v1040 = vadd.f32 0.0, %v1039
        %v1041 = vpop.f32.mrf.mxu0
        %1042 = vmatprep.mubr.f32.mxu0 0.0
        %1043 = vmatmul.mubr.f32.gmra.mxu0 %v490
        %v1044 = vpop.f32.mrf.mxu0
        %v1045 = vadd.f32 0.0, %v1044
        %v1046 = vpop.f32.mrf.mxu0
        %1047 = vmatprep.mubr.f32.mxu0 0.0
        %1048 = vmatmul.mubr.f32.gmra.mxu0 %v493
        %v1049 = vpop.f32.mrf.mxu0
        %v1050 = vadd.f32 0.0, %v1049
        %v1051 = vpop.f32.mrf.mxu0
        %1052 = vmatprep.mubr.f32.mxu0 0.0
        %1053 = vmatmul.mubr.f32.gmra.mxu0 %v496
        %v1054 = vpop.f32.mrf.mxu0
        %v1055 = vadd.f32 0.0, %v1054
        %v1056 = vpop.f32.mrf.mxu0
        %1057 = vmatprep.mubr.f32.mxu0 0.0
        %1058 = vmatmul.mubr.f32.gmra.mxu0 %v499
        %v1059 = vpop.f32.mrf.mxu0
        %v1060 = vadd.f32 0.0, %v1059
        %v1061 = vpop.f32.mrf.mxu0
        %1062 = vmatprep.mubr.f32.mxu0 0.0
        %1063 = vmatmul.mubr.f32.gmra.mxu0 %v502
        %v1064 = vpop.f32.mrf.mxu0
        %v1065 = vadd.f32 0.0, %v1064
        %v1066 = vpop.f32.mrf.mxu0
        %1067 = vmatprep.mubr.f32.mxu0 0.0
        %1068 = vmatmul.mubr.f32.gmra.mxu0 %v505
        %v1069 = vpop.f32.mrf.mxu0
        %v1070 = vadd.f32 0.0, %v1069
        %v1071 = vpop.f32.mrf.mxu0
        %1072 = vmatprep.mubr.f32.mxu0 0.0
        %1073 = vmatmul.mubr.f32.gmra.mxu0 %v508
        %v1074 = vpop.f32.mrf.mxu0
        %v1075 = vadd.f32 0.0, %v1074
        %v1076 = vpop.f32.mrf.mxu0
        %1077 = vmatprep.mubr.f32.mxu0 0.0
        %1078 = vmatmul.mubr.f32.gmra.mxu0 %v511
        %v1079 = vpop.f32.mrf.mxu0
        %v1080 = vadd.f32 0.0, %v1079
        %v1081 = vpop.f32.mrf.mxu0
        %1082 = vmatprep.mubr.f32.mxu0 0.0
        %1083 = vmatmul.mubr.f32.gmra.mxu0 %v514
        %v1084 = vpop.f32.mrf.mxu0
        %v1085 = vadd.f32 0.0, %v1084
        %v1086 = vpop.f32.mrf.mxu0
        %1087 = vmatprep.mubr.f32.mxu0 0.0
        %1088 = vmatmul.mubr.f32.gmra.mxu0 %v517
        %v1089 = vpop.f32.mrf.mxu0
        %v1090 = vadd.f32 0.0, %v1089
        %v1091 = vpop.f32.mrf.mxu0
        %1092 = vmatprep.mubr.f32.mxu0 0.0
        %1093 = vmatmul.mubr.f32.gmra.mxu0 %v520
        %v1094 = vpop.f32.mrf.mxu0
        %v1095 = vadd.f32 0.0, %v1094
        %v1096 = vpop.f32.mrf.mxu0
        %1097 = vmatprep.mubr.f32.mxu0 0.0
        %1098 = vmatmul.mubr.f32.gmra.mxu0 %v523
        %v1099 = vpop.f32.mrf.mxu0
        %v1100 = vadd.f32 0.0, %v1099
        %v1101 = vpop.f32.mrf.mxu0
        %1102 = vmatprep.mubr.f32.mxu0 0.0
        %1103 = vmatmul.mubr.f32.gmra.mxu0 %v526
        %v1104 = vpop.f32.mrf.mxu0
        %v1105 = vadd.f32 0.0, %v1104
        %v1106 = vpop.f32.mrf.mxu0
        %1107 = vmatprep.mubr.f32.mxu0 0.0
        %1108 = vmatmul.mubr.f32.gmra.mxu0 %v529
        %v1109 = vpop.f32.mrf.mxu0
        %v1110 = vadd.f32 0.0, %v1109
        %v1111 = vpop.f32.mrf.mxu0
        %1112 = vmatprep.mubr.f32.mxu0 0.0
        %1113 = vmatmul.mubr.f32.gmra.mxu0 %v532
        %v1114 = vpop.f32.mrf.mxu0
        %v1115 = vadd.f32 0.0, %v1114
        %v1116 = vpop.f32.mrf.mxu0
        %1117 = vmatprep.mubr.f32.mxu0 0.0
        %1118 = vmatmul.mubr.f32.gmra.mxu0 %v535
        %v1119 = vpop.f32.mrf.mxu0
        %v1120 = vadd.f32 0.0, %v1119
        %v1121 = vpop.f32.mrf.mxu0
        %1122 = vmatprep.mubr.f32.mxu0 0.0
        %1123 = vmatmul.mubr.f32.gmra.mxu0 %v538
        %v1124 = vpop.f32.mrf.mxu0
        %v1125 = vadd.f32 0.0, %v1124
        %v1126 = vpop.f32.mrf.mxu0
        %1127 = vmatprep.mubr.f32.mxu0 0.0
        %1128 = vmatmul.mubr.f32.gmra.mxu0 %v541
        %v1129 = vpop.f32.mrf.mxu0
        %v1130 = vadd.f32 0.0, %v1129
        %v1131 = vpop.f32.mrf.mxu0
        %1132 = vmatprep.mubr.f32.mxu0 0.0
        %1133 = vmatmul.mubr.f32.gmra.mxu0 %v544
        %v1134 = vpop.f32.mrf.mxu0
        %v1135 = vadd.f32 0.0, %v1134
        %v1136 = vpop.f32.mrf.mxu0
        %1137 = vdwg.mxu0
        %1138 = vst [vmem:[%s209] sm:$0xff] %v613
        %1139 = vst [vmem:[%s209 + $0x8] sm:$0xff] %v615
        %vm1140 = vcmask 613376
        %1141 = vst.msk [vmem:[%s209 + $0x10] sm:$0xff] %vm1140, %v930
        %1142 = vst [vmem:[%s209 + $0x18] sm:$0xff] %v619
        %1143 = vst [vmem:[%s209 + $0x20] sm:$0xff] %v621
        %1144 = vst.msk [vmem:[%s209 + $0x28] sm:$0xff] %vm1140, %v935
        %1145 = vst [vmem:[%s209 + $0x30] sm:$0xff] %v625
        %1146 = vst [vmem:[%s209 + $0x38] sm:$0xff] %v627
        %1147 = vst.msk [vmem:[%s209 + $0x40] sm:$0xff] %vm1140, %v940
        %1148 = vst [vmem:[%s209 + $0x48] sm:$0xff] %v631
        %1149 = vst [vmem:[%s209 + $0x50] sm:$0xff] %v633
        %1150 = vst.msk [vmem:[%s209 + $0x58] sm:$0xff] %vm1140, %v945
        %1151 = vst [vmem:[%s209 + $0x60] sm:$0xff] %v637
        %1152 = vst [vmem:[%s209 + $0x68] sm:$0xff] %v639
        %1153 = vst.msk [vmem:[%s209 + $0x70] sm:$0xff] %vm1140, %v950
        %1154 = vst [vmem:[%s209 + $0x78] sm:$0xff] %v643
        %1155 = vst [vmem:[%s209 + $0x80] sm:$0xff] %v645
        %1156 = vst.msk [vmem:[%s209 + $0x88] sm:$0xff] %vm1140, %v955
        %1157 = vst [vmem:[%s209 + $0x90] sm:$0xff] %v649
        %1158 = vst [vmem:[%s209 + $0x98] sm:$0xff] %v651
        %1159 = vst.msk [vmem:[%s209 + $0xa0] sm:$0xff] %vm1140, %v960
        %1160 = vst [vmem:[%s209 + $0xa8] sm:$0xff] %v655
        %1161 = vst [vmem:[%s209 + $0xb0] sm:$0xff] %v657
        %1162 = vst.msk [vmem:[%s209 + $0xb8] sm:$0xff] %vm1140, %v965
        %1163 = vst [vmem:[%s209 + $0xc0] sm:$0xff] %v661
        %1164 = vst [vmem:[%s209 + $0xc8] sm:$0xff] %v663
        %1165 = vst.msk [vmem:[%s209 + $0xd0] sm:$0xff] %vm1140, %v970
        %1166 = vst [vmem:[%s209 + $0xd8] sm:$0xff] %v667
        %1167 = vst [vmem:[%s209 + $0xe0] sm:$0xff] %v669
        %1168 = vst.msk [vmem:[%s209 + $0xe8] sm:$0xff] %vm1140, %v975
        %1169 = vst [vmem:[%s209 + $0xf0] sm:$0xff] %v673
        %1170 = vst [vmem:[%s209 + $0xf8] sm:$0xff] %v675
        %1171 = vst.msk [vmem:[%s209 + $0x100] sm:$0xff] %vm1140, %v980
        %1172 = vst [vmem:[%s209 + $0x108] sm:$0xff] %v679
        %1173 = vst [vmem:[%s209 + $0x110] sm:$0xff] %v681
        %1174 = vst.msk [vmem:[%s209 + $0x118] sm:$0xff] %vm1140, %v985
        %1175 = vst [vmem:[%s209 + $0x120] sm:$0xff] %v685
        %1176 = vst [vmem:[%s209 + $0x128] sm:$0xff] %v687
        %1177 = vst.msk [vmem:[%s209 + $0x130] sm:$0xff] %vm1140, %v990
        %1178 = vst [vmem:[%s209 + $0x138] sm:$0xff] %v691
        %1179 = vst [vmem:[%s209 + $0x140] sm:$0xff] %v693
        %1180 = vst.msk [vmem:[%s209 + $0x148] sm:$0xff] %vm1140, %v995
        %1181 = vst [vmem:[%s209 + $0x150] sm:$0xff] %v697
        %1182 = vst [vmem:[%s209 + $0x158] sm:$0xff] %v699
        %1183 = vst.msk [vmem:[%s209 + $0x160] sm:$0xff] %vm1140, %v1000
        %1184 = vst [vmem:[%s209 + $0x168] sm:$0xff] %v703
        %1185 = vst [vmem:[%s209 + $0x170] sm:$0xff] %v705
        %1186 = vst.msk [vmem:[%s209 + $0x178] sm:$0xff] %vm1140, %v1005
        %1187 = vst [vmem:[%s209 + $0x180] sm:$0xff] %v709
        %1188 = vst [vmem:[%s209 + $0x188] sm:$0xff] %v711
        %1189 = vst.msk [vmem:[%s209 + $0x190] sm:$0xff] %vm1140, %v1010
        %1190 = vst [vmem:[%s209 + $0x198] sm:$0xff] %v715
        %1191 = vst [vmem:[%s209 + $0x1a0] sm:$0xff] %v717
        %1192 = vst.msk [vmem:[%s209 + $0x1a8] sm:$0xff] %vm1140, %v1015
        %1193 = vst [vmem:[%s209 + $0x1b0] sm:$0xff] %v721
        %1194 = vst [vmem:[%s209 + $0x1b8] sm:$0xff] %v723
        %1195 = vst.msk [vmem:[%s209 + $0x1c0] sm:$0xff] %vm1140, %v1020
        %1196 = vst [vmem:[%s209 + $0x1c8] sm:$0xff] %v727
        %1197 = vst [vmem:[%s209 + $0x1d0] sm:$0xff] %v729
        %1198 = vst.msk [vmem:[%s209 + $0x1d8] sm:$0xff] %vm1140, %v1025
        %1199 = vst [vmem:[%s209 + $0x1e0] sm:$0xff] %v733
        %1200 = vst [vmem:[%s209 + $0x1e8] sm:$0xff] %v735
        %1201 = vst.msk [vmem:[%s209 + $0x1f0] sm:$0xff] %vm1140, %v1030
        %1202 = vst [vmem:[%s209 + $0x1f8] sm:$0xff] %v739
        %1203 = vst [vmem:[%s209 + $0x200] sm:$0xff] %v741
        %1204 = vst.msk [vmem:[%s209 + $0x208] sm:$0xff] %vm1140, %v1035
        %1205 = vst [vmem:[%s209 + $0x210] sm:$0xff] %v745
        %1206 = vst [vmem:[%s209 + $0x218] sm:$0xff] %v747
        %1207 = vst.msk [vmem:[%s209 + $0x220] sm:$0xff] %vm1140, %v1040
        %1208 = vst [vmem:[%s209 + $0x228] sm:$0xff] %v751
        %1209 = vst [vmem:[%s209 + $0x230] sm:$0xff] %v753
        %1210 = vst.msk [vmem:[%s209 + $0x238] sm:$0xff] %vm1140, %v1045
        %1211 = vst [vmem:[%s209 + $0x240] sm:$0xff] %v757
        %1212 = vst [vmem:[%s209 + $0x248] sm:$0xff] %v759
        %1213 = vst.msk [vmem:[%s209 + $0x250] sm:$0xff] %vm1140, %v1050
        %1214 = vst [vmem:[%s209 + $0x258] sm:$0xff] %v763
        %1215 = vst [vmem:[%s209 + $0x260] sm:$0xff] %v765
        %1216 = vst.msk [vmem:[%s209 + $0x268] sm:$0xff] %vm1140, %v1055
        %1217 = vst [vmem:[%s209 + $0x270] sm:$0xff] %v769
        %1218 = vst [vmem:[%s209 + $0x278] sm:$0xff] %v771
        %1219 = vst.msk [vmem:[%s209 + $0x280] sm:$0xff] %vm1140, %v1060
        %1220 = vst [vmem:[%s209 + $0x288] sm:$0xff] %v775
        %1221 = vst [vmem:[%s209 + $0x290] sm:$0xff] %v777
        %1222 = vst.msk [vmem:[%s209 + $0x298] sm:$0xff] %vm1140, %v1065
        %1223 = vst [vmem:[%s209 + $0x2a0] sm:$0xff] %v781
        %1224 = vst [vmem:[%s209 + $0x2a8] sm:$0xff] %v783
        %1225 = vst.msk [vmem:[%s209 + $0x2b0] sm:$0xff] %vm1140, %v1070
        %1226 = vst [vmem:[%s209 + $0x2b8] sm:$0xff] %v787
        %1227 = vst [vmem:[%s209 + $0x2c0] sm:$0xff] %v789
        %1228 = vst.msk [vmem:[%s209 + $0x2c8] sm:$0xff] %vm1140, %v1075
        %1229 = vst [vmem:[%s209 + $0x2d0] sm:$0xff] %v793
        %1230 = vst [vmem:[%s209 + $0x2d8] sm:$0xff] %v795
        %1231 = vst.msk [vmem:[%s209 + $0x2e0] sm:$0xff] %vm1140, %v1080
        %1232 = vst [vmem:[%s209 + $0x2e8] sm:$0xff] %v799
        %1233 = vst [vmem:[%s209 + $0x2f0] sm:$0xff] %v801
        %1234 = vst.msk [vmem:[%s209 + $0x2f8] sm:$0xff] %vm1140, %v1085
        %1235 = vst [vmem:[%s209 + $0x300] sm:$0xff] %v805
        %1236 = vst [vmem:[%s209 + $0x308] sm:$0xff] %v807
        %1237 = vst.msk [vmem:[%s209 + $0x310] sm:$0xff] %vm1140, %v1090
        %1238 = vst [vmem:[%s209 + $0x318] sm:$0xff] %v811
        %1239 = vst [vmem:[%s209 + $0x320] sm:$0xff] %v813
        %1240 = vst.msk [vmem:[%s209 + $0x328] sm:$0xff] %vm1140, %v1095
        %1241 = vst [vmem:[%s209 + $0x330] sm:$0xff] %v817
        %1242 = vst [vmem:[%s209 + $0x338] sm:$0xff] %v819
        %1243 = vst.msk [vmem:[%s209 + $0x340] sm:$0xff] %vm1140, %v1100
        %1244 = vst [vmem:[%s209 + $0x348] sm:$0xff] %v823
        %1245 = vst [vmem:[%s209 + $0x350] sm:$0xff] %v825
        %1246 = vst.msk [vmem:[%s209 + $0x358] sm:$0xff] %vm1140, %v1105
        %1247 = vst [vmem:[%s209 + $0x360] sm:$0xff] %v829
        %1248 = vst [vmem:[%s209 + $0x368] sm:$0xff] %v831
        %1249 = vst.msk [vmem:[%s209 + $0x370] sm:$0xff] %vm1140, %v1110
        %1250 = vst [vmem:[%s209 + $0x378] sm:$0xff] %v835
        %1251 = vst [vmem:[%s209 + $0x380] sm:$0xff] %v837
        %1252 = vst.msk [vmem:[%s209 + $0x388] sm:$0xff] %vm1140, %v1115
        %1253 = vst [vmem:[%s209 + $0x390] sm:$0xff] %v841
        %1254 = vst [vmem:[%s209 + $0x398] sm:$0xff] %v843
        %1255 = vst.msk [vmem:[%s209 + $0x3a0] sm:$0xff] %vm1140, %v1120
        %1256 = vst [vmem:[%s209 + $0x3a8] sm:$0xff] %v847
        %1257 = vst [vmem:[%s209 + $0x3b0] sm:$0xff] %v849
        %1258 = vst.msk [vmem:[%s209 + $0x3b8] sm:$0xff] %vm1140, %v1125
        %1259 = vst [vmem:[%s209 + $0x3c0] sm:$0xff] %v853
        %1260 = vst [vmem:[%s209 + $0x3c8] sm:$0xff] %v855
        %1261 = vst.msk [vmem:[%s209 + $0x3d0] sm:$0xff] %vm1140, %v1130
        %1262 = vst [vmem:[%s209 + $0x3d8] sm:$0x7] %v859
        %1263 = vst [vmem:[%s209 + $0x3e0] sm:$0x7] %v861
        %vm1264 = vcmask 608256
        %1265 = vst.msk [vmem:[%s209 + $0x3e8] sm:$0x7] %vm1264, %v1135
        %s1266 = scalar_lea.vmem %s175, 16 [#allocation2]
        %v1267 = vld [vmem:[%s1266] sm:$0xff]
        %v1268 = vld [vmem:[%s1266 + $0x8] sm:$0xff]
        %v1270 = vsel %vm261, %v1267, 0
        %v1273 = vsel %vm261, %v1268, 0
        %1275 = vmatprep.subr.mxu0 0.0
        %1276 = vmatpush1.msra.mxu0 0.0
        %1277 = vmatprep.subr.mxu0 0.0
        %1278 = vmatpush1.msra.mxu0 0.0
        %1279 = vmatprep.subr.mxu0 0.0
        %1280 = vmatpush1.msra.mxu0 0.0
        %1281 = vmatprep.subr.mxu0 0.0
        %1282 = vmatpush1.msra.mxu0 0.0
        %1283 = vmatprep.subr.mxu0 0.0
        %1284 = vmatpush1.msra.mxu0 0.0
        %1285 = vmatprep.subr.mxu0 0.0
        %1286 = vmatpush1.msra.mxu0 0.0
        %1287 = vmatprep.subr.mxu0 0.0
        %1288 = vmatpush1.msra.mxu0 0.0
        %1289 = vmatprep.subr.mxu0 0.0
        %1290 = vmatpush1.msra.mxu0 0.0
        %1291 = vmatprep.subr.mxu0 0.0
        %1292 = vmatpush1.msra.mxu0 0.0
        %1293 = vmatprep.subr.mxu0 0.0
        %1294 = vmatpush1.msra.mxu0 0.0
        %1295 = vmatprep.subr.mxu0 0.0
        %1296 = vmatpush1.msra.mxu0 0.0
        %1297 = vmatprep.subr.mxu0 0.0
        %1298 = vmatpush1.msra.mxu0 0.0
        %1299 = vmatprep.subr.mxu0 0.0
        %1300 = vmatpush1.msra.mxu0 0.0
        %1301 = vmatprep.subr.mxu0 0.0
        %1302 = vmatpush1.msra.mxu0 0.0
        %1303 = vmatprep.subr.mxu0 %v215
        %1304 = vmatpush1.msra.mxu0 %v214
        %1305 = vmatprep.subr.mxu0 %v212
        %1306 = vmatpush1.msra.mxu0 %v211
        %1307 = vmatprep.subr.mxu0 0.0
        %1308 = vmatpush2.msra.mxu0 0.0
        %1309 = vmatprep.subr.mxu0 0.0
        %1310 = vmatpush2.msra.mxu0 0.0
        %1311 = vmatprep.subr.mxu0 0.0
        %1312 = vmatpush2.msra.mxu0 0.0
        %1313 = vmatprep.subr.mxu0 0.0
        %1314 = vmatpush2.msra.mxu0 0.0
        %1315 = vmatprep.subr.mxu0 0.0
        %1316 = vmatpush2.msra.mxu0 0.0
        %1317 = vmatprep.subr.mxu0 0.0
        %1318 = vmatpush2.msra.mxu0 0.0
        %1319 = vmatprep.subr.mxu0 0.0
        %1320 = vmatpush2.msra.mxu0 0.0
        %1321 = vmatprep.subr.mxu0 0.0
        %1322 = vmatpush2.msra.mxu0 0.0
        %1323 = vmatprep.subr.mxu0 0.0
        %1324 = vmatpush2.msra.mxu0 0.0
        %1325 = vmatprep.subr.mxu0 0.0
        %1326 = vmatpush2.msra.mxu0 0.0
        %1327 = vmatprep.subr.mxu0 0.0
        %1328 = vmatpush2.msra.mxu0 0.0
        %1329 = vmatprep.subr.mxu0 0.0
        %1330 = vmatpush2.msra.mxu0 0.0
        %1331 = vmatprep.subr.mxu0 0.0
        %1332 = vmatpush2.msra.mxu0 0.0
        %1333 = vmatprep.subr.mxu0 0.0
        %1334 = vmatpush2.msra.mxu0 0.0
        %1335 = vmatprep.subr.mxu0 0.0
        %1336 = vmatpush2.msra.mxu0 0.0
        %1337 = vmatprep.subr.mxu0 0.0
        %1338 = vmatpush2.msra.mxu0 0.0
        %1339 = vmatprep.mubr.f32.mxu0 0.0
        %1340 = vmatmul.mubr.f32.gmra.mxu0 %v1270
        %v1341 = vpop.f32.mrf.mxu0
        %v1342 = vadd.f32 0.0, %v1341
        %v1343 = vpop.f32.mrf.mxu0
        %v1344 = vadd.f32 0.0, %v1343
        %1345 = vmatprep.mubr.f32.mxu0 0.0
        %1346 = vmatmul.mubr.f32.gmra.mxu0 %v1273
        %v1347 = vpop.f32.mrf.mxu0
        %v1348 = vadd.f32 0.0, %v1347
        %v1349 = vpop.f32.mrf.mxu0
        %v1350 = vadd.f32 0.0, %v1349
        %1351 = vdwg.mxu0
        %1352 = vmatprep.subr.mxu0 0.0
        %1353 = vmatpush1.msra.mxu0 0.0
        %1354 = vmatprep.subr.mxu0 0.0
        %1355 = vmatpush1.msra.mxu0 0.0
        %1356 = vmatprep.subr.mxu0 0.0
        %1357 = vmatpush1.msra.mxu0 0.0
        %1358 = vmatprep.subr.mxu0 0.0
        %1359 = vmatpush1.msra.mxu0 0.0
        %1360 = vmatprep.subr.mxu0 0.0
        %1361 = vmatpush1.msra.mxu0 0.0
        %1362 = vmatprep.subr.mxu0 0.0
        %1363 = vmatpush1.msra.mxu0 0.0
        %1364 = vmatprep.subr.mxu0 0.0
        %1365 = vmatpush1.msra.mxu0 0.0
        %1366 = vmatprep.subr.mxu0 0.0
        %1367 = vmatpush1.msra.mxu0 0.0
        %1368 = vmatprep.subr.mxu0 0.0
        %1369 = vmatpush1.msra.mxu0 0.0
        %1370 = vmatprep.subr.mxu0 0.0
        %1371 = vmatpush1.msra.mxu0 0.0
        %1372 = vmatprep.subr.mxu0 0.0
        %1373 = vmatpush1.msra.mxu0 0.0
        %1374 = vmatprep.subr.mxu0 0.0
        %1375 = vmatpush1.msra.mxu0 0.0
        %1376 = vmatprep.subr.mxu0 0.0
        %1377 = vmatpush1.msra.mxu0 0.0
        %1378 = vmatprep.subr.mxu0 0.0
        %1379 = vmatpush1.msra.mxu0 0.0
        %1380 = vmatprep.subr.mxu0 0.0
        %1381 = vmatpush1.msra.mxu0 %v216
        %1382 = vmatprep.subr.mxu0 0.0
        %1383 = vmatpush1.msra.mxu0 %v213
        %1384 = vmatprep.subr.mxu0 0.0
        %1385 = vmatpush2.msra.mxu0 0.0
        %1386 = vmatprep.subr.mxu0 0.0
        %1387 = vmatpush2.msra.mxu0 0.0
        %1388 = vmatprep.subr.mxu0 0.0
        %1389 = vmatpush2.msra.mxu0 0.0
        %1390 = vmatprep.subr.mxu0 0.0
        %1391 = vmatpush2.msra.mxu0 0.0
        %1392 = vmatprep.subr.mxu0 0.0
        %1393 = vmatpush2.msra.mxu0 0.0
        %1394 = vmatprep.subr.mxu0 0.0
        %1395 = vmatpush2.msra.mxu0 0.0
        %1396 = vmatprep.subr.mxu0 0.0
        %1397 = vmatpush2.msra.mxu0 0.0
        %1398 = vmatprep.subr.mxu0 0.0
        %1399 = vmatpush2.msra.mxu0 0.0
        %1400 = vmatprep.subr.mxu0 0.0
        %1401 = vmatpush2.msra.mxu0 0.0
        %1402 = vmatprep.subr.mxu0 0.0
        %1403 = vmatpush2.msra.mxu0 0.0
        %1404 = vmatprep.subr.mxu0 0.0
        %1405 = vmatpush2.msra.mxu0 0.0
        %1406 = vmatprep.subr.mxu0 0.0
        %1407 = vmatpush2.msra.mxu0 0.0
        %1408 = vmatprep.subr.mxu0 0.0
        %1409 = vmatpush2.msra.mxu0 0.0
        %1410 = vmatprep.subr.mxu0 0.0
        %1411 = vmatpush2.msra.mxu0 0.0
        %1412 = vmatprep.subr.mxu0 0.0
        %1413 = vmatpush2.msra.mxu0 0.0
        %1414 = vmatprep.subr.mxu0 0.0
        %1415 = vmatpush2.msra.mxu0 0.0
        %1416 = vmatprep.mubr.f32.mxu0 0.0
        %1417 = vmatmul.mubr.f32.gmra.mxu0 %v1270
        %v1418 = vpop.f32.mrf.mxu0
        %v1419 = vadd.f32 0.0, %v1418
        %v1420 = vpop.f32.mrf.mxu0
        %1421 = vmatprep.mubr.f32.mxu0 0.0
        %1422 = vmatmul.mubr.f32.gmra.mxu0 %v1273
        %v1423 = vpop.f32.mrf.mxu0
        %v1424 = vadd.f32 0.0, %v1423
        %v1425 = vpop.f32.mrf.mxu0
        %1426 = vdwg.mxu0
        %1427 = vmatprep.subr.mxu0 0.0
        %1428 = vmatpush1.msra.mxu0 0.0
        %1429 = vmatprep.subr.mxu0 0.0
        %1430 = vmatpush1.msra.mxu0 0.0
        %1431 = vmatprep.subr.mxu0 0.0
        %1432 = vmatpush1.msra.mxu0 0.0
        %1433 = vmatprep.subr.mxu0 0.0
        %1434 = vmatpush1.msra.mxu0 0.0
        %1435 = vmatprep.subr.mxu0 0.0
        %1436 = vmatpush1.msra.mxu0 0.0
        %1437 = vmatprep.subr.mxu0 0.0
        %1438 = vmatpush1.msra.mxu0 0.0
        %1439 = vmatprep.subr.mxu0 0.0
        %1440 = vmatpush1.msra.mxu0 0.0
        %1441 = vmatprep.subr.mxu0 0.0
        %1442 = vmatpush1.msra.mxu0 0.0
        %1443 = vmatprep.subr.mxu0 0.0
        %1444 = vmatpush1.msra.mxu0 0.0
        %1445 = vmatprep.subr.mxu0 0.0
        %1446 = vmatpush1.msra.mxu0 0.0
        %1447 = vmatprep.subr.mxu0 0.0
        %1448 = vmatpush1.msra.mxu0 0.0
        %1449 = vmatprep.subr.mxu0 0.0
        %1450 = vmatpush1.msra.mxu0 0.0
        %1451 = vmatprep.subr.mxu0 0.0
        %1452 = vmatpush1.msra.mxu0 0.0
        %1453 = vmatprep.subr.mxu0 0.0
        %1454 = vmatpush1.msra.mxu0 0.0
        %1455 = vmatprep.subr.mxu0 %v1350
        %1456 = vmatpush1.msra.mxu0 %v1348
        %1457 = vmatprep.subr.mxu0 %v1344
        %1458 = vmatpush1.msra.mxu0 %v1342
        %1459 = vmatprep.subr.mxu0 0.0
        %1460 = vmatpush2.msra.mxu0 0.0
        %1461 = vmatprep.subr.mxu0 0.0
        %1462 = vmatpush2.msra.mxu0 0.0
        %1463 = vmatprep.subr.mxu0 0.0
        %1464 = vmatpush2.msra.mxu0 0.0
        %1465 = vmatprep.subr.mxu0 0.0
        %1466 = vmatpush2.msra.mxu0 0.0
        %1467 = vmatprep.subr.mxu0 0.0
        %1468 = vmatpush2.msra.mxu0 0.0
        %1469 = vmatprep.subr.mxu0 0.0
        %1470 = vmatpush2.msra.mxu0 0.0
        %1471 = vmatprep.subr.mxu0 0.0
        %1472 = vmatpush2.msra.mxu0 0.0
        %1473 = vmatprep.subr.mxu0 0.0
        %1474 = vmatpush2.msra.mxu0 0.0
        %1475 = vmatprep.subr.mxu0 0.0
        %1476 = vmatpush2.msra.mxu0 0.0
        %1477 = vmatprep.subr.mxu0 0.0
        %1478 = vmatpush2.msra.mxu0 0.0
        %1479 = vmatprep.subr.mxu0 0.0
        %1480 = vmatpush2.msra.mxu0 0.0
        %1481 = vmatprep.subr.mxu0 0.0
        %1482 = vmatpush2.msra.mxu0 0.0
        %1483 = vmatprep.subr.mxu0 0.0
        %1484 = vmatpush2.msra.mxu0 0.0
        %1485 = vmatprep.subr.mxu0 0.0
        %1486 = vmatpush2.msra.mxu0 0.0
        %1487 = vmatprep.subr.mxu0 0.0
        %1488 = vmatpush2.msra.mxu0 0.0
        %1489 = vmatprep.subr.mxu0 0.0
        %1490 = vmatpush2.msra.mxu0 0.0
        %1491 = vmatprep.mubr.f32.mxu0 0.0
        %1492 = vmatmul.mubr.f32.gmra.mxu0 %v421
        %v1493 = vpop.f32.mrf.mxu0
        %v1494 = vadd.f32 0.0, %v1493
        %v1495 = vpop.f32.mrf.mxu0
        %v1496 = vadd.f32 0.0, %v1495
        %1497 = vmatprep.mubr.f32.mxu0 0.0
        %1498 = vmatmul.mubr.f32.gmra.mxu0 %v424
        %v1499 = vpop.f32.mrf.mxu0
        %v1500 = vadd.f32 0.0, %v1499
        %v1501 = vpop.f32.mrf.mxu0
        %v1502 = vadd.f32 0.0, %v1501
        %1503 = vmatprep.mubr.f32.mxu0 0.0
        %1504 = vmatmul.mubr.f32.gmra.mxu0 %v427
        %v1505 = vpop.f32.mrf.mxu0
        %v1506 = vadd.f32 0.0, %v1505
        %v1507 = vpop.f32.mrf.mxu0
        %v1508 = vadd.f32 0.0, %v1507
        %1509 = vmatprep.mubr.f32.mxu0 0.0
        %1510 = vmatmul.mubr.f32.gmra.mxu0 %v430
        %v1511 = vpop.f32.mrf.mxu0
        %v1512 = vadd.f32 0.0, %v1511
        %v1513 = vpop.f32.mrf.mxu0
        %v1514 = vadd.f32 0.0, %v1513
        %1515 = vmatprep.mubr.f32.mxu0 0.0
        %1516 = vmatmul.mubr.f32.gmra.mxu0 %v433
        %v1517 = vpop.f32.mrf.mxu0
        %v1518 = vadd.f32 0.0, %v1517
        %v1519 = vpop.f32.mrf.mxu0
        %v1520 = vadd.f32 0.0, %v1519
        %1521 = vmatprep.mubr.f32.mxu0 0.0
        %1522 = vmatmul.mubr.f32.gmra.mxu0 %v436
        %v1523 = vpop.f32.mrf.mxu0
        %v1524 = vadd.f32 0.0, %v1523
        %v1525 = vpop.f32.mrf.mxu0
        %v1526 = vadd.f32 0.0, %v1525
        %1527 = vmatprep.mubr.f32.mxu0 0.0
        %1528 = vmatmul.mubr.f32.gmra.mxu0 %v439
        %v1529 = vpop.f32.mrf.mxu0
        %v1530 = vadd.f32 0.0, %v1529
        %v1531 = vpop.f32.mrf.mxu0
        %v1532 = vadd.f32 0.0, %v1531
        %1533 = vmatprep.mubr.f32.mxu0 0.0
        %1534 = vmatmul.mubr.f32.gmra.mxu0 %v442
        %v1535 = vpop.f32.mrf.mxu0
        %v1536 = vadd.f32 0.0, %v1535
        %v1537 = vpop.f32.mrf.mxu0
        %v1538 = vadd.f32 0.0, %v1537
        %1539 = vmatprep.mubr.f32.mxu0 0.0
        %1540 = vmatmul.mubr.f32.gmra.mxu0 %v445
        %v1541 = vpop.f32.mrf.mxu0
        %v1542 = vadd.f32 0.0, %v1541
        %v1543 = vpop.f32.mrf.mxu0
        %v1544 = vadd.f32 0.0, %v1543
        %1545 = vmatprep.mubr.f32.mxu0 0.0
        %1546 = vmatmul.mubr.f32.gmra.mxu0 %v448
        %v1547 = vpop.f32.mrf.mxu0
        %v1548 = vadd.f32 0.0, %v1547
        %v1549 = vpop.f32.mrf.mxu0
        %v1550 = vadd.f32 0.0, %v1549
        %1551 = vmatprep.mubr.f32.mxu0 0.0
        %1552 = vmatmul.mubr.f32.gmra.mxu0 %v451
        %v1553 = vpop.f32.mrf.mxu0
        %v1554 = vadd.f32 0.0, %v1553
        %v1555 = vpop.f32.mrf.mxu0
        %v1556 = vadd.f32 0.0, %v1555
        %1557 = vmatprep.mubr.f32.mxu0 0.0
        %1558 = vmatmul.mubr.f32.gmra.mxu0 %v454
        %v1559 = vpop.f32.mrf.mxu0
        %v1560 = vadd.f32 0.0, %v1559
        %v1561 = vpop.f32.mrf.mxu0
        %v1562 = vadd.f32 0.0, %v1561
        %1563 = vmatprep.mubr.f32.mxu0 0.0
        %1564 = vmatmul.mubr.f32.gmra.mxu0 %v457
        %v1565 = vpop.f32.mrf.mxu0
        %v1566 = vadd.f32 0.0, %v1565
        %v1567 = vpop.f32.mrf.mxu0
        %v1568 = vadd.f32 0.0, %v1567
        %1569 = vmatprep.mubr.f32.mxu0 0.0
        %1570 = vmatmul.mubr.f32.gmra.mxu0 %v460
        %v1571 = vpop.f32.mrf.mxu0
        %v1572 = vadd.f32 0.0, %v1571
        %v1573 = vpop.f32.mrf.mxu0
        %v1574 = vadd.f32 0.0, %v1573
        %1575 = vmatprep.mubr.f32.mxu0 0.0
        %1576 = vmatmul.mubr.f32.gmra.mxu0 %v463
        %v1577 = vpop.f32.mrf.mxu0
        %v1578 = vadd.f32 0.0, %v1577
        %v1579 = vpop.f32.mrf.mxu0
        %v1580 = vadd.f32 0.0, %v1579
        %1581 = vmatprep.mubr.f32.mxu0 0.0
        %1582 = vmatmul.mubr.f32.gmra.mxu0 %v466
        %v1583 = vpop.f32.mrf.mxu0
        %v1584 = vadd.f32 0.0, %v1583
        %v1585 = vpop.f32.mrf.mxu0
        %v1586 = vadd.f32 0.0, %v1585
        %1587 = vmatprep.mubr.f32.mxu0 0.0
        %1588 = vmatmul.mubr.f32.gmra.mxu0 %v469
        %v1589 = vpop.f32.mrf.mxu0
        %v1590 = vadd.f32 0.0, %v1589
        %v1591 = vpop.f32.mrf.mxu0
        %v1592 = vadd.f32 0.0, %v1591
        %1593 = vmatprep.mubr.f32.mxu0 0.0
        %1594 = vmatmul.mubr.f32.gmra.mxu0 %v472
        %v1595 = vpop.f32.mrf.mxu0
        %v1596 = vadd.f32 0.0, %v1595
        %v1597 = vpop.f32.mrf.mxu0
        %v1598 = vadd.f32 0.0, %v1597
        %1599 = vmatprep.mubr.f32.mxu0 0.0
        %1600 = vmatmul.mubr.f32.gmra.mxu0 %v475
        %v1601 = vpop.f32.mrf.mxu0
        %v1602 = vadd.f32 0.0, %v1601
        %v1603 = vpop.f32.mrf.mxu0
        %v1604 = vadd.f32 0.0, %v1603
        %1605 = vmatprep.mubr.f32.mxu0 0.0
        %1606 = vmatmul.mubr.f32.gmra.mxu0 %v478
        %v1607 = vpop.f32.mrf.mxu0
        %v1608 = vadd.f32 0.0, %v1607
        %v1609 = vpop.f32.mrf.mxu0
        %v1610 = vadd.f32 0.0, %v1609
        %1611 = vmatprep.mubr.f32.mxu0 0.0
        %1612 = vmatmul.mubr.f32.gmra.mxu0 %v481
        %v1613 = vpop.f32.mrf.mxu0
        %v1614 = vadd.f32 0.0, %v1613
        %v1615 = vpop.f32.mrf.mxu0
        %v1616 = vadd.f32 0.0, %v1615
        %1617 = vmatprep.mubr.f32.mxu0 0.0
        %1618 = vmatmul.mubr.f32.gmra.mxu0 %v484
        %v1619 = vpop.f32.mrf.mxu0
        %v1620 = vadd.f32 0.0, %v1619
        %v1621 = vpop.f32.mrf.mxu0
        %v1622 = vadd.f32 0.0, %v1621
        %1623 = vmatprep.mubr.f32.mxu0 0.0
        %1624 = vmatmul.mubr.f32.gmra.mxu0 %v487
        %v1625 = vpop.f32.mrf.mxu0
        %v1626 = vadd.f32 0.0, %v1625
        %v1627 = vpop.f32.mrf.mxu0
        %v1628 = vadd.f32 0.0, %v1627
        %1629 = vmatprep.mubr.f32.mxu0 0.0
        %1630 = vmatmul.mubr.f32.gmra.mxu0 %v490
        %v1631 = vpop.f32.mrf.mxu0
        %v1632 = vadd.f32 0.0, %v1631
        %v1633 = vpop.f32.mrf.mxu0
        %v1634 = vadd.f32 0.0, %v1633
        %1635 = vmatprep.mubr.f32.mxu0 0.0
        %1636 = vmatmul.mubr.f32.gmra.mxu0 %v493
        %v1637 = vpop.f32.mrf.mxu0
        %v1638 = vadd.f32 0.0, %v1637
        %v1639 = vpop.f32.mrf.mxu0
        %v1640 = vadd.f32 0.0, %v1639
        %1641 = vmatprep.mubr.f32.mxu0 0.0
        %1642 = vmatmul.mubr.f32.gmra.mxu0 %v496
        %v1643 = vpop.f32.mrf.mxu0
        %v1644 = vadd.f32 0.0, %v1643
        %v1645 = vpop.f32.mrf.mxu0
        %v1646 = vadd.f32 0.0, %v1645
        %1647 = vmatprep.mubr.f32.mxu0 0.0
        %1648 = vmatmul.mubr.f32.gmra.mxu0 %v499
        %v1649 = vpop.f32.mrf.mxu0
        %v1650 = vadd.f32 0.0, %v1649
        %v1651 = vpop.f32.mrf.mxu0
        %v1652 = vadd.f32 0.0, %v1651
        %1653 = vmatprep.mubr.f32.mxu0 0.0
        %1654 = vmatmul.mubr.f32.gmra.mxu0 %v502
        %v1655 = vpop.f32.mrf.mxu0
        %v1656 = vadd.f32 0.0, %v1655
        %v1657 = vpop.f32.mrf.mxu0
        %v1658 = vadd.f32 0.0, %v1657
        %1659 = vmatprep.mubr.f32.mxu0 0.0
        %1660 = vmatmul.mubr.f32.gmra.mxu0 %v505
        %v1661 = vpop.f32.mrf.mxu0
        %v1662 = vadd.f32 0.0, %v1661
        %v1663 = vpop.f32.mrf.mxu0
        %v1664 = vadd.f32 0.0, %v1663
        %1665 = vmatprep.mubr.f32.mxu0 0.0
        %1666 = vmatmul.mubr.f32.gmra.mxu0 %v508
        %v1667 = vpop.f32.mrf.mxu0
        %v1668 = vadd.f32 0.0, %v1667
        %v1669 = vpop.f32.mrf.mxu0
        %v1670 = vadd.f32 0.0, %v1669
        %1671 = vmatprep.mubr.f32.mxu0 0.0
        %1672 = vmatmul.mubr.f32.gmra.mxu0 %v511
        %v1673 = vpop.f32.mrf.mxu0
        %v1674 = vadd.f32 0.0, %v1673
        %v1675 = vpop.f32.mrf.mxu0
        %v1676 = vadd.f32 0.0, %v1675
        %1677 = vmatprep.mubr.f32.mxu0 0.0
        %1678 = vmatmul.mubr.f32.gmra.mxu0 %v514
        %v1679 = vpop.f32.mrf.mxu0
        %v1680 = vadd.f32 0.0, %v1679
        %v1681 = vpop.f32.mrf.mxu0
        %v1682 = vadd.f32 0.0, %v1681
        %1683 = vmatprep.mubr.f32.mxu0 0.0
        %1684 = vmatmul.mubr.f32.gmra.mxu0 %v517
        %v1685 = vpop.f32.mrf.mxu0
        %v1686 = vadd.f32 0.0, %v1685
        %v1687 = vpop.f32.mrf.mxu0
        %v1688 = vadd.f32 0.0, %v1687
        %1689 = vmatprep.mubr.f32.mxu0 0.0
        %1690 = vmatmul.mubr.f32.gmra.mxu0 %v520
        %v1691 = vpop.f32.mrf.mxu0
        %v1692 = vadd.f32 0.0, %v1691
        %v1693 = vpop.f32.mrf.mxu0
        %v1694 = vadd.f32 0.0, %v1693
        %1695 = vmatprep.mubr.f32.mxu0 0.0
        %1696 = vmatmul.mubr.f32.gmra.mxu0 %v523
        %v1697 = vpop.f32.mrf.mxu0
        %v1698 = vadd.f32 0.0, %v1697
        %v1699 = vpop.f32.mrf.mxu0
        %v1700 = vadd.f32 0.0, %v1699
        %1701 = vmatprep.mubr.f32.mxu0 0.0
        %1702 = vmatmul.mubr.f32.gmra.mxu0 %v526
        %v1703 = vpop.f32.mrf.mxu0
        %v1704 = vadd.f32 0.0, %v1703
        %v1705 = vpop.f32.mrf.mxu0
        %v1706 = vadd.f32 0.0, %v1705
        %1707 = vmatprep.mubr.f32.mxu0 0.0
        %1708 = vmatmul.mubr.f32.gmra.mxu0 %v529
        %v1709 = vpop.f32.mrf.mxu0
        %v1710 = vadd.f32 0.0, %v1709
        %v1711 = vpop.f32.mrf.mxu0
        %v1712 = vadd.f32 0.0, %v1711
        %1713 = vmatprep.mubr.f32.mxu0 0.0
        %1714 = vmatmul.mubr.f32.gmra.mxu0 %v532
        %v1715 = vpop.f32.mrf.mxu0
        %v1716 = vadd.f32 0.0, %v1715
        %v1717 = vpop.f32.mrf.mxu0
        %v1718 = vadd.f32 0.0, %v1717
        %1719 = vmatprep.mubr.f32.mxu0 0.0
        %1720 = vmatmul.mubr.f32.gmra.mxu0 %v535
        %v1721 = vpop.f32.mrf.mxu0
        %v1722 = vadd.f32 0.0, %v1721
        %v1723 = vpop.f32.mrf.mxu0
        %v1724 = vadd.f32 0.0, %v1723
        %1725 = vmatprep.mubr.f32.mxu0 0.0
        %1726 = vmatmul.mubr.f32.gmra.mxu0 %v538
        %v1727 = vpop.f32.mrf.mxu0
        %v1728 = vadd.f32 0.0, %v1727
        %v1729 = vpop.f32.mrf.mxu0
        %v1730 = vadd.f32 0.0, %v1729
        %1731 = vmatprep.mubr.f32.mxu0 0.0
        %1732 = vmatmul.mubr.f32.gmra.mxu0 %v541
        %v1733 = vpop.f32.mrf.mxu0
        %v1734 = vadd.f32 0.0, %v1733
        %v1735 = vpop.f32.mrf.mxu0
        %v1736 = vadd.f32 0.0, %v1735
        %1737 = vmatprep.mubr.f32.mxu0 0.0
        %1738 = vmatmul.mubr.f32.gmra.mxu0 %v544
        %v1739 = vpop.f32.mrf.mxu0
        %v1740 = vadd.f32 0.0, %v1739
        %v1741 = vpop.f32.mrf.mxu0
        %v1742 = vadd.f32 0.0, %v1741
        %1743 = vdwg.mxu0
        %1744 = vmatprep.subr.mxu0 0.0
        %1745 = vmatpush1.msra.mxu0 0.0
        %1746 = vmatprep.subr.mxu0 0.0
        %1747 = vmatpush1.msra.mxu0 0.0
        %1748 = vmatprep.subr.mxu0 0.0
        %1749 = vmatpush1.msra.mxu0 0.0
        %1750 = vmatprep.subr.mxu0 0.0
        %1751 = vmatpush1.msra.mxu0 0.0
        %1752 = vmatprep.subr.mxu0 0.0
        %1753 = vmatpush1.msra.mxu0 0.0
        %1754 = vmatprep.subr.mxu0 0.0
        %1755 = vmatpush1.msra.mxu0 0.0
        %1756 = vmatprep.subr.mxu0 0.0
        %1757 = vmatpush1.msra.mxu0 0.0
        %1758 = vmatprep.subr.mxu0 0.0
        %1759 = vmatpush1.msra.mxu0 0.0
        %1760 = vmatprep.subr.mxu0 0.0
        %1761 = vmatpush1.msra.mxu0 0.0
        %1762 = vmatprep.subr.mxu0 0.0
        %1763 = vmatpush1.msra.mxu0 0.0
        %1764 = vmatprep.subr.mxu0 0.0
        %1765 = vmatpush1.msra.mxu0 0.0
        %1766 = vmatprep.subr.mxu0 0.0
        %1767 = vmatpush1.msra.mxu0 0.0
        %1768 = vmatprep.subr.mxu0 0.0
        %1769 = vmatpush1.msra.mxu0 0.0
        %1770 = vmatprep.subr.mxu0 0.0
        %1771 = vmatpush1.msra.mxu0 0.0
        %1772 = vmatprep.subr.mxu0 0.0
        %1773 = vmatpush1.msra.mxu0 %v1424
        %1774 = vmatprep.subr.mxu0 0.0
        %1775 = vmatpush1.msra.mxu0 %v1419
        %1776 = vmatprep.subr.mxu0 0.0
        %1777 = vmatpush2.msra.mxu0 0.0
        %1778 = vmatprep.subr.mxu0 0.0
        %1779 = vmatpush2.msra.mxu0 0.0
        %1780 = vmatprep.subr.mxu0 0.0
        %1781 = vmatpush2.msra.mxu0 0.0
        %1782 = vmatprep.subr.mxu0 0.0
        %1783 = vmatpush2.msra.mxu0 0.0
        %1784 = vmatprep.subr.mxu0 0.0
        %1785 = vmatpush2.msra.mxu0 0.0
        %1786 = vmatprep.subr.mxu0 0.0
        %1787 = vmatpush2.msra.mxu0 0.0
        %1788 = vmatprep.subr.mxu0 0.0
        %1789 = vmatpush2.msra.mxu0 0.0
        %1790 = vmatprep.subr.mxu0 0.0
        %1791 = vmatpush2.msra.mxu0 0.0
        %1792 = vmatprep.subr.mxu0 0.0
        %1793 = vmatpush2.msra.mxu0 0.0
        %1794 = vmatprep.subr.mxu0 0.0
        %1795 = vmatpush2.msra.mxu0 0.0
        %1796 = vmatprep.subr.mxu0 0.0
        %1797 = vmatpush2.msra.mxu0 0.0
        %1798 = vmatprep.subr.mxu0 0.0
        %1799 = vmatpush2.msra.mxu0 0.0
        %1800 = vmatprep.subr.mxu0 0.0
        %1801 = vmatpush2.msra.mxu0 0.0
        %1802 = vmatprep.subr.mxu0 0.0
        %1803 = vmatpush2.msra.mxu0 0.0
        %1804 = vmatprep.subr.mxu0 0.0
        %1805 = vmatpush2.msra.mxu0 0.0
        %1806 = vmatprep.subr.mxu0 0.0
        %1807 = vmatpush2.msra.mxu0 0.0
        %1808 = vmatprep.mubr.f32.mxu0 0.0
        %1809 = vmatmul.mubr.f32.gmra.mxu0 %v421
        %v1810 = vpop.f32.mrf.mxu0
        %v1811 = vadd.f32 0.0, %v1810
        %v1812 = vpop.f32.mrf.mxu0
        %1813 = vmatprep.mubr.f32.mxu0 0.0
        %1814 = vmatmul.mubr.f32.gmra.mxu0 %v424
        %v1815 = vpop.f32.mrf.mxu0
        %v1816 = vadd.f32 0.0, %v1815
        %v1817 = vpop.f32.mrf.mxu0
        %1818 = vmatprep.mubr.f32.mxu0 0.0
        %1819 = vmatmul.mubr.f32.gmra.mxu0 %v427
        %v1820 = vpop.f32.mrf.mxu0
        %v1821 = vadd.f32 0.0, %v1820
        %v1822 = vpop.f32.mrf.mxu0
        %1823 = vmatprep.mubr.f32.mxu0 0.0
        %1824 = vmatmul.mubr.f32.gmra.mxu0 %v430
        %v1825 = vpop.f32.mrf.mxu0
        %v1826 = vadd.f32 0.0, %v1825
        %v1827 = vpop.f32.mrf.mxu0
        %1828 = vmatprep.mubr.f32.mxu0 0.0
        %1829 = vmatmul.mubr.f32.gmra.mxu0 %v433
        %v1830 = vpop.f32.mrf.mxu0
        %v1831 = vadd.f32 0.0, %v1830
        %v1832 = vpop.f32.mrf.mxu0
        %1833 = vmatprep.mubr.f32.mxu0 0.0
        %1834 = vmatmul.mubr.f32.gmra.mxu0 %v436
        %v1835 = vpop.f32.mrf.mxu0
        %v1836 = vadd.f32 0.0, %v1835
        %v1837 = vpop.f32.mrf.mxu0
        %1838 = vmatprep.mubr.f32.mxu0 0.0
        %1839 = vmatmul.mubr.f32.gmra.mxu0 %v439
        %v1840 = vpop.f32.mrf.mxu0
        %v1841 = vadd.f32 0.0, %v1840
        %v1842 = vpop.f32.mrf.mxu0
        %1843 = vmatprep.mubr.f32.mxu0 0.0
        %1844 = vmatmul.mubr.f32.gmra.mxu0 %v442
        %v1845 = vpop.f32.mrf.mxu0
        %v1846 = vadd.f32 0.0, %v1845
        %v1847 = vpop.f32.mrf.mxu0
        %1848 = vmatprep.mubr.f32.mxu0 0.0
        %1849 = vmatmul.mubr.f32.gmra.mxu0 %v445
        %v1850 = vpop.f32.mrf.mxu0
        %v1851 = vadd.f32 0.0, %v1850
        %v1852 = vpop.f32.mrf.mxu0
        %1853 = vmatprep.mubr.f32.mxu0 0.0
        %1854 = vmatmul.mubr.f32.gmra.mxu0 %v448
        %v1855 = vpop.f32.mrf.mxu0
        %v1856 = vadd.f32 0.0, %v1855
        %v1857 = vpop.f32.mrf.mxu0
        %1858 = vmatprep.mubr.f32.mxu0 0.0
        %1859 = vmatmul.mubr.f32.gmra.mxu0 %v451
        %v1860 = vpop.f32.mrf.mxu0
        %v1861 = vadd.f32 0.0, %v1860
        %v1862 = vpop.f32.mrf.mxu0
        %1863 = vmatprep.mubr.f32.mxu0 0.0
        %1864 = vmatmul.mubr.f32.gmra.mxu0 %v454
        %v1865 = vpop.f32.mrf.mxu0
        %v1866 = vadd.f32 0.0, %v1865
        %v1867 = vpop.f32.mrf.mxu0
        %1868 = vmatprep.mubr.f32.mxu0 0.0
        %1869 = vmatmul.mubr.f32.gmra.mxu0 %v457
        %v1870 = vpop.f32.mrf.mxu0
        %v1871 = vadd.f32 0.0, %v1870
        %v1872 = vpop.f32.mrf.mxu0
        %1873 = vmatprep.mubr.f32.mxu0 0.0
        %1874 = vmatmul.mubr.f32.gmra.mxu0 %v460
        %v1875 = vpop.f32.mrf.mxu0
        %v1876 = vadd.f32 0.0, %v1875
        %v1877 = vpop.f32.mrf.mxu0
        %1878 = vmatprep.mubr.f32.mxu0 0.0
        %1879 = vmatmul.mubr.f32.gmra.mxu0 %v463
        %v1880 = vpop.f32.mrf.mxu0
        %v1881 = vadd.f32 0.0, %v1880
        %v1882 = vpop.f32.mrf.mxu0
        %1883 = vmatprep.mubr.f32.mxu0 0.0
        %1884 = vmatmul.mubr.f32.gmra.mxu0 %v466
        %v1885 = vpop.f32.mrf.mxu0
        %v1886 = vadd.f32 0.0, %v1885
        %v1887 = vpop.f32.mrf.mxu0
        %1888 = vmatprep.mubr.f32.mxu0 0.0
        %1889 = vmatmul.mubr.f32.gmra.mxu0 %v469
        %v1890 = vpop.f32.mrf.mxu0
        %v1891 = vadd.f32 0.0, %v1890
        %v1892 = vpop.f32.mrf.mxu0
        %1893 = vmatprep.mubr.f32.mxu0 0.0
        %1894 = vmatmul.mubr.f32.gmra.mxu0 %v472
        %v1895 = vpop.f32.mrf.mxu0
        %v1896 = vadd.f32 0.0, %v1895
        %v1897 = vpop.f32.mrf.mxu0
        %1898 = vmatprep.mubr.f32.mxu0 0.0
        %1899 = vmatmul.mubr.f32.gmra.mxu0 %v475
        %v1900 = vpop.f32.mrf.mxu0
        %v1901 = vadd.f32 0.0, %v1900
        %v1902 = vpop.f32.mrf.mxu0
        %1903 = vmatprep.mubr.f32.mxu0 0.0
        %1904 = vmatmul.mubr.f32.gmra.mxu0 %v478
        %v1905 = vpop.f32.mrf.mxu0
        %v1906 = vadd.f32 0.0, %v1905
        %v1907 = vpop.f32.mrf.mxu0
        %1908 = vmatprep.mubr.f32.mxu0 0.0
        %1909 = vmatmul.mubr.f32.gmra.mxu0 %v481
        %v1910 = vpop.f32.mrf.mxu0
        %v1911 = vadd.f32 0.0, %v1910
        %v1912 = vpop.f32.mrf.mxu0
        %1913 = vmatprep.mubr.f32.mxu0 0.0
        %1914 = vmatmul.mubr.f32.gmra.mxu0 %v484
        %v1915 = vpop.f32.mrf.mxu0
        %v1916 = vadd.f32 0.0, %v1915
        %v1917 = vpop.f32.mrf.mxu0
        %1918 = vmatprep.mubr.f32.mxu0 0.0
        %1919 = vmatmul.mubr.f32.gmra.mxu0 %v487
        %v1920 = vpop.f32.mrf.mxu0
        %v1921 = vadd.f32 0.0, %v1920
        %v1922 = vpop.f32.mrf.mxu0
        %1923 = vmatprep.mubr.f32.mxu0 0.0
        %1924 = vmatmul.mubr.f32.gmra.mxu0 %v490
        %v1925 = vpop.f32.mrf.mxu0
        %v1926 = vadd.f32 0.0, %v1925
        %v1927 = vpop.f32.mrf.mxu0
        %1928 = vmatprep.mubr.f32.mxu0 0.0
        %1929 = vmatmul.mubr.f32.gmra.mxu0 %v493
        %v1930 = vpop.f32.mrf.mxu0
        %v1931 = vadd.f32 0.0, %v1930
        %v1932 = vpop.f32.mrf.mxu0
        %1933 = vmatprep.mubr.f32.mxu0 0.0
        %1934 = vmatmul.mubr.f32.gmra.mxu0 %v496
        %v1935 = vpop.f32.mrf.mxu0
        %v1936 = vadd.f32 0.0, %v1935
        %v1937 = vpop.f32.mrf.mxu0
        %1938 = vmatprep.mubr.f32.mxu0 0.0
        %1939 = vmatmul.mubr.f32.gmra.mxu0 %v499
        %v1940 = vpop.f32.mrf.mxu0
        %v1941 = vadd.f32 0.0, %v1940
        %v1942 = vpop.f32.mrf.mxu0
        %1943 = vmatprep.mubr.f32.mxu0 0.0
        %1944 = vmatmul.mubr.f32.gmra.mxu0 %v502
        %v1945 = vpop.f32.mrf.mxu0
        %v1946 = vadd.f32 0.0, %v1945
        %v1947 = vpop.f32.mrf.mxu0
        %1948 = vmatprep.mubr.f32.mxu0 0.0
        %1949 = vmatmul.mubr.f32.gmra.mxu0 %v505
        %v1950 = vpop.f32.mrf.mxu0
        %v1951 = vadd.f32 0.0, %v1950
        %v1952 = vpop.f32.mrf.mxu0
        %1953 = vmatprep.mubr.f32.mxu0 0.0
        %1954 = vmatmul.mubr.f32.gmra.mxu0 %v508
        %v1955 = vpop.f32.mrf.mxu0
        %v1956 = vadd.f32 0.0, %v1955
        %v1957 = vpop.f32.mrf.mxu0
        %1958 = vmatprep.mubr.f32.mxu0 0.0
        %1959 = vmatmul.mubr.f32.gmra.mxu0 %v511
        %v1960 = vpop.f32.mrf.mxu0
        %v1961 = vadd.f32 0.0, %v1960
        %v1962 = vpop.f32.mrf.mxu0
        %1963 = vmatprep.mubr.f32.mxu0 0.0
        %1964 = vmatmul.mubr.f32.gmra.mxu0 %v514
        %v1965 = vpop.f32.mrf.mxu0
        %v1966 = vadd.f32 0.0, %v1965
        %v1967 = vpop.f32.mrf.mxu0
        %1968 = vmatprep.mubr.f32.mxu0 0.0
        %1969 = vmatmul.mubr.f32.gmra.mxu0 %v517
        %v1970 = vpop.f32.mrf.mxu0
        %v1971 = vadd.f32 0.0, %v1970
        %v1972 = vpop.f32.mrf.mxu0
        %1973 = vmatprep.mubr.f32.mxu0 0.0
        %1974 = vmatmul.mubr.f32.gmra.mxu0 %v520
        %v1975 = vpop.f32.mrf.mxu0
        %v1976 = vadd.f32 0.0, %v1975
        %v1977 = vpop.f32.mrf.mxu0
        %1978 = vmatprep.mubr.f32.mxu0 0.0
        %1979 = vmatmul.mubr.f32.gmra.mxu0 %v523
        %v1980 = vpop.f32.mrf.mxu0
        %v1981 = vadd.f32 0.0, %v1980
        %v1982 = vpop.f32.mrf.mxu0
        %1983 = vmatprep.mubr.f32.mxu0 0.0
        %1984 = vmatmul.mubr.f32.gmra.mxu0 %v526
        %v1985 = vpop.f32.mrf.mxu0
        %v1986 = vadd.f32 0.0, %v1985
        %v1987 = vpop.f32.mrf.mxu0
        %1988 = vmatprep.mubr.f32.mxu0 0.0
        %1989 = vmatmul.mubr.f32.gmra.mxu0 %v529
        %v1990 = vpop.f32.mrf.mxu0
        %v1991 = vadd.f32 0.0, %v1990
        %v1992 = vpop.f32.mrf.mxu0
        %1993 = vmatprep.mubr.f32.mxu0 0.0
        %1994 = vmatmul.mubr.f32.gmra.mxu0 %v532
        %v1995 = vpop.f32.mrf.mxu0
        %v1996 = vadd.f32 0.0, %v1995
        %v1997 = vpop.f32.mrf.mxu0
        %1998 = vmatprep.mubr.f32.mxu0 0.0
        %1999 = vmatmul.mubr.f32.gmra.mxu0 %v535
        %v2000 = vpop.f32.mrf.mxu0
        %v2001 = vadd.f32 0.0, %v2000
        %v2002 = vpop.f32.mrf.mxu0
        %2003 = vmatprep.mubr.f32.mxu0 0.0
        %2004 = vmatmul.mubr.f32.gmra.mxu0 %v538
        %v2005 = vpop.f32.mrf.mxu0
        %v2006 = vadd.f32 0.0, %v2005
        %v2007 = vpop.f32.mrf.mxu0
        %2008 = vmatprep.mubr.f32.mxu0 0.0
        %2009 = vmatmul.mubr.f32.gmra.mxu0 %v541
        %v2010 = vpop.f32.mrf.mxu0
        %v2011 = vadd.f32 0.0, %v2010
        %v2012 = vpop.f32.mrf.mxu0
        %2013 = vmatprep.mubr.f32.mxu0 0.0
        %2014 = vmatmul.mubr.f32.gmra.mxu0 %v544
        %v2015 = vpop.f32.mrf.mxu0
        %v2016 = vadd.f32 0.0, %v2015
        %v2017 = vpop.f32.mrf.mxu0
        %2018 = vdwg.mxu0
        %s2019 = scalar_lea.vmem %s209, 1008
        %2020 = vst [vmem:[%s2019] sm:$0xff] %v1494
        %2021 = vst [vmem:[%s2019 + $0x8] sm:$0xff] %v1496
        %2022 = vst.msk [vmem:[%s2019 + $0x10] sm:$0xff] %vm1140, %v1811
        %2023 = vst [vmem:[%s2019 + $0x18] sm:$0xff] %v1500
        %2024 = vst [vmem:[%s2019 + $0x20] sm:$0xff] %v1502
        %2025 = vst.msk [vmem:[%s2019 + $0x28] sm:$0xff] %vm1140, %v1816
        %2026 = vst [vmem:[%s2019 + $0x30] sm:$0xff] %v1506
        %2027 = vst [vmem:[%s2019 + $0x38] sm:$0xff] %v1508
        %2028 = vst.msk [vmem:[%s2019 + $0x40] sm:$0xff] %vm1140, %v1821
        %2029 = vst [vmem:[%s2019 + $0x48] sm:$0xff] %v1512
        %2030 = vst [vmem:[%s2019 + $0x50] sm:$0xff] %v1514
        %2031 = vst.msk [vmem:[%s2019 + $0x58] sm:$0xff] %vm1140, %v1826
        %2032 = vst [vmem:[%s2019 + $0x60] sm:$0xff] %v1518
        %2033 = vst [vmem:[%s2019 + $0x68] sm:$0xff] %v1520
        %2034 = vst.msk [vmem:[%s2019 + $0x70] sm:$0xff] %vm1140, %v1831
        %2035 = vst [vmem:[%s2019 + $0x78] sm:$0xff] %v1524
        %2036 = vst [vmem:[%s2019 + $0x80] sm:$0xff] %v1526
        %2037 = vst.msk [vmem:[%s2019 + $0x88] sm:$0xff] %vm1140, %v1836
        %2038 = vst [vmem:[%s2019 + $0x90] sm:$0xff] %v1530
        %2039 = vst [vmem:[%s2019 + $0x98] sm:$0xff] %v1532
        %2040 = vst.msk [vmem:[%s2019 + $0xa0] sm:$0xff] %vm1140, %v1841
        %2041 = vst [vmem:[%s2019 + $0xa8] sm:$0xff] %v1536
        %2042 = vst [vmem:[%s2019 + $0xb0] sm:$0xff] %v1538
        %2043 = vst.msk [vmem:[%s2019 + $0xb8] sm:$0xff] %vm1140, %v1846
        %2044 = vst [vmem:[%s2019 + $0xc0] sm:$0xff] %v1542
        %2045 = vst [vmem:[%s2019 + $0xc8] sm:$0xff] %v1544
        %2046 = vst.msk [vmem:[%s2019 + $0xd0] sm:$0xff] %vm1140, %v1851
        %2047 = vst [vmem:[%s2019 + $0xd8] sm:$0xff] %v1548
        %2048 = vst [vmem:[%s2019 + $0xe0] sm:$0xff] %v1550
        %2049 = vst.msk [vmem:[%s2019 + $0xe8] sm:$0xff] %vm1140, %v1856
        %2050 = vst [vmem:[%s2019 + $0xf0] sm:$0xff] %v1554
        %2051 = vst [vmem:[%s2019 + $0xf8] sm:$0xff] %v1556
        %2052 = vst.msk [vmem:[%s2019 + $0x100] sm:$0xff] %vm1140, %v1861
        %2053 = vst [vmem:[%s2019 + $0x108] sm:$0xff] %v1560
        %2054 = vst [vmem:[%s2019 + $0x110] sm:$0xff] %v1562
        %2055 = vst.msk [vmem:[%s2019 + $0x118] sm:$0xff] %vm1140, %v1866
        %2056 = vst [vmem:[%s2019 + $0x120] sm:$0xff] %v1566
        %2057 = vst [vmem:[%s2019 + $0x128] sm:$0xff] %v1568
        %2058 = vst.msk [vmem:[%s2019 + $0x130] sm:$0xff] %vm1140, %v1871
        %2059 = vst [vmem:[%s2019 + $0x138] sm:$0xff] %v1572
        %2060 = vst [vmem:[%s2019 + $0x140] sm:$0xff] %v1574
        %2061 = vst.msk [vmem:[%s2019 + $0x148] sm:$0xff] %vm1140, %v1876
        %2062 = vst [vmem:[%s2019 + $0x150] sm:$0xff] %v1578
        %2063 = vst [vmem:[%s2019 + $0x158] sm:$0xff] %v1580
        %2064 = vst.msk [vmem:[%s2019 + $0x160] sm:$0xff] %vm1140, %v1881
        %2065 = vst [vmem:[%s2019 + $0x168] sm:$0xff] %v1584
        %2066 = vst [vmem:[%s2019 + $0x170] sm:$0xff] %v1586
        %2067 = vst.msk [vmem:[%s2019 + $0x178] sm:$0xff] %vm1140, %v1886
        %2068 = vst [vmem:[%s2019 + $0x180] sm:$0xff] %v1590
        %2069 = vst [vmem:[%s2019 + $0x188] sm:$0xff] %v1592
        %2070 = vst.msk [vmem:[%s2019 + $0x190] sm:$0xff] %vm1140, %v1891
        %2071 = vst [vmem:[%s2019 + $0x198] sm:$0xff] %v1596
        %2072 = vst [vmem:[%s2019 + $0x1a0] sm:$0xff] %v1598
        %2073 = vst.msk [vmem:[%s2019 + $0x1a8] sm:$0xff] %vm1140, %v1896
        %2074 = vst [vmem:[%s2019 + $0x1b0] sm:$0xff] %v1602
        %2075 = vst [vmem:[%s2019 + $0x1b8] sm:$0xff] %v1604
        %2076 = vst.msk [vmem:[%s2019 + $0x1c0] sm:$0xff] %vm1140, %v1901
        %2077 = vst [vmem:[%s2019 + $0x1c8] sm:$0xff] %v1608
        %2078 = vst [vmem:[%s2019 + $0x1d0] sm:$0xff] %v1610
        %2079 = vst.msk [vmem:[%s2019 + $0x1d8] sm:$0xff] %vm1140, %v1906
        %2080 = vst [vmem:[%s2019 + $0x1e0] sm:$0xff] %v1614
        %2081 = vst [vmem:[%s2019 + $0x1e8] sm:$0xff] %v1616
        %2082 = vst.msk [vmem:[%s2019 + $0x1f0] sm:$0xff] %vm1140, %v1911
        %2083 = vst [vmem:[%s2019 + $0x1f8] sm:$0xff] %v1620
        %2084 = vst [vmem:[%s2019 + $0x200] sm:$0xff] %v1622
        %2085 = vst.msk [vmem:[%s2019 + $0x208] sm:$0xff] %vm1140, %v1916
        %2086 = vst [vmem:[%s2019 + $0x210] sm:$0xff] %v1626
        %2087 = vst [vmem:[%s2019 + $0x218] sm:$0xff] %v1628
        %2088 = vst.msk [vmem:[%s2019 + $0x220] sm:$0xff] %vm1140, %v1921
        %2089 = vst [vmem:[%s2019 + $0x228] sm:$0xff] %v1632
        %2090 = vst [vmem:[%s2019 + $0x230] sm:$0xff] %v1634
        %2091 = vst.msk [vmem:[%s2019 + $0x238] sm:$0xff] %vm1140, %v1926
        %2092 = vst [vmem:[%s2019 + $0x240] sm:$0xff] %v1638
        %2093 = vst [vmem:[%s2019 + $0x248] sm:$0xff] %v1640
        %2094 = vst.msk [vmem:[%s2019 + $0x250] sm:$0xff] %vm1140, %v1931
        %2095 = vst [vmem:[%s2019 + $0x258] sm:$0xff] %v1644
        %2096 = vst [vmem:[%s2019 + $0x260] sm:$0xff] %v1646
        %2097 = vst.msk [vmem:[%s2019 + $0x268] sm:$0xff] %vm1140, %v1936
        %2098 = vst [vmem:[%s2019 + $0x270] sm:$0xff] %v1650
        %2099 = vst [vmem:[%s2019 + $0x278] sm:$0xff] %v1652
        %2100 = vst.msk [vmem:[%s2019 + $0x280] sm:$0xff] %vm1140, %v1941
        %2101 = vst [vmem:[%s2019 + $0x288] sm:$0xff] %v1656
        %2102 = vst [vmem:[%s2019 + $0x290] sm:$0xff] %v1658
        %2103 = vst.msk [vmem:[%s2019 + $0x298] sm:$0xff] %vm1140, %v1946
        %2104 = vst [vmem:[%s2019 + $0x2a0] sm:$0xff] %v1662
        %2105 = vst [vmem:[%s2019 + $0x2a8] sm:$0xff] %v1664
        %2106 = vst.msk [vmem:[%s2019 + $0x2b0] sm:$0xff] %vm1140, %v1951
        %2107 = vst [vmem:[%s2019 + $0x2b8] sm:$0xff] %v1668
        %2108 = vst [vmem:[%s2019 + $0x2c0] sm:$0xff] %v1670
        %2109 = vst.msk [vmem:[%s2019 + $0x2c8] sm:$0xff] %vm1140, %v1956
        %2110 = vst [vmem:[%s2019 + $0x2d0] sm:$0xff] %v1674
        %2111 = vst [vmem:[%s2019 + $0x2d8] sm:$0xff] %v1676
        %2112 = vst.msk [vmem:[%s2019 + $0x2e0] sm:$0xff] %vm1140, %v1961
        %2113 = vst [vmem:[%s2019 + $0x2e8] sm:$0xff] %v1680
        %2114 = vst [vmem:[%s2019 + $0x2f0] sm:$0xff] %v1682
        %2115 = vst.msk [vmem:[%s2019 + $0x2f8] sm:$0xff] %vm1140, %v1966
        %2116 = vst [vmem:[%s2019 + $0x300] sm:$0xff] %v1686
        %2117 = vst [vmem:[%s2019 + $0x308] sm:$0xff] %v1688
        %2118 = vst.msk [vmem:[%s2019 + $0x310] sm:$0xff] %vm1140, %v1971
        %2119 = vst [vmem:[%s2019 + $0x318] sm:$0xff] %v1692
        %2120 = vst [vmem:[%s2019 + $0x320] sm:$0xff] %v1694
        %2121 = vst.msk [vmem:[%s2019 + $0x328] sm:$0xff] %vm1140, %v1976
        %2122 = vst [vmem:[%s2019 + $0x330] sm:$0xff] %v1698
        %2123 = vst [vmem:[%s2019 + $0x338] sm:$0xff] %v1700
        %2124 = vst.msk [vmem:[%s2019 + $0x340] sm:$0xff] %vm1140, %v1981
        %2125 = vst [vmem:[%s2019 + $0x348] sm:$0xff] %v1704
        %2126 = vst [vmem:[%s2019 + $0x350] sm:$0xff] %v1706
        %2127 = vst.msk [vmem:[%s2019 + $0x358] sm:$0xff] %vm1140, %v1986
        %2128 = vst [vmem:[%s2019 + $0x360] sm:$0xff] %v1710
        %2129 = vst [vmem:[%s2019 + $0x368] sm:$0xff] %v1712
        %2130 = vst.msk [vmem:[%s2019 + $0x370] sm:$0xff] %vm1140, %v1991
        %2131 = vst [vmem:[%s2019 + $0x378] sm:$0xff] %v1716
        %2132 = vst [vmem:[%s2019 + $0x380] sm:$0xff] %v1718
        %2133 = vst.msk [vmem:[%s2019 + $0x388] sm:$0xff] %vm1140, %v1996
        %2134 = vst [vmem:[%s2019 + $0x390] sm:$0xff] %v1722
        %2135 = vst [vmem:[%s2019 + $0x398] sm:$0xff] %v1724
        %2136 = vst.msk [vmem:[%s2019 + $0x3a0] sm:$0xff] %vm1140, %v2001
        %2137 = vst [vmem:[%s2019 + $0x3a8] sm:$0xff] %v1728
        %2138 = vst [vmem:[%s2019 + $0x3b0] sm:$0xff] %v1730
        %2139 = vst.msk [vmem:[%s2019 + $0x3b8] sm:$0xff] %vm1140, %v2006
        %2140 = vst [vmem:[%s2019 + $0x3c0] sm:$0xff] %v1734
        %2141 = vst [vmem:[%s2019 + $0x3c8] sm:$0xff] %v1736
        %2142 = vst.msk [vmem:[%s2019 + $0x3d0] sm:$0xff] %vm1140, %v2011
        %2143 = vst [vmem:[%s2019 + $0x3d8] sm:$0x7] %v1740
        %2144 = vst [vmem:[%s2019 + $0x3e0] sm:$0x7] %v1742
        %2145 = vst.msk [vmem:[%s2019 + $0x3e8] sm:$0x7] %vm1264, %v2016
        %s2146 = scalar_lea.vmem %s175, 32 [#allocation2]
        %v2147 = vld [vmem:[%s2146] sm:$0xff]
        %v2148 = vld [vmem:[%s2146 + $0x8] sm:$0xff]
        %v2150 = vsel %vm261, %v2147, 0
        %v2153 = vsel %vm261, %v2148, 0
        %2155 = vmatprep.subr.mxu0 0.0
        %2156 = vmatpush1.msra.mxu0 0.0
        %2157 = vmatprep.subr.mxu0 0.0
        %2158 = vmatpush1.msra.mxu0 0.0
        %2159 = vmatprep.subr.mxu0 0.0
        %2160 = vmatpush1.msra.mxu0 0.0
        %2161 = vmatprep.subr.mxu0 0.0
        %2162 = vmatpush1.msra.mxu0 0.0
        %2163 = vmatprep.subr.mxu0 0.0
        %2164 = vmatpush1.msra.mxu0 0.0
        %2165 = vmatprep.subr.mxu0 0.0
        %2166 = vmatpush1.msra.mxu0 0.0
        %2167 = vmatprep.subr.mxu0 0.0
        %2168 = vmatpush1.msra.mxu0 0.0
        %2169 = vmatprep.subr.mxu0 0.0
        %2170 = vmatpush1.msra.mxu0 0.0
        %2171 = vmatprep.subr.mxu0 0.0
        %2172 = vmatpush1.msra.mxu0 0.0
        %2173 = vmatprep.subr.mxu0 0.0
        %2174 = vmatpush1.msra.mxu0 0.0
        %2175 = vmatprep.subr.mxu0 0.0
        %2176 = vmatpush1.msra.mxu0 0.0
        %2177 = vmatprep.subr.mxu0 0.0
        %2178 = vmatpush1.msra.mxu0 0.0
        %2179 = vmatprep.subr.mxu0 0.0
        %2180 = vmatpush1.msra.mxu0 0.0
        %2181 = vmatprep.subr.mxu0 0.0
        %2182 = vmatpush1.msra.mxu0 0.0
        %2183 = vmatprep.subr.mxu0 %v215
        %2184 = vmatpush1.msra.mxu0 %v214
        %2185 = vmatprep.subr.mxu0 %v212
        %2186 = vmatpush1.msra.mxu0 %v211
        %2187 = vmatprep.subr.mxu0 0.0
        %2188 = vmatpush2.msra.mxu0 0.0
        %2189 = vmatprep.subr.mxu0 0.0
        %2190 = vmatpush2.msra.mxu0 0.0
        %2191 = vmatprep.subr.mxu0 0.0
        %2192 = vmatpush2.msra.mxu0 0.0
        %2193 = vmatprep.subr.mxu0 0.0
        %2194 = vmatpush2.msra.mxu0 0.0
        %2195 = vmatprep.subr.mxu0 0.0
        %2196 = vmatpush2.msra.mxu0 0.0
        %2197 = vmatprep.subr.mxu0 0.0
        %2198 = vmatpush2.msra.mxu0 0.0
        %2199 = vmatprep.subr.mxu0 0.0
        %2200 = vmatpush2.msra.mxu0 0.0
        %2201 = vmatprep.subr.mxu0 0.0
        %2202 = vmatpush2.msra.mxu0 0.0
        %2203 = vmatprep.subr.mxu0 0.0
        %2204 = vmatpush2.msra.mxu0 0.0
        %2205 = vmatprep.subr.mxu0 0.0
        %2206 = vmatpush2.msra.mxu0 0.0
        %2207 = vmatprep.subr.mxu0 0.0
        %2208 = vmatpush2.msra.mxu0 0.0
        %2209 = vmatprep.subr.mxu0 0.0
        %2210 = vmatpush2.msra.mxu0 0.0
        %2211 = vmatprep.subr.mxu0 0.0
        %2212 = vmatpush2.msra.mxu0 0.0
        %2213 = vmatprep.subr.mxu0 0.0
        %2214 = vmatpush2.msra.mxu0 0.0
        %2215 = vmatprep.subr.mxu0 0.0
        %2216 = vmatpush2.msra.mxu0 0.0
        %2217 = vmatprep.subr.mxu0 0.0
        %2218 = vmatpush2.msra.mxu0 0.0
        %2219 = vmatprep.mubr.f32.mxu0 0.0
        %2220 = vmatmul.mubr.f32.gmra.mxu0 %v2150
        %v2221 = vpop.f32.mrf.mxu0
        %v2222 = vadd.f32 0.0, %v2221
        %v2223 = vpop.f32.mrf.mxu0
        %v2224 = vadd.f32 0.0, %v2223
        %2225 = vmatprep.mubr.f32.mxu0 0.0
        %2226 = vmatmul.mubr.f32.gmra.mxu0 %v2153
        %v2227 = vpop.f32.mrf.mxu0
        %v2228 = vadd.f32 0.0, %v2227
        %v2229 = vpop.f32.mrf.mxu0
        %v2230 = vadd.f32 0.0, %v2229
        %2231 = vdwg.mxu0
        %2232 = vmatprep.subr.mxu0 0.0
        %2233 = vmatpush1.msra.mxu0 0.0
        %2234 = vmatprep.subr.mxu0 0.0
        %2235 = vmatpush1.msra.mxu0 0.0
        %2236 = vmatprep.subr.mxu0 0.0
        %2237 = vmatpush1.msra.mxu0 0.0
        %2238 = vmatprep.subr.mxu0 0.0
        %2239 = vmatpush1.msra.mxu0 0.0
        %2240 = vmatprep.subr.mxu0 0.0
        %2241 = vmatpush1.msra.mxu0 0.0
        %2242 = vmatprep.subr.mxu0 0.0
        %2243 = vmatpush1.msra.mxu0 0.0
        %2244 = vmatprep.subr.mxu0 0.0
        %2245 = vmatpush1.msra.mxu0 0.0
        %2246 = vmatprep.subr.mxu0 0.0
        %2247 = vmatpush1.msra.mxu0 0.0
        %2248 = vmatprep.subr.mxu0 0.0
        %2249 = vmatpush1.msra.mxu0 0.0
        %2250 = vmatprep.subr.mxu0 0.0
        %2251 = vmatpush1.msra.mxu0 0.0
        %2252 = vmatprep.subr.mxu0 0.0
        %2253 = vmatpush1.msra.mxu0 0.0
        %2254 = vmatprep.subr.mxu0 0.0
        %2255 = vmatpush1.msra.mxu0 0.0
        %2256 = vmatprep.subr.mxu0 0.0
        %2257 = vmatpush1.msra.mxu0 0.0
        %2258 = vmatprep.subr.mxu0 0.0
        %2259 = vmatpush1.msra.mxu0 0.0
        %2260 = vmatprep.subr.mxu0 0.0
        %2261 = vmatpush1.msra.mxu0 %v216
        %2262 = vmatprep.subr.mxu0 0.0
        %2263 = vmatpush1.msra.mxu0 %v213
        %2264 = vmatprep.subr.mxu0 0.0
        %2265 = vmatpush2.msra.mxu0 0.0
        %2266 = vmatprep.subr.mxu0 0.0
        %2267 = vmatpush2.msra.mxu0 0.0
        %2268 = vmatprep.subr.mxu0 0.0
        %2269 = vmatpush2.msra.mxu0 0.0
        %2270 = vmatprep.subr.mxu0 0.0
        %2271 = vmatpush2.msra.mxu0 0.0
        %2272 = vmatprep.subr.mxu0 0.0
        %2273 = vmatpush2.msra.mxu0 0.0
        %2274 = vmatprep.subr.mxu0 0.0
        %2275 = vmatpush2.msra.mxu0 0.0
        %2276 = vmatprep.subr.mxu0 0.0
        %2277 = vmatpush2.msra.mxu0 0.0
        %2278 = vmatprep.subr.mxu0 0.0
        %2279 = vmatpush2.msra.mxu0 0.0
        %2280 = vmatprep.subr.mxu0 0.0
        %2281 = vmatpush2.msra.mxu0 0.0
        %2282 = vmatprep.subr.mxu0 0.0
        %2283 = vmatpush2.msra.mxu0 0.0
        %2284 = vmatprep.subr.mxu0 0.0
        %2285 = vmatpush2.msra.mxu0 0.0
        %2286 = vmatprep.subr.mxu0 0.0
        %2287 = vmatpush2.msra.mxu0 0.0
        %2288 = vmatprep.subr.mxu0 0.0
        %2289 = vmatpush2.msra.mxu0 0.0
        %2290 = vmatprep.subr.mxu0 0.0
        %2291 = vmatpush2.msra.mxu0 0.0
        %2292 = vmatprep.subr.mxu0 0.0
        %2293 = vmatpush2.msra.mxu0 0.0
        %2294 = vmatprep.subr.mxu0 0.0
        %2295 = vmatpush2.msra.mxu0 0.0
        %2296 = vmatprep.mubr.f32.mxu0 0.0
        %2297 = vmatmul.mubr.f32.gmra.mxu0 %v2150
        %v2298 = vpop.f32.mrf.mxu0
        %v2299 = vadd.f32 0.0, %v2298
        %v2300 = vpop.f32.mrf.mxu0
        %2301 = vmatprep.mubr.f32.mxu0 0.0
        %2302 = vmatmul.mubr.f32.gmra.mxu0 %v2153
        %v2303 = vpop.f32.mrf.mxu0
        %v2304 = vadd.f32 0.0, %v2303
        %v2305 = vpop.f32.mrf.mxu0
        %2306 = vdwg.mxu0
        %2307 = vmatprep.subr.mxu0 0.0
        %2308 = vmatpush1.msra.mxu0 0.0
        %2309 = vmatprep.subr.mxu0 0.0
        %2310 = vmatpush1.msra.mxu0 0.0
        %2311 = vmatprep.subr.mxu0 0.0
        %2312 = vmatpush1.msra.mxu0 0.0
        %2313 = vmatprep.subr.mxu0 0.0
        %2314 = vmatpush1.msra.mxu0 0.0
        %2315 = vmatprep.subr.mxu0 0.0
        %2316 = vmatpush1.msra.mxu0 0.0
        %2317 = vmatprep.subr.mxu0 0.0
        %2318 = vmatpush1.msra.mxu0 0.0
        %2319 = vmatprep.subr.mxu0 0.0
        %2320 = vmatpush1.msra.mxu0 0.0
        %2321 = vmatprep.subr.mxu0 0.0
        %2322 = vmatpush1.msra.mxu0 0.0
        %2323 = vmatprep.subr.mxu0 0.0
        %2324 = vmatpush1.msra.mxu0 0.0
        %2325 = vmatprep.subr.mxu0 0.0
        %2326 = vmatpush1.msra.mxu0 0.0
        %2327 = vmatprep.subr.mxu0 0.0
        %2328 = vmatpush1.msra.mxu0 0.0
        %2329 = vmatprep.subr.mxu0 0.0
        %2330 = vmatpush1.msra.mxu0 0.0
        %2331 = vmatprep.subr.mxu0 0.0
        %2332 = vmatpush1.msra.mxu0 0.0
        %2333 = vmatprep.subr.mxu0 0.0
        %2334 = vmatpush1.msra.mxu0 0.0
        %2335 = vmatprep.subr.mxu0 %v2230
        %2336 = vmatpush1.msra.mxu0 %v2228
        %2337 = vmatprep.subr.mxu0 %v2224
        %2338 = vmatpush1.msra.mxu0 %v2222
        %2339 = vmatprep.subr.mxu0 0.0
        %2340 = vmatpush2.msra.mxu0 0.0
        %2341 = vmatprep.subr.mxu0 0.0
        %2342 = vmatpush2.msra.mxu0 0.0
        %2343 = vmatprep.subr.mxu0 0.0
        %2344 = vmatpush2.msra.mxu0 0.0
        %2345 = vmatprep.subr.mxu0 0.0
        %2346 = vmatpush2.msra.mxu0 0.0
        %2347 = vmatprep.subr.mxu0 0.0
        %2348 = vmatpush2.msra.mxu0 0.0
        %2349 = vmatprep.subr.mxu0 0.0
        %2350 = vmatpush2.msra.mxu0 0.0
        %2351 = vmatprep.subr.mxu0 0.0
        %2352 = vmatpush2.msra.mxu0 0.0
        %2353 = vmatprep.subr.mxu0 0.0
        %2354 = vmatpush2.msra.mxu0 0.0
        %2355 = vmatprep.subr.mxu0 0.0
        %2356 = vmatpush2.msra.mxu0 0.0
        %2357 = vmatprep.subr.mxu0 0.0
        %2358 = vmatpush2.msra.mxu0 0.0
        %2359 = vmatprep.subr.mxu0 0.0
        %2360 = vmatpush2.msra.mxu0 0.0
        %2361 = vmatprep.subr.mxu0 0.0
        %2362 = vmatpush2.msra.mxu0 0.0
        %2363 = vmatprep.subr.mxu0 0.0
        %2364 = vmatpush2.msra.mxu0 0.0
        %2365 = vmatprep.subr.mxu0 0.0
        %2366 = vmatpush2.msra.mxu0 0.0
        %2367 = vmatprep.subr.mxu0 0.0
        %2368 = vmatpush2.msra.mxu0 0.0
        %2369 = vmatprep.subr.mxu0 0.0
        %2370 = vmatpush2.msra.mxu0 0.0
        %2371 = vmatprep.mubr.f32.mxu0 0.0
        %2372 = vmatmul.mubr.f32.gmra.mxu0 %v421
        %v2373 = vpop.f32.mrf.mxu0
        %v2374 = vadd.f32 0.0, %v2373
        %v2375 = vpop.f32.mrf.mxu0
        %v2376 = vadd.f32 0.0, %v2375
        %2377 = vmatprep.mubr.f32.mxu0 0.0
        %2378 = vmatmul.mubr.f32.gmra.mxu0 %v424
        %v2379 = vpop.f32.mrf.mxu0
        %v2380 = vadd.f32 0.0, %v2379
        %v2381 = vpop.f32.mrf.mxu0
        %v2382 = vadd.f32 0.0, %v2381
        %2383 = vmatprep.mubr.f32.mxu0 0.0
        %2384 = vmatmul.mubr.f32.gmra.mxu0 %v427
        %v2385 = vpop.f32.mrf.mxu0
        %v2386 = vadd.f32 0.0, %v2385
        %v2387 = vpop.f32.mrf.mxu0
        %v2388 = vadd.f32 0.0, %v2387
        %2389 = vmatprep.mubr.f32.mxu0 0.0
        %2390 = vmatmul.mubr.f32.gmra.mxu0 %v430
        %v2391 = vpop.f32.mrf.mxu0
        %v2392 = vadd.f32 0.0, %v2391
        %v2393 = vpop.f32.mrf.mxu0
        %v2394 = vadd.f32 0.0, %v2393
        %2395 = vmatprep.mubr.f32.mxu0 0.0
        %2396 = vmatmul.mubr.f32.gmra.mxu0 %v433
        %v2397 = vpop.f32.mrf.mxu0
        %v2398 = vadd.f32 0.0, %v2397
        %v2399 = vpop.f32.mrf.mxu0
        %v2400 = vadd.f32 0.0, %v2399
        %2401 = vmatprep.mubr.f32.mxu0 0.0
        %2402 = vmatmul.mubr.f32.gmra.mxu0 %v436
        %v2403 = vpop.f32.mrf.mxu0
        %v2404 = vadd.f32 0.0, %v2403
        %v2405 = vpop.f32.mrf.mxu0
        %v2406 = vadd.f32 0.0, %v2405
        %2407 = vmatprep.mubr.f32.mxu0 0.0
        %2408 = vmatmul.mubr.f32.gmra.mxu0 %v439
        %v2409 = vpop.f32.mrf.mxu0
        %v2410 = vadd.f32 0.0, %v2409
        %v2411 = vpop.f32.mrf.mxu0
        %v2412 = vadd.f32 0.0, %v2411
        %2413 = vmatprep.mubr.f32.mxu0 0.0
        %2414 = vmatmul.mubr.f32.gmra.mxu0 %v442
        %v2415 = vpop.f32.mrf.mxu0
        %v2416 = vadd.f32 0.0, %v2415
        %v2417 = vpop.f32.mrf.mxu0
        %v2418 = vadd.f32 0.0, %v2417
        %2419 = vmatprep.mubr.f32.mxu0 0.0
        %2420 = vmatmul.mubr.f32.gmra.mxu0 %v445
        %v2421 = vpop.f32.mrf.mxu0
        %v2422 = vadd.f32 0.0, %v2421
        %v2423 = vpop.f32.mrf.mxu0
        %v2424 = vadd.f32 0.0, %v2423
        %2425 = vmatprep.mubr.f32.mxu0 0.0
        %2426 = vmatmul.mubr.f32.gmra.mxu0 %v448
        %v2427 = vpop.f32.mrf.mxu0
        %v2428 = vadd.f32 0.0, %v2427
        %v2429 = vpop.f32.mrf.mxu0
        %v2430 = vadd.f32 0.0, %v2429
        %2431 = vmatprep.mubr.f32.mxu0 0.0
        %2432 = vmatmul.mubr.f32.gmra.mxu0 %v451
        %v2433 = vpop.f32.mrf.mxu0
        %v2434 = vadd.f32 0.0, %v2433
        %v2435 = vpop.f32.mrf.mxu0
        %v2436 = vadd.f32 0.0, %v2435
        %2437 = vmatprep.mubr.f32.mxu0 0.0
        %2438 = vmatmul.mubr.f32.gmra.mxu0 %v454
        %v2439 = vpop.f32.mrf.mxu0
        %v2440 = vadd.f32 0.0, %v2439
        %v2441 = vpop.f32.mrf.mxu0
        %v2442 = vadd.f32 0.0, %v2441
        %2443 = vmatprep.mubr.f32.mxu0 0.0
        %2444 = vmatmul.mubr.f32.gmra.mxu0 %v457
        %v2445 = vpop.f32.mrf.mxu0
        %v2446 = vadd.f32 0.0, %v2445
        %v2447 = vpop.f32.mrf.mxu0
        %v2448 = vadd.f32 0.0, %v2447
        %2449 = vmatprep.mubr.f32.mxu0 0.0
        %2450 = vmatmul.mubr.f32.gmra.mxu0 %v460
        %v2451 = vpop.f32.mrf.mxu0
        %v2452 = vadd.f32 0.0, %v2451
        %v2453 = vpop.f32.mrf.mxu0
        %v2454 = vadd.f32 0.0, %v2453
        %2455 = vmatprep.mubr.f32.mxu0 0.0
        %2456 = vmatmul.mubr.f32.gmra.mxu0 %v463
        %v2457 = vpop.f32.mrf.mxu0
        %v2458 = vadd.f32 0.0, %v2457
        %v2459 = vpop.f32.mrf.mxu0
        %v2460 = vadd.f32 0.0, %v2459
        %2461 = vmatprep.mubr.f32.mxu0 0.0
        %2462 = vmatmul.mubr.f32.gmra.mxu0 %v466
        %v2463 = vpop.f32.mrf.mxu0
        %v2464 = vadd.f32 0.0, %v2463
        %v2465 = vpop.f32.mrf.mxu0
        %v2466 = vadd.f32 0.0, %v2465
        %2467 = vmatprep.mubr.f32.mxu0 0.0
        %2468 = vmatmul.mubr.f32.gmra.mxu0 %v469
        %v2469 = vpop.f32.mrf.mxu0
        %v2470 = vadd.f32 0.0, %v2469
        %v2471 = vpop.f32.mrf.mxu0
        %v2472 = vadd.f32 0.0, %v2471
        %2473 = vmatprep.mubr.f32.mxu0 0.0
        %2474 = vmatmul.mubr.f32.gmra.mxu0 %v472
        %v2475 = vpop.f32.mrf.mxu0
        %v2476 = vadd.f32 0.0, %v2475
        %v2477 = vpop.f32.mrf.mxu0
        %v2478 = vadd.f32 0.0, %v2477
        %2479 = vmatprep.mubr.f32.mxu0 0.0
        %2480 = vmatmul.mubr.f32.gmra.mxu0 %v475
        %v2481 = vpop.f32.mrf.mxu0
        %v2482 = vadd.f32 0.0, %v2481
        %v2483 = vpop.f32.mrf.mxu0
        %v2484 = vadd.f32 0.0, %v2483
        %2485 = vmatprep.mubr.f32.mxu0 0.0
        %2486 = vmatmul.mubr.f32.gmra.mxu0 %v478
        %v2487 = vpop.f32.mrf.mxu0
        %v2488 = vadd.f32 0.0, %v2487
        %v2489 = vpop.f32.mrf.mxu0
        %v2490 = vadd.f32 0.0, %v2489
        %2491 = vmatprep.mubr.f32.mxu0 0.0
        %2492 = vmatmul.mubr.f32.gmra.mxu0 %v481
        %v2493 = vpop.f32.mrf.mxu0
        %v2494 = vadd.f32 0.0, %v2493
        %v2495 = vpop.f32.mrf.mxu0
        %v2496 = vadd.f32 0.0, %v2495
        %2497 = vmatprep.mubr.f32.mxu0 0.0
        %2498 = vmatmul.mubr.f32.gmra.mxu0 %v484
        %v2499 = vpop.f32.mrf.mxu0
        %v2500 = vadd.f32 0.0, %v2499
        %v2501 = vpop.f32.mrf.mxu0
        %v2502 = vadd.f32 0.0, %v2501
        %2503 = vmatprep.mubr.f32.mxu0 0.0
        %2504 = vmatmul.mubr.f32.gmra.mxu0 %v487
        %v2505 = vpop.f32.mrf.mxu0
        %v2506 = vadd.f32 0.0, %v2505
        %v2507 = vpop.f32.mrf.mxu0
        %v2508 = vadd.f32 0.0, %v2507
        %2509 = vmatprep.mubr.f32.mxu0 0.0
        %2510 = vmatmul.mubr.f32.gmra.mxu0 %v490
        %v2511 = vpop.f32.mrf.mxu0
        %v2512 = vadd.f32 0.0, %v2511
        %v2513 = vpop.f32.mrf.mxu0
        %v2514 = vadd.f32 0.0, %v2513
        %2515 = vmatprep.mubr.f32.mxu0 0.0
        %2516 = vmatmul.mubr.f32.gmra.mxu0 %v493
        %v2517 = vpop.f32.mrf.mxu0
        %v2518 = vadd.f32 0.0, %v2517
        %v2519 = vpop.f32.mrf.mxu0
        %v2520 = vadd.f32 0.0, %v2519
        %2521 = vmatprep.mubr.f32.mxu0 0.0
        %2522 = vmatmul.mubr.f32.gmra.mxu0 %v496
        %v2523 = vpop.f32.mrf.mxu0
        %v2524 = vadd.f32 0.0, %v2523
        %v2525 = vpop.f32.mrf.mxu0
        %v2526 = vadd.f32 0.0, %v2525
        %2527 = vmatprep.mubr.f32.mxu0 0.0
        %2528 = vmatmul.mubr.f32.gmra.mxu0 %v499
        %v2529 = vpop.f32.mrf.mxu0
        %v2530 = vadd.f32 0.0, %v2529
        %v2531 = vpop.f32.mrf.mxu0
        %v2532 = vadd.f32 0.0, %v2531
        %2533 = vmatprep.mubr.f32.mxu0 0.0
        %2534 = vmatmul.mubr.f32.gmra.mxu0 %v502
        %v2535 = vpop.f32.mrf.mxu0
        %v2536 = vadd.f32 0.0, %v2535
        %v2537 = vpop.f32.mrf.mxu0
        %v2538 = vadd.f32 0.0, %v2537
        %2539 = vmatprep.mubr.f32.mxu0 0.0
        %2540 = vmatmul.mubr.f32.gmra.mxu0 %v505
        %v2541 = vpop.f32.mrf.mxu0
        %v2542 = vadd.f32 0.0, %v2541
        %v2543 = vpop.f32.mrf.mxu0
        %v2544 = vadd.f32 0.0, %v2543
        %2545 = vmatprep.mubr.f32.mxu0 0.0
        %2546 = vmatmul.mubr.f32.gmra.mxu0 %v508
        %v2547 = vpop.f32.mrf.mxu0
        %v2548 = vadd.f32 0.0, %v2547
        %v2549 = vpop.f32.mrf.mxu0
        %v2550 = vadd.f32 0.0, %v2549
        %2551 = vmatprep.mubr.f32.mxu0 0.0
        %2552 = vmatmul.mubr.f32.gmra.mxu0 %v511
        %v2553 = vpop.f32.mrf.mxu0
        %v2554 = vadd.f32 0.0, %v2553
        %v2555 = vpop.f32.mrf.mxu0
        %v2556 = vadd.f32 0.0, %v2555
        %2557 = vmatprep.mubr.f32.mxu0 0.0
        %2558 = vmatmul.mubr.f32.gmra.mxu0 %v514
        %v2559 = vpop.f32.mrf.mxu0
        %v2560 = vadd.f32 0.0, %v2559
        %v2561 = vpop.f32.mrf.mxu0
        %v2562 = vadd.f32 0.0, %v2561
        %2563 = vmatprep.mubr.f32.mxu0 0.0
        %2564 = vmatmul.mubr.f32.gmra.mxu0 %v517
        %v2565 = vpop.f32.mrf.mxu0
        %v2566 = vadd.f32 0.0, %v2565
        %v2567 = vpop.f32.mrf.mxu0
        %v2568 = vadd.f32 0.0, %v2567
        %2569 = vmatprep.mubr.f32.mxu0 0.0
        %2570 = vmatmul.mubr.f32.gmra.mxu0 %v520
        %v2571 = vpop.f32.mrf.mxu0
        %v2572 = vadd.f32 0.0, %v2571
        %v2573 = vpop.f32.mrf.mxu0
        %v2574 = vadd.f32 0.0, %v2573
        %2575 = vmatprep.mubr.f32.mxu0 0.0
        %2576 = vmatmul.mubr.f32.gmra.mxu0 %v523
        %v2577 = vpop.f32.mrf.mxu0
        %v2578 = vadd.f32 0.0, %v2577
        %v2579 = vpop.f32.mrf.mxu0
        %v2580 = vadd.f32 0.0, %v2579
        %2581 = vmatprep.mubr.f32.mxu0 0.0
        %2582 = vmatmul.mubr.f32.gmra.mxu0 %v526
        %v2583 = vpop.f32.mrf.mxu0
        %v2584 = vadd.f32 0.0, %v2583
        %v2585 = vpop.f32.mrf.mxu0
        %v2586 = vadd.f32 0.0, %v2585
        %2587 = vmatprep.mubr.f32.mxu0 0.0
        %2588 = vmatmul.mubr.f32.gmra.mxu0 %v529
        %v2589 = vpop.f32.mrf.mxu0
        %v2590 = vadd.f32 0.0, %v2589
        %v2591 = vpop.f32.mrf.mxu0
        %v2592 = vadd.f32 0.0, %v2591
        %2593 = vmatprep.mubr.f32.mxu0 0.0
        %2594 = vmatmul.mubr.f32.gmra.mxu0 %v532
        %v2595 = vpop.f32.mrf.mxu0
        %v2596 = vadd.f32 0.0, %v2595
        %v2597 = vpop.f32.mrf.mxu0
        %v2598 = vadd.f32 0.0, %v2597
        %2599 = vmatprep.mubr.f32.mxu0 0.0
        %2600 = vmatmul.mubr.f32.gmra.mxu0 %v535
        %v2601 = vpop.f32.mrf.mxu0
        %v2602 = vadd.f32 0.0, %v2601
        %v2603 = vpop.f32.mrf.mxu0
        %v2604 = vadd.f32 0.0, %v2603
        %2605 = vmatprep.mubr.f32.mxu0 0.0
        %2606 = vmatmul.mubr.f32.gmra.mxu0 %v538
        %v2607 = vpop.f32.mrf.mxu0
        %v2608 = vadd.f32 0.0, %v2607
        %v2609 = vpop.f32.mrf.mxu0
        %v2610 = vadd.f32 0.0, %v2609
        %2611 = vmatprep.mubr.f32.mxu0 0.0
        %2612 = vmatmul.mubr.f32.gmra.mxu0 %v541
        %v2613 = vpop.f32.mrf.mxu0
        %v2614 = vadd.f32 0.0, %v2613
        %v2615 = vpop.f32.mrf.mxu0
        %v2616 = vadd.f32 0.0, %v2615
        %2617 = vmatprep.mubr.f32.mxu0 0.0
        %2618 = vmatmul.mubr.f32.gmra.mxu0 %v544
        %v2619 = vpop.f32.mrf.mxu0
        %v2620 = vadd.f32 0.0, %v2619
        %v2621 = vpop.f32.mrf.mxu0
        %v2622 = vadd.f32 0.0, %v2621
        %2623 = vdwg.mxu0
        %2624 = vmatprep.subr.mxu0 0.0
        %2625 = vmatpush1.msra.mxu0 0.0
        %2626 = vmatprep.subr.mxu0 0.0
        %2627 = vmatpush1.msra.mxu0 0.0
        %2628 = vmatprep.subr.mxu0 0.0
        %2629 = vmatpush1.msra.mxu0 0.0
        %2630 = vmatprep.subr.mxu0 0.0
        %2631 = vmatpush1.msra.mxu0 0.0
        %2632 = vmatprep.subr.mxu0 0.0
        %2633 = vmatpush1.msra.mxu0 0.0
        %2634 = vmatprep.subr.mxu0 0.0
        %2635 = vmatpush1.msra.mxu0 0.0
        %2636 = vmatprep.subr.mxu0 0.0
        %2637 = vmatpush1.msra.mxu0 0.0
        %2638 = vmatprep.subr.mxu0 0.0
        %2639 = vmatpush1.msra.mxu0 0.0
        %2640 = vmatprep.subr.mxu0 0.0
        %2641 = vmatpush1.msra.mxu0 0.0
        %2642 = vmatprep.subr.mxu0 0.0
        %2643 = vmatpush1.msra.mxu0 0.0
        %2644 = vmatprep.subr.mxu0 0.0
        %2645 = vmatpush1.msra.mxu0 0.0
        %2646 = vmatprep.subr.mxu0 0.0
        %2647 = vmatpush1.msra.mxu0 0.0
        %2648 = vmatprep.subr.mxu0 0.0
        %2649 = vmatpush1.msra.mxu0 0.0
        %2650 = vmatprep.subr.mxu0 0.0
        %2651 = vmatpush1.msra.mxu0 0.0
        %2652 = vmatprep.subr.mxu0 0.0
        %2653 = vmatpush1.msra.mxu0 %v2304
        %2654 = vmatprep.subr.mxu0 0.0
        %2655 = vmatpush1.msra.mxu0 %v2299
        %2656 = vmatprep.subr.mxu0 0.0
        %2657 = vmatpush2.msra.mxu0 0.0
        %2658 = vmatprep.subr.mxu0 0.0
        %2659 = vmatpush2.msra.mxu0 0.0
        %2660 = vmatprep.subr.mxu0 0.0
        %2661 = vmatpush2.msra.mxu0 0.0
        %2662 = vmatprep.subr.mxu0 0.0
        %2663 = vmatpush2.msra.mxu0 0.0
        %2664 = vmatprep.subr.mxu0 0.0
        %2665 = vmatpush2.msra.mxu0 0.0
        %2666 = vmatprep.subr.mxu0 0.0
        %2667 = vmatpush2.msra.mxu0 0.0
        %2668 = vmatprep.subr.mxu0 0.0
        %2669 = vmatpush2.msra.mxu0 0.0
        %2670 = vmatprep.subr.mxu0 0.0
        %2671 = vmatpush2.msra.mxu0 0.0
        %2672 = vmatprep.subr.mxu0 0.0
        %2673 = vmatpush2.msra.mxu0 0.0
        %2674 = vmatprep.subr.mxu0 0.0
        %2675 = vmatpush2.msra.mxu0 0.0
        %2676 = vmatprep.subr.mxu0 0.0
        %2677 = vmatpush2.msra.mxu0 0.0
        %2678 = vmatprep.subr.mxu0 0.0
        %2679 = vmatpush2.msra.mxu0 0.0
        %2680 = vmatprep.subr.mxu0 0.0
        %2681 = vmatpush2.msra.mxu0 0.0
        %2682 = vmatprep.subr.mxu0 0.0
        %2683 = vmatpush2.msra.mxu0 0.0
        %2684 = vmatprep.subr.mxu0 0.0
        %2685 = vmatpush2.msra.mxu0 0.0
        %2686 = vmatprep.subr.mxu0 0.0
        %2687 = vmatpush2.msra.mxu0 0.0
        %2688 = vmatprep.mubr.f32.mxu0 0.0
        %2689 = vmatmul.mubr.f32.gmra.mxu0 %v421
        %v2690 = vpop.f32.mrf.mxu0
        %v2691 = vadd.f32 0.0, %v2690
        %v2692 = vpop.f32.mrf.mxu0
        %2693 = vmatprep.mubr.f32.mxu0 0.0
        %2694 = vmatmul.mubr.f32.gmra.mxu0 %v424
        %v2695 = vpop.f32.mrf.mxu0
        %v2696 = vadd.f32 0.0, %v2695
        %v2697 = vpop.f32.mrf.mxu0
        %2698 = vmatprep.mubr.f32.mxu0 0.0
        %2699 = vmatmul.mubr.f32.gmra.mxu0 %v427
        %v2700 = vpop.f32.mrf.mxu0
        %v2701 = vadd.f32 0.0, %v2700
        %v2702 = vpop.f32.mrf.mxu0
        %2703 = vmatprep.mubr.f32.mxu0 0.0
        %2704 = vmatmul.mubr.f32.gmra.mxu0 %v430
        %v2705 = vpop.f32.mrf.mxu0
        %v2706 = vadd.f32 0.0, %v2705
        %v2707 = vpop.f32.mrf.mxu0
        %2708 = vmatprep.mubr.f32.mxu0 0.0
        %2709 = vmatmul.mubr.f32.gmra.mxu0 %v433
        %v2710 = vpop.f32.mrf.mxu0
        %v2711 = vadd.f32 0.0, %v2710
        %v2712 = vpop.f32.mrf.mxu0
        %2713 = vmatprep.mubr.f32.mxu0 0.0
        %2714 = vmatmul.mubr.f32.gmra.mxu0 %v436
        %v2715 = vpop.f32.mrf.mxu0
        %v2716 = vadd.f32 0.0, %v2715
        %v2717 = vpop.f32.mrf.mxu0
        %2718 = vmatprep.mubr.f32.mxu0 0.0
        %2719 = vmatmul.mubr.f32.gmra.mxu0 %v439
        %v2720 = vpop.f32.mrf.mxu0
        %v2721 = vadd.f32 0.0, %v2720
        %v2722 = vpop.f32.mrf.mxu0
        %2723 = vmatprep.mubr.f32.mxu0 0.0
        %2724 = vmatmul.mubr.f32.gmra.mxu0 %v442
        %v2725 = vpop.f32.mrf.mxu0
        %v2726 = vadd.f32 0.0, %v2725
        %v2727 = vpop.f32.mrf.mxu0
        %2728 = vmatprep.mubr.f32.mxu0 0.0
        %2729 = vmatmul.mubr.f32.gmra.mxu0 %v445
        %v2730 = vpop.f32.mrf.mxu0
        %v2731 = vadd.f32 0.0, %v2730
        %v2732 = vpop.f32.mrf.mxu0
        %2733 = vmatprep.mubr.f32.mxu0 0.0
        %2734 = vmatmul.mubr.f32.gmra.mxu0 %v448
        %v2735 = vpop.f32.mrf.mxu0
        %v2736 = vadd.f32 0.0, %v2735
        %v2737 = vpop.f32.mrf.mxu0
        %2738 = vmatprep.mubr.f32.mxu0 0.0
        %2739 = vmatmul.mubr.f32.gmra.mxu0 %v451
        %v2740 = vpop.f32.mrf.mxu0
        %v2741 = vadd.f32 0.0, %v2740
        %v2742 = vpop.f32.mrf.mxu0
        %2743 = vmatprep.mubr.f32.mxu0 0.0
        %2744 = vmatmul.mubr.f32.gmra.mxu0 %v454
        %v2745 = vpop.f32.mrf.mxu0
        %v2746 = vadd.f32 0.0, %v2745
        %v2747 = vpop.f32.mrf.mxu0
        %2748 = vmatprep.mubr.f32.mxu0 0.0
        %2749 = vmatmul.mubr.f32.gmra.mxu0 %v457
        %v2750 = vpop.f32.mrf.mxu0
        %v2751 = vadd.f32 0.0, %v2750
        %v2752 = vpop.f32.mrf.mxu0
        %2753 = vmatprep.mubr.f32.mxu0 0.0
        %2754 = vmatmul.mubr.f32.gmra.mxu0 %v460
        %v2755 = vpop.f32.mrf.mxu0
        %v2756 = vadd.f32 0.0, %v2755
        %v2757 = vpop.f32.mrf.mxu0
        %2758 = vmatprep.mubr.f32.mxu0 0.0
        %2759 = vmatmul.mubr.f32.gmra.mxu0 %v463
        %v2760 = vpop.f32.mrf.mxu0
        %v2761 = vadd.f32 0.0, %v2760
        %v2762 = vpop.f32.mrf.mxu0
        %2763 = vmatprep.mubr.f32.mxu0 0.0
        %2764 = vmatmul.mubr.f32.gmra.mxu0 %v466
        %v2765 = vpop.f32.mrf.mxu0
        %v2766 = vadd.f32 0.0, %v2765
        %v2767 = vpop.f32.mrf.mxu0
        %2768 = vmatprep.mubr.f32.mxu0 0.0
        %2769 = vmatmul.mubr.f32.gmra.mxu0 %v469
        %v2770 = vpop.f32.mrf.mxu0
        %v2771 = vadd.f32 0.0, %v2770
        %v2772 = vpop.f32.mrf.mxu0
        %2773 = vmatprep.mubr.f32.mxu0 0.0
        %2774 = vmatmul.mubr.f32.gmra.mxu0 %v472
        %v2775 = vpop.f32.mrf.mxu0
        %v2776 = vadd.f32 0.0, %v2775
        %v2777 = vpop.f32.mrf.mxu0
        %2778 = vmatprep.mubr.f32.mxu0 0.0
        %2779 = vmatmul.mubr.f32.gmra.mxu0 %v475
        %v2780 = vpop.f32.mrf.mxu0
        %v2781 = vadd.f32 0.0, %v2780
        %v2782 = vpop.f32.mrf.mxu0
        %2783 = vmatprep.mubr.f32.mxu0 0.0
        %2784 = vmatmul.mubr.f32.gmra.mxu0 %v478
        %v2785 = vpop.f32.mrf.mxu0
        %v2786 = vadd.f32 0.0, %v2785
        %v2787 = vpop.f32.mrf.mxu0
        %2788 = vmatprep.mubr.f32.mxu0 0.0
        %2789 = vmatmul.mubr.f32.gmra.mxu0 %v481
        %v2790 = vpop.f32.mrf.mxu0
        %v2791 = vadd.f32 0.0, %v2790
        %v2792 = vpop.f32.mrf.mxu0
        %2793 = vmatprep.mubr.f32.mxu0 0.0
        %2794 = vmatmul.mubr.f32.gmra.mxu0 %v484
        %v2795 = vpop.f32.mrf.mxu0
        %v2796 = vadd.f32 0.0, %v2795
        %v2797 = vpop.f32.mrf.mxu0
        %2798 = vmatprep.mubr.f32.mxu0 0.0
        %2799 = vmatmul.mubr.f32.gmra.mxu0 %v487
        %v2800 = vpop.f32.mrf.mxu0
        %v2801 = vadd.f32 0.0, %v2800
        %v2802 = vpop.f32.mrf.mxu0
        %2803 = vmatprep.mubr.f32.mxu0 0.0
        %2804 = vmatmul.mubr.f32.gmra.mxu0 %v490
        %v2805 = vpop.f32.mrf.mxu0
        %v2806 = vadd.f32 0.0, %v2805
        %v2807 = vpop.f32.mrf.mxu0
        %2808 = vmatprep.mubr.f32.mxu0 0.0
        %2809 = vmatmul.mubr.f32.gmra.mxu0 %v493
        %v2810 = vpop.f32.mrf.mxu0
        %v2811 = vadd.f32 0.0, %v2810
        %v2812 = vpop.f32.mrf.mxu0
        %2813 = vmatprep.mubr.f32.mxu0 0.0
        %2814 = vmatmul.mubr.f32.gmra.mxu0 %v496
        %v2815 = vpop.f32.mrf.mxu0
        %v2816 = vadd.f32 0.0, %v2815
        %v2817 = vpop.f32.mrf.mxu0
        %2818 = vmatprep.mubr.f32.mxu0 0.0
        %2819 = vmatmul.mubr.f32.gmra.mxu0 %v499
        %v2820 = vpop.f32.mrf.mxu0
        %v2821 = vadd.f32 0.0, %v2820
        %v2822 = vpop.f32.mrf.mxu0
        %2823 = vmatprep.mubr.f32.mxu0 0.0
        %2824 = vmatmul.mubr.f32.gmra.mxu0 %v502
        %v2825 = vpop.f32.mrf.mxu0
        %v2826 = vadd.f32 0.0, %v2825
        %v2827 = vpop.f32.mrf.mxu0
        %2828 = vmatprep.mubr.f32.mxu0 0.0
        %2829 = vmatmul.mubr.f32.gmra.mxu0 %v505
        %v2830 = vpop.f32.mrf.mxu0
        %v2831 = vadd.f32 0.0, %v2830
        %v2832 = vpop.f32.mrf.mxu0
        %2833 = vmatprep.mubr.f32.mxu0 0.0
        %2834 = vmatmul.mubr.f32.gmra.mxu0 %v508
        %v2835 = vpop.f32.mrf.mxu0
        %v2836 = vadd.f32 0.0, %v2835
        %v2837 = vpop.f32.mrf.mxu0
        %2838 = vmatprep.mubr.f32.mxu0 0.0
        %2839 = vmatmul.mubr.f32.gmra.mxu0 %v511
        %v2840 = vpop.f32.mrf.mxu0
        %v2841 = vadd.f32 0.0, %v2840
        %v2842 = vpop.f32.mrf.mxu0
        %2843 = vmatprep.mubr.f32.mxu0 0.0
        %2844 = vmatmul.mubr.f32.gmra.mxu0 %v514
        %v2845 = vpop.f32.mrf.mxu0
        %v2846 = vadd.f32 0.0, %v2845
        %v2847 = vpop.f32.mrf.mxu0
        %2848 = vmatprep.mubr.f32.mxu0 0.0
        %2849 = vmatmul.mubr.f32.gmra.mxu0 %v517
        %v2850 = vpop.f32.mrf.mxu0
        %v2851 = vadd.f32 0.0, %v2850
        %v2852 = vpop.f32.mrf.mxu0
        %2853 = vmatprep.mubr.f32.mxu0 0.0
        %2854 = vmatmul.mubr.f32.gmra.mxu0 %v520
        %v2855 = vpop.f32.mrf.mxu0
        %v2856 = vadd.f32 0.0, %v2855
        %v2857 = vpop.f32.mrf.mxu0
        %2858 = vmatprep.mubr.f32.mxu0 0.0
        %2859 = vmatmul.mubr.f32.gmra.mxu0 %v523
        %v2860 = vpop.f32.mrf.mxu0
        %v2861 = vadd.f32 0.0, %v2860
        %v2862 = vpop.f32.mrf.mxu0
        %2863 = vmatprep.mubr.f32.mxu0 0.0
        %2864 = vmatmul.mubr.f32.gmra.mxu0 %v526
        %v2865 = vpop.f32.mrf.mxu0
        %v2866 = vadd.f32 0.0, %v2865
        %v2867 = vpop.f32.mrf.mxu0
        %2868 = vmatprep.mubr.f32.mxu0 0.0
        %2869 = vmatmul.mubr.f32.gmra.mxu0 %v529
        %v2870 = vpop.f32.mrf.mxu0
        %v2871 = vadd.f32 0.0, %v2870
        %v2872 = vpop.f32.mrf.mxu0
        %2873 = vmatprep.mubr.f32.mxu0 0.0
        %2874 = vmatmul.mubr.f32.gmra.mxu0 %v532
        %v2875 = vpop.f32.mrf.mxu0
        %v2876 = vadd.f32 0.0, %v2875
        %v2877 = vpop.f32.mrf.mxu0
        %2878 = vmatprep.mubr.f32.mxu0 0.0
        %2879 = vmatmul.mubr.f32.gmra.mxu0 %v535
        %v2880 = vpop.f32.mrf.mxu0
        %v2881 = vadd.f32 0.0, %v2880
        %v2882 = vpop.f32.mrf.mxu0
        %2883 = vmatprep.mubr.f32.mxu0 0.0
        %2884 = vmatmul.mubr.f32.gmra.mxu0 %v538
        %v2885 = vpop.f32.mrf.mxu0
        %v2886 = vadd.f32 0.0, %v2885
        %v2887 = vpop.f32.mrf.mxu0
        %2888 = vmatprep.mubr.f32.mxu0 0.0
        %2889 = vmatmul.mubr.f32.gmra.mxu0 %v541
        %v2890 = vpop.f32.mrf.mxu0
        %v2891 = vadd.f32 0.0, %v2890
        %v2892 = vpop.f32.mrf.mxu0
        %2893 = vmatprep.mubr.f32.mxu0 0.0
        %2894 = vmatmul.mubr.f32.gmra.mxu0 %v544
        %v2895 = vpop.f32.mrf.mxu0
        %v2896 = vadd.f32 0.0, %v2895
        %v2897 = vpop.f32.mrf.mxu0
        %2898 = vdwg.mxu0
        %s2899 = scalar_lea.vmem %s209, 2016
        %2900 = vst [vmem:[%s2899] sm:$0xff] %v2374
        %2901 = vst [vmem:[%s2899 + $0x8] sm:$0xff] %v2376
        %2902 = vst.msk [vmem:[%s2899 + $0x10] sm:$0xff] %vm1140, %v2691
        %2903 = vst [vmem:[%s2899 + $0x18] sm:$0xff] %v2380
        %2904 = vst [vmem:[%s2899 + $0x20] sm:$0xff] %v2382
        %2905 = vst.msk [vmem:[%s2899 + $0x28] sm:$0xff] %vm1140, %v2696
        %2906 = vst [vmem:[%s2899 + $0x30] sm:$0xff] %v2386
        %2907 = vst [vmem:[%s2899 + $0x38] sm:$0xff] %v2388
        %2908 = vst.msk [vmem:[%s2899 + $0x40] sm:$0xff] %vm1140, %v2701
        %2909 = vst [vmem:[%s2899 + $0x48] sm:$0xff] %v2392
        %2910 = vst [vmem:[%s2899 + $0x50] sm:$0xff] %v2394
        %2911 = vst.msk [vmem:[%s2899 + $0x58] sm:$0xff] %vm1140, %v2706
        %2912 = vst [vmem:[%s2899 + $0x60] sm:$0xff] %v2398
        %2913 = vst [vmem:[%s2899 + $0x68] sm:$0xff] %v2400
        %2914 = vst.msk [vmem:[%s2899 + $0x70] sm:$0xff] %vm1140, %v2711
        %2915 = vst [vmem:[%s2899 + $0x78] sm:$0xff] %v2404
        %2916 = vst [vmem:[%s2899 + $0x80] sm:$0xff] %v2406
        %2917 = vst.msk [vmem:[%s2899 + $0x88] sm:$0xff] %vm1140, %v2716
        %2918 = vst [vmem:[%s2899 + $0x90] sm:$0xff] %v2410
        %2919 = vst [vmem:[%s2899 + $0x98] sm:$0xff] %v2412
        %2920 = vst.msk [vmem:[%s2899 + $0xa0] sm:$0xff] %vm1140, %v2721
        %2921 = vst [vmem:[%s2899 + $0xa8] sm:$0xff] %v2416
        %2922 = vst [vmem:[%s2899 + $0xb0] sm:$0xff] %v2418
        %2923 = vst.msk [vmem:[%s2899 + $0xb8] sm:$0xff] %vm1140, %v2726
        %2924 = vst [vmem:[%s2899 + $0xc0] sm:$0xff] %v2422
        %2925 = vst [vmem:[%s2899 + $0xc8] sm:$0xff] %v2424
        %2926 = vst.msk [vmem:[%s2899 + $0xd0] sm:$0xff] %vm1140, %v2731
        %2927 = vst [vmem:[%s2899 + $0xd8] sm:$0xff] %v2428
        %2928 = vst [vmem:[%s2899 + $0xe0] sm:$0xff] %v2430
        %2929 = vst.msk [vmem:[%s2899 + $0xe8] sm:$0xff] %vm1140, %v2736
        %2930 = vst [vmem:[%s2899 + $0xf0] sm:$0xff] %v2434
        %2931 = vst [vmem:[%s2899 + $0xf8] sm:$0xff] %v2436
        %2932 = vst.msk [vmem:[%s2899 + $0x100] sm:$0xff] %vm1140, %v2741
        %2933 = vst [vmem:[%s2899 + $0x108] sm:$0xff] %v2440
        %2934 = vst [vmem:[%s2899 + $0x110] sm:$0xff] %v2442
        %2935 = vst.msk [vmem:[%s2899 + $0x118] sm:$0xff] %vm1140, %v2746
        %2936 = vst [vmem:[%s2899 + $0x120] sm:$0xff] %v2446
        %2937 = vst [vmem:[%s2899 + $0x128] sm:$0xff] %v2448
        %2938 = vst.msk [vmem:[%s2899 + $0x130] sm:$0xff] %vm1140, %v2751
        %2939 = vst [vmem:[%s2899 + $0x138] sm:$0xff] %v2452
        %2940 = vst [vmem:[%s2899 + $0x140] sm:$0xff] %v2454
        %2941 = vst.msk [vmem:[%s2899 + $0x148] sm:$0xff] %vm1140, %v2756
        %2942 = vst [vmem:[%s2899 + $0x150] sm:$0xff] %v2458
        %2943 = vst [vmem:[%s2899 + $0x158] sm:$0xff] %v2460
        %2944 = vst.msk [vmem:[%s2899 + $0x160] sm:$0xff] %vm1140, %v2761
        %2945 = vst [vmem:[%s2899 + $0x168] sm:$0xff] %v2464
        %2946 = vst [vmem:[%s2899 + $0x170] sm:$0xff] %v2466
        %2947 = vst.msk [vmem:[%s2899 + $0x178] sm:$0xff] %vm1140, %v2766
        %2948 = vst [vmem:[%s2899 + $0x180] sm:$0xff] %v2470
        %2949 = vst [vmem:[%s2899 + $0x188] sm:$0xff] %v2472
        %2950 = vst.msk [vmem:[%s2899 + $0x190] sm:$0xff] %vm1140, %v2771
        %2951 = vst [vmem:[%s2899 + $0x198] sm:$0xff] %v2476
        %2952 = vst [vmem:[%s2899 + $0x1a0] sm:$0xff] %v2478
        %2953 = vst.msk [vmem:[%s2899 + $0x1a8] sm:$0xff] %vm1140, %v2776
        %2954 = vst [vmem:[%s2899 + $0x1b0] sm:$0xff] %v2482
        %2955 = vst [vmem:[%s2899 + $0x1b8] sm:$0xff] %v2484
        %2956 = vst.msk [vmem:[%s2899 + $0x1c0] sm:$0xff] %vm1140, %v2781
        %2957 = vst [vmem:[%s2899 + $0x1c8] sm:$0xff] %v2488
        %2958 = vst [vmem:[%s2899 + $0x1d0] sm:$0xff] %v2490
        %2959 = vst.msk [vmem:[%s2899 + $0x1d8] sm:$0xff] %vm1140, %v2786
        %2960 = vst [vmem:[%s2899 + $0x1e0] sm:$0xff] %v2494
        %2961 = vst [vmem:[%s2899 + $0x1e8] sm:$0xff] %v2496
        %2962 = vst.msk [vmem:[%s2899 + $0x1f0] sm:$0xff] %vm1140, %v2791
        %2963 = vst [vmem:[%s2899 + $0x1f8] sm:$0xff] %v2500
        %2964 = vst [vmem:[%s2899 + $0x200] sm:$0xff] %v2502
        %2965 = vst.msk [vmem:[%s2899 + $0x208] sm:$0xff] %vm1140, %v2796
        %2966 = vst [vmem:[%s2899 + $0x210] sm:$0xff] %v2506
        %2967 = vst [vmem:[%s2899 + $0x218] sm:$0xff] %v2508
        %2968 = vst.msk [vmem:[%s2899 + $0x220] sm:$0xff] %vm1140, %v2801
        %2969 = vst [vmem:[%s2899 + $0x228] sm:$0xff] %v2512
        %2970 = vst [vmem:[%s2899 + $0x230] sm:$0xff] %v2514
        %2971 = vst.msk [vmem:[%s2899 + $0x238] sm:$0xff] %vm1140, %v2806
        %2972 = vst [vmem:[%s2899 + $0x240] sm:$0xff] %v2518
        %2973 = vst [vmem:[%s2899 + $0x248] sm:$0xff] %v2520
        %2974 = vst.msk [vmem:[%s2899 + $0x250] sm:$0xff] %vm1140, %v2811
        %2975 = vst [vmem:[%s2899 + $0x258] sm:$0xff] %v2524
        %2976 = vst [vmem:[%s2899 + $0x260] sm:$0xff] %v2526
        %2977 = vst.msk [vmem:[%s2899 + $0x268] sm:$0xff] %vm1140, %v2816
        %2978 = vst [vmem:[%s2899 + $0x270] sm:$0xff] %v2530
        %2979 = vst [vmem:[%s2899 + $0x278] sm:$0xff] %v2532
        %2980 = vst.msk [vmem:[%s2899 + $0x280] sm:$0xff] %vm1140, %v2821
        %2981 = vst [vmem:[%s2899 + $0x288] sm:$0xff] %v2536
        %2982 = vst [vmem:[%s2899 + $0x290] sm:$0xff] %v2538
        %2983 = vst.msk [vmem:[%s2899 + $0x298] sm:$0xff] %vm1140, %v2826
        %2984 = vst [vmem:[%s2899 + $0x2a0] sm:$0xff] %v2542
        %2985 = vst [vmem:[%s2899 + $0x2a8] sm:$0xff] %v2544
        %2986 = vst.msk [vmem:[%s2899 + $0x2b0] sm:$0xff] %vm1140, %v2831
        %2987 = vst [vmem:[%s2899 + $0x2b8] sm:$0xff] %v2548
        %2988 = vst [vmem:[%s2899 + $0x2c0] sm:$0xff] %v2550
        %2989 = vst.msk [vmem:[%s2899 + $0x2c8] sm:$0xff] %vm1140, %v2836
        %2990 = vst [vmem:[%s2899 + $0x2d0] sm:$0xff] %v2554
        %2991 = vst [vmem:[%s2899 + $0x2d8] sm:$0xff] %v2556
        %2992 = vst.msk [vmem:[%s2899 + $0x2e0] sm:$0xff] %vm1140, %v2841
        %2993 = vst [vmem:[%s2899 + $0x2e8] sm:$0xff] %v2560
        %2994 = vst [vmem:[%s2899 + $0x2f0] sm:$0xff] %v2562
        %2995 = vst.msk [vmem:[%s2899 + $0x2f8] sm:$0xff] %vm1140, %v2846
        %2996 = vst [vmem:[%s2899 + $0x300] sm:$0xff] %v2566
        %2997 = vst [vmem:[%s2899 + $0x308] sm:$0xff] %v2568
        %2998 = vst.msk [vmem:[%s2899 + $0x310] sm:$0xff] %vm1140, %v2851
        %2999 = vst [vmem:[%s2899 + $0x318] sm:$0xff] %v2572
        %3000 = vst [vmem:[%s2899 + $0x320] sm:$0xff] %v2574
        %3001 = vst.msk [vmem:[%s2899 + $0x328] sm:$0xff] %vm1140, %v2856
        %3002 = vst [vmem:[%s2899 + $0x330] sm:$0xff] %v2578
        %3003 = vst [vmem:[%s2899 + $0x338] sm:$0xff] %v2580
        %3004 = vst.msk [vmem:[%s2899 + $0x340] sm:$0xff] %vm1140, %v2861
        %3005 = vst [vmem:[%s2899 + $0x348] sm:$0xff] %v2584
        %3006 = vst [vmem:[%s2899 + $0x350] sm:$0xff] %v2586
        %3007 = vst.msk [vmem:[%s2899 + $0x358] sm:$0xff] %vm1140, %v2866
        %3008 = vst [vmem:[%s2899 + $0x360] sm:$0xff] %v2590
        %3009 = vst [vmem:[%s2899 + $0x368] sm:$0xff] %v2592
        %3010 = vst.msk [vmem:[%s2899 + $0x370] sm:$0xff] %vm1140, %v2871
        %3011 = vst [vmem:[%s2899 + $0x378] sm:$0xff] %v2596
        %3012 = vst [vmem:[%s2899 + $0x380] sm:$0xff] %v2598
        %3013 = vst.msk [vmem:[%s2899 + $0x388] sm:$0xff] %vm1140, %v2876
        %3014 = vst [vmem:[%s2899 + $0x390] sm:$0xff] %v2602
        %3015 = vst [vmem:[%s2899 + $0x398] sm:$0xff] %v2604
        %3016 = vst.msk [vmem:[%s2899 + $0x3a0] sm:$0xff] %vm1140, %v2881
        %3017 = vst [vmem:[%s2899 + $0x3a8] sm:$0xff] %v2608
        %3018 = vst [vmem:[%s2899 + $0x3b0] sm:$0xff] %v2610
        %3019 = vst.msk [vmem:[%s2899 + $0x3b8] sm:$0xff] %vm1140, %v2886
        %3020 = vst [vmem:[%s2899 + $0x3c0] sm:$0xff] %v2614
        %3021 = vst [vmem:[%s2899 + $0x3c8] sm:$0xff] %v2616
        %3022 = vst.msk [vmem:[%s2899 + $0x3d0] sm:$0xff] %vm1140, %v2891
        %3023 = vst [vmem:[%s2899 + $0x3d8] sm:$0x7] %v2620
        %3024 = vst [vmem:[%s2899 + $0x3e0] sm:$0x7] %v2622
        %3025 = vst.msk [vmem:[%s2899 + $0x3e8] sm:$0x7] %vm1264, %v2896
        %s3026 = scalar_lea.vmem %s175, 48 [#allocation2]
        %v3027 = vld [vmem:[%s3026] sm:$0xff]
        %v3028 = vld [vmem:[%s3026 + $0x8] sm:$0xff]
        %v3030 = vsel %vm261, %v3027, 0
        %v3033 = vsel %vm261, %v3028, 0
        %3035 = vmatprep.subr.mxu0 0.0
        %3036 = vmatpush1.msra.mxu0 0.0
        %3037 = vmatprep.subr.mxu0 0.0
        %3038 = vmatpush1.msra.mxu0 0.0
        %3039 = vmatprep.subr.mxu0 0.0
        %3040 = vmatpush1.msra.mxu0 0.0
        %3041 = vmatprep.subr.mxu0 0.0
        %3042 = vmatpush1.msra.mxu0 0.0
        %3043 = vmatprep.subr.mxu0 0.0
        %3044 = vmatpush1.msra.mxu0 0.0
        %3045 = vmatprep.subr.mxu0 0.0
        %3046 = vmatpush1.msra.mxu0 0.0
        %3047 = vmatprep.subr.mxu0 0.0
        %3048 = vmatpush1.msra.mxu0 0.0
        %3049 = vmatprep.subr.mxu0 0.0
        %3050 = vmatpush1.msra.mxu0 0.0
        %3051 = vmatprep.subr.mxu0 0.0
        %3052 = vmatpush1.msra.mxu0 0.0
        %3053 = vmatprep.subr.mxu0 0.0
        %3054 = vmatpush1.msra.mxu0 0.0
        %3055 = vmatprep.subr.mxu0 0.0
        %3056 = vmatpush1.msra.mxu0 0.0
        %3057 = vmatprep.subr.mxu0 0.0
        %3058 = vmatpush1.msra.mxu0 0.0
        %3059 = vmatprep.subr.mxu0 0.0
        %3060 = vmatpush1.msra.mxu0 0.0
        %3061 = vmatprep.subr.mxu0 0.0
        %3062 = vmatpush1.msra.mxu0 0.0
        %3063 = vmatprep.subr.mxu0 %v215
        %3064 = vmatpush1.msra.mxu0 %v214
        %3065 = vmatprep.subr.mxu0 %v212
        %3066 = vmatpush1.msra.mxu0 %v211
        %3067 = vmatprep.subr.mxu0 0.0
        %3068 = vmatpush2.msra.mxu0 0.0
        %3069 = vmatprep.subr.mxu0 0.0
        %3070 = vmatpush2.msra.mxu0 0.0
        %3071 = vmatprep.subr.mxu0 0.0
        %3072 = vmatpush2.msra.mxu0 0.0
        %3073 = vmatprep.subr.mxu0 0.0
        %3074 = vmatpush2.msra.mxu0 0.0
        %3075 = vmatprep.subr.mxu0 0.0
        %3076 = vmatpush2.msra.mxu0 0.0
        %3077 = vmatprep.subr.mxu0 0.0
        %3078 = vmatpush2.msra.mxu0 0.0
        %3079 = vmatprep.subr.mxu0 0.0
        %3080 = vmatpush2.msra.mxu0 0.0
        %3081 = vmatprep.subr.mxu0 0.0
        %3082 = vmatpush2.msra.mxu0 0.0
        %3083 = vmatprep.subr.mxu0 0.0
        %3084 = vmatpush2.msra.mxu0 0.0
        %3085 = vmatprep.subr.mxu0 0.0
        %3086 = vmatpush2.msra.mxu0 0.0
        %3087 = vmatprep.subr.mxu0 0.0
        %3088 = vmatpush2.msra.mxu0 0.0
        %3089 = vmatprep.subr.mxu0 0.0
        %3090 = vmatpush2.msra.mxu0 0.0
        %3091 = vmatprep.subr.mxu0 0.0
        %3092 = vmatpush2.msra.mxu0 0.0
        %3093 = vmatprep.subr.mxu0 0.0
        %3094 = vmatpush2.msra.mxu0 0.0
        %3095 = vmatprep.subr.mxu0 0.0
        %3096 = vmatpush2.msra.mxu0 0.0
        %3097 = vmatprep.subr.mxu0 0.0
        %3098 = vmatpush2.msra.mxu0 0.0
        %3099 = vmatprep.mubr.f32.mxu0 0.0
        %3100 = vmatmul.mubr.f32.gmra.mxu0 %v3030
        %v3101 = vpop.f32.mrf.mxu0
        %v3102 = vadd.f32 0.0, %v3101
        %v3103 = vpop.f32.mrf.mxu0
        %v3104 = vadd.f32 0.0, %v3103
        %3105 = vmatprep.mubr.f32.mxu0 0.0
        %3106 = vmatmul.mubr.f32.gmra.mxu0 %v3033
        %v3107 = vpop.f32.mrf.mxu0
        %v3108 = vadd.f32 0.0, %v3107
        %v3109 = vpop.f32.mrf.mxu0
        %v3110 = vadd.f32 0.0, %v3109
        %3111 = vdwg.mxu0
        %3112 = vmatprep.subr.mxu0 0.0
        %3113 = vmatpush1.msra.mxu0 0.0
        %3114 = vmatprep.subr.mxu0 0.0
        %3115 = vmatpush1.msra.mxu0 0.0
        %3116 = vmatprep.subr.mxu0 0.0
        %3117 = vmatpush1.msra.mxu0 0.0
        %3118 = vmatprep.subr.mxu0 0.0
        %3119 = vmatpush1.msra.mxu0 0.0
        %3120 = vmatprep.subr.mxu0 0.0
        %3121 = vmatpush1.msra.mxu0 0.0
        %3122 = vmatprep.subr.mxu0 0.0
        %3123 = vmatpush1.msra.mxu0 0.0
        %3124 = vmatprep.subr.mxu0 0.0
        %3125 = vmatpush1.msra.mxu0 0.0
        %3126 = vmatprep.subr.mxu0 0.0
        %3127 = vmatpush1.msra.mxu0 0.0
        %3128 = vmatprep.subr.mxu0 0.0
        %3129 = vmatpush1.msra.mxu0 0.0
        %3130 = vmatprep.subr.mxu0 0.0
        %3131 = vmatpush1.msra.mxu0 0.0
        %3132 = vmatprep.subr.mxu0 0.0
        %3133 = vmatpush1.msra.mxu0 0.0
        %3134 = vmatprep.subr.mxu0 0.0
        %3135 = vmatpush1.msra.mxu0 0.0
        %3136 = vmatprep.subr.mxu0 0.0
        %3137 = vmatpush1.msra.mxu0 0.0
        %3138 = vmatprep.subr.mxu0 0.0
        %3139 = vmatpush1.msra.mxu0 0.0
        %3140 = vmatprep.subr.mxu0 0.0
        %3141 = vmatpush1.msra.mxu0 %v216
        %3142 = vmatprep.subr.mxu0 0.0
        %3143 = vmatpush1.msra.mxu0 %v213
        %3144 = vmatprep.subr.mxu0 0.0
        %3145 = vmatpush2.msra.mxu0 0.0
        %3146 = vmatprep.subr.mxu0 0.0
        %3147 = vmatpush2.msra.mxu0 0.0
        %3148 = vmatprep.subr.mxu0 0.0
        %3149 = vmatpush2.msra.mxu0 0.0
        %3150 = vmatprep.subr.mxu0 0.0
        %3151 = vmatpush2.msra.mxu0 0.0
        %3152 = vmatprep.subr.mxu0 0.0
        %3153 = vmatpush2.msra.mxu0 0.0
        %3154 = vmatprep.subr.mxu0 0.0
        %3155 = vmatpush2.msra.mxu0 0.0
        %3156 = vmatprep.subr.mxu0 0.0
        %3157 = vmatpush2.msra.mxu0 0.0
        %3158 = vmatprep.subr.mxu0 0.0
        %3159 = vmatpush2.msra.mxu0 0.0
        %3160 = vmatprep.subr.mxu0 0.0
        %3161 = vmatpush2.msra.mxu0 0.0
        %3162 = vmatprep.subr.mxu0 0.0
        %3163 = vmatpush2.msra.mxu0 0.0
        %3164 = vmatprep.subr.mxu0 0.0
        %3165 = vmatpush2.msra.mxu0 0.0
        %3166 = vmatprep.subr.mxu0 0.0
        %3167 = vmatpush2.msra.mxu0 0.0
        %3168 = vmatprep.subr.mxu0 0.0
        %3169 = vmatpush2.msra.mxu0 0.0
        %3170 = vmatprep.subr.mxu0 0.0
        %3171 = vmatpush2.msra.mxu0 0.0
        %3172 = vmatprep.subr.mxu0 0.0
        %3173 = vmatpush2.msra.mxu0 0.0
        %3174 = vmatprep.subr.mxu0 0.0
        %3175 = vmatpush2.msra.mxu0 0.0
        %3176 = vmatprep.mubr.f32.mxu0 0.0
        %3177 = vmatmul.mubr.f32.gmra.mxu0 %v3030
        %v3178 = vpop.f32.mrf.mxu0
        %v3179 = vadd.f32 0.0, %v3178
        %v3180 = vpop.f32.mrf.mxu0
        %3181 = vmatprep.mubr.f32.mxu0 0.0
        %3182 = vmatmul.mubr.f32.gmra.mxu0 %v3033
        %v3183 = vpop.f32.mrf.mxu0
        %v3184 = vadd.f32 0.0, %v3183
        %v3185 = vpop.f32.mrf.mxu0
        %3186 = vdwg.mxu0
        %3187 = vmatprep.subr.mxu0 0.0
        %3188 = vmatpush1.msra.mxu0 0.0
        %3189 = vmatprep.subr.mxu0 0.0
        %3190 = vmatpush1.msra.mxu0 0.0
        %3191 = vmatprep.subr.mxu0 0.0
        %3192 = vmatpush1.msra.mxu0 0.0
        %3193 = vmatprep.subr.mxu0 0.0
        %3194 = vmatpush1.msra.mxu0 0.0
        %3195 = vmatprep.subr.mxu0 0.0
        %3196 = vmatpush1.msra.mxu0 0.0
        %3197 = vmatprep.subr.mxu0 0.0
        %3198 = vmatpush1.msra.mxu0 0.0
        %3199 = vmatprep.subr.mxu0 0.0
        %3200 = vmatpush1.msra.mxu0 0.0
        %3201 = vmatprep.subr.mxu0 0.0
        %3202 = vmatpush1.msra.mxu0 0.0
        %3203 = vmatprep.subr.mxu0 0.0
        %3204 = vmatpush1.msra.mxu0 0.0
        %3205 = vmatprep.subr.mxu0 0.0
        %3206 = vmatpush1.msra.mxu0 0.0
        %3207 = vmatprep.subr.mxu0 0.0
        %3208 = vmatpush1.msra.mxu0 0.0
        %3209 = vmatprep.subr.mxu0 0.0
        %3210 = vmatpush1.msra.mxu0 0.0
        %3211 = vmatprep.subr.mxu0 0.0
        %3212 = vmatpush1.msra.mxu0 0.0
        %3213 = vmatprep.subr.mxu0 0.0
        %3214 = vmatpush1.msra.mxu0 0.0
        %3215 = vmatprep.subr.mxu0 %v3110
        %3216 = vmatpush1.msra.mxu0 %v3108
        %3217 = vmatprep.subr.mxu0 %v3104
        %3218 = vmatpush1.msra.mxu0 %v3102
        %3219 = vmatprep.subr.mxu0 0.0
        %3220 = vmatpush2.msra.mxu0 0.0
        %3221 = vmatprep.subr.mxu0 0.0
        %3222 = vmatpush2.msra.mxu0 0.0
        %3223 = vmatprep.subr.mxu0 0.0
        %3224 = vmatpush2.msra.mxu0 0.0
        %3225 = vmatprep.subr.mxu0 0.0
        %3226 = vmatpush2.msra.mxu0 0.0
        %3227 = vmatprep.subr.mxu0 0.0
        %3228 = vmatpush2.msra.mxu0 0.0
        %3229 = vmatprep.subr.mxu0 0.0
        %3230 = vmatpush2.msra.mxu0 0.0
        %3231 = vmatprep.subr.mxu0 0.0
        %3232 = vmatpush2.msra.mxu0 0.0
        %3233 = vmatprep.subr.mxu0 0.0
        %3234 = vmatpush2.msra.mxu0 0.0
        %3235 = vmatprep.subr.mxu0 0.0
        %3236 = vmatpush2.msra.mxu0 0.0
        %3237 = vmatprep.subr.mxu0 0.0
        %3238 = vmatpush2.msra.mxu0 0.0
        %3239 = vmatprep.subr.mxu0 0.0
        %3240 = vmatpush2.msra.mxu0 0.0
        %3241 = vmatprep.subr.mxu0 0.0
        %3242 = vmatpush2.msra.mxu0 0.0
        %3243 = vmatprep.subr.mxu0 0.0
        %3244 = vmatpush2.msra.mxu0 0.0
        %3245 = vmatprep.subr.mxu0 0.0
        %3246 = vmatpush2.msra.mxu0 0.0
        %3247 = vmatprep.subr.mxu0 0.0
        %3248 = vmatpush2.msra.mxu0 0.0
        %3249 = vmatprep.subr.mxu0 0.0
        %3250 = vmatpush2.msra.mxu0 0.0
        %3251 = vmatprep.mubr.f32.mxu0 0.0
        %3252 = vmatmul.mubr.f32.gmra.mxu0 %v421
        %v3253 = vpop.f32.mrf.mxu0
        %v3254 = vadd.f32 0.0, %v3253
        %v3255 = vpop.f32.mrf.mxu0
        %v3256 = vadd.f32 0.0, %v3255
        %3257 = vmatprep.mubr.f32.mxu0 0.0
        %3258 = vmatmul.mubr.f32.gmra.mxu0 %v424
        %v3259 = vpop.f32.mrf.mxu0
        %v3260 = vadd.f32 0.0, %v3259
        %v3261 = vpop.f32.mrf.mxu0
        %v3262 = vadd.f32 0.0, %v3261
        %3263 = vmatprep.mubr.f32.mxu0 0.0
        %3264 = vmatmul.mubr.f32.gmra.mxu0 %v427
        %v3265 = vpop.f32.mrf.mxu0
        %v3266 = vadd.f32 0.0, %v3265
        %v3267 = vpop.f32.mrf.mxu0
        %v3268 = vadd.f32 0.0, %v3267
        %3269 = vmatprep.mubr.f32.mxu0 0.0
        %3270 = vmatmul.mubr.f32.gmra.mxu0 %v430
        %v3271 = vpop.f32.mrf.mxu0
        %v3272 = vadd.f32 0.0, %v3271
        %v3273 = vpop.f32.mrf.mxu0
        %v3274 = vadd.f32 0.0, %v3273
        %3275 = vmatprep.mubr.f32.mxu0 0.0
        %3276 = vmatmul.mubr.f32.gmra.mxu0 %v433
        %v3277 = vpop.f32.mrf.mxu0
        %v3278 = vadd.f32 0.0, %v3277
        %v3279 = vpop.f32.mrf.mxu0
        %v3280 = vadd.f32 0.0, %v3279
        %3281 = vmatprep.mubr.f32.mxu0 0.0
        %3282 = vmatmul.mubr.f32.gmra.mxu0 %v436
        %v3283 = vpop.f32.mrf.mxu0
        %v3284 = vadd.f32 0.0, %v3283
        %v3285 = vpop.f32.mrf.mxu0
        %v3286 = vadd.f32 0.0, %v3285
        %3287 = vmatprep.mubr.f32.mxu0 0.0
        %3288 = vmatmul.mubr.f32.gmra.mxu0 %v439
        %v3289 = vpop.f32.mrf.mxu0
        %v3290 = vadd.f32 0.0, %v3289
        %v3291 = vpop.f32.mrf.mxu0
        %v3292 = vadd.f32 0.0, %v3291
        %3293 = vmatprep.mubr.f32.mxu0 0.0
        %3294 = vmatmul.mubr.f32.gmra.mxu0 %v442
        %v3295 = vpop.f32.mrf.mxu0
        %v3296 = vadd.f32 0.0, %v3295
        %v3297 = vpop.f32.mrf.mxu0
        %v3298 = vadd.f32 0.0, %v3297
        %3299 = vmatprep.mubr.f32.mxu0 0.0
        %3300 = vmatmul.mubr.f32.gmra.mxu0 %v445
        %v3301 = vpop.f32.mrf.mxu0
        %v3302 = vadd.f32 0.0, %v3301
        %v3303 = vpop.f32.mrf.mxu0
        %v3304 = vadd.f32 0.0, %v3303
        %3305 = vmatprep.mubr.f32.mxu0 0.0
        %3306 = vmatmul.mubr.f32.gmra.mxu0 %v448
        %v3307 = vpop.f32.mrf.mxu0
        %v3308 = vadd.f32 0.0, %v3307
        %v3309 = vpop.f32.mrf.mxu0
        %v3310 = vadd.f32 0.0, %v3309
        %3311 = vmatprep.mubr.f32.mxu0 0.0
        %3312 = vmatmul.mubr.f32.gmra.mxu0 %v451
        %v3313 = vpop.f32.mrf.mxu0
        %v3314 = vadd.f32 0.0, %v3313
        %v3315 = vpop.f32.mrf.mxu0
        %v3316 = vadd.f32 0.0, %v3315
        %3317 = vmatprep.mubr.f32.mxu0 0.0
        %3318 = vmatmul.mubr.f32.gmra.mxu0 %v454
        %v3319 = vpop.f32.mrf.mxu0
        %v3320 = vadd.f32 0.0, %v3319
        %v3321 = vpop.f32.mrf.mxu0
        %v3322 = vadd.f32 0.0, %v3321
        %3323 = vmatprep.mubr.f32.mxu0 0.0
        %3324 = vmatmul.mubr.f32.gmra.mxu0 %v457
        %v3325 = vpop.f32.mrf.mxu0
        %v3326 = vadd.f32 0.0, %v3325
        %v3327 = vpop.f32.mrf.mxu0
        %v3328 = vadd.f32 0.0, %v3327
        %3329 = vmatprep.mubr.f32.mxu0 0.0
        %3330 = vmatmul.mubr.f32.gmra.mxu0 %v460
        %v3331 = vpop.f32.mrf.mxu0
        %v3332 = vadd.f32 0.0, %v3331
        %v3333 = vpop.f32.mrf.mxu0
        %v3334 = vadd.f32 0.0, %v3333
        %3335 = vmatprep.mubr.f32.mxu0 0.0
        %3336 = vmatmul.mubr.f32.gmra.mxu0 %v463
        %v3337 = vpop.f32.mrf.mxu0
        %v3338 = vadd.f32 0.0, %v3337
        %v3339 = vpop.f32.mrf.mxu0
        %v3340 = vadd.f32 0.0, %v3339
        %3341 = vmatprep.mubr.f32.mxu0 0.0
        %3342 = vmatmul.mubr.f32.gmra.mxu0 %v466
        %v3343 = vpop.f32.mrf.mxu0
        %v3344 = vadd.f32 0.0, %v3343
        %v3345 = vpop.f32.mrf.mxu0
        %v3346 = vadd.f32 0.0, %v3345
        %3347 = vmatprep.mubr.f32.mxu0 0.0
        %3348 = vmatmul.mubr.f32.gmra.mxu0 %v469
        %v3349 = vpop.f32.mrf.mxu0
        %v3350 = vadd.f32 0.0, %v3349
        %v3351 = vpop.f32.mrf.mxu0
        %v3352 = vadd.f32 0.0, %v3351
        %3353 = vmatprep.mubr.f32.mxu0 0.0
        %3354 = vmatmul.mubr.f32.gmra.mxu0 %v472
        %v3355 = vpop.f32.mrf.mxu0
        %v3356 = vadd.f32 0.0, %v3355
        %v3357 = vpop.f32.mrf.mxu0
        %v3358 = vadd.f32 0.0, %v3357
        %3359 = vmatprep.mubr.f32.mxu0 0.0
        %3360 = vmatmul.mubr.f32.gmra.mxu0 %v475
        %v3361 = vpop.f32.mrf.mxu0
        %v3362 = vadd.f32 0.0, %v3361
        %v3363 = vpop.f32.mrf.mxu0
        %v3364 = vadd.f32 0.0, %v3363
        %3365 = vmatprep.mubr.f32.mxu0 0.0
        %3366 = vmatmul.mubr.f32.gmra.mxu0 %v478
        %v3367 = vpop.f32.mrf.mxu0
        %v3368 = vadd.f32 0.0, %v3367
        %v3369 = vpop.f32.mrf.mxu0
        %v3370 = vadd.f32 0.0, %v3369
        %3371 = vmatprep.mubr.f32.mxu0 0.0
        %3372 = vmatmul.mubr.f32.gmra.mxu0 %v481
        %v3373 = vpop.f32.mrf.mxu0
        %v3374 = vadd.f32 0.0, %v3373
        %v3375 = vpop.f32.mrf.mxu0
        %v3376 = vadd.f32 0.0, %v3375
        %3377 = vmatprep.mubr.f32.mxu0 0.0
        %3378 = vmatmul.mubr.f32.gmra.mxu0 %v484
        %v3379 = vpop.f32.mrf.mxu0
        %v3380 = vadd.f32 0.0, %v3379
        %v3381 = vpop.f32.mrf.mxu0
        %v3382 = vadd.f32 0.0, %v3381
        %3383 = vmatprep.mubr.f32.mxu0 0.0
        %3384 = vmatmul.mubr.f32.gmra.mxu0 %v487
        %v3385 = vpop.f32.mrf.mxu0
        %v3386 = vadd.f32 0.0, %v3385
        %v3387 = vpop.f32.mrf.mxu0
        %v3388 = vadd.f32 0.0, %v3387
        %3389 = vmatprep.mubr.f32.mxu0 0.0
        %3390 = vmatmul.mubr.f32.gmra.mxu0 %v490
        %v3391 = vpop.f32.mrf.mxu0
        %v3392 = vadd.f32 0.0, %v3391
        %v3393 = vpop.f32.mrf.mxu0
        %v3394 = vadd.f32 0.0, %v3393
        %3395 = vmatprep.mubr.f32.mxu0 0.0
        %3396 = vmatmul.mubr.f32.gmra.mxu0 %v493
        %v3397 = vpop.f32.mrf.mxu0
        %v3398 = vadd.f32 0.0, %v3397
        %v3399 = vpop.f32.mrf.mxu0
        %v3400 = vadd.f32 0.0, %v3399
        %3401 = vmatprep.mubr.f32.mxu0 0.0
        %3402 = vmatmul.mubr.f32.gmra.mxu0 %v496
        %v3403 = vpop.f32.mrf.mxu0
        %v3404 = vadd.f32 0.0, %v3403
        %v3405 = vpop.f32.mrf.mxu0
        %v3406 = vadd.f32 0.0, %v3405
        %3407 = vmatprep.mubr.f32.mxu0 0.0
        %3408 = vmatmul.mubr.f32.gmra.mxu0 %v499
        %v3409 = vpop.f32.mrf.mxu0
        %v3410 = vadd.f32 0.0, %v3409
        %v3411 = vpop.f32.mrf.mxu0
        %v3412 = vadd.f32 0.0, %v3411
        %3413 = vmatprep.mubr.f32.mxu0 0.0
        %3414 = vmatmul.mubr.f32.gmra.mxu0 %v502
        %v3415 = vpop.f32.mrf.mxu0
        %v3416 = vadd.f32 0.0, %v3415
        %v3417 = vpop.f32.mrf.mxu0
        %v3418 = vadd.f32 0.0, %v3417
        %3419 = vmatprep.mubr.f32.mxu0 0.0
        %3420 = vmatmul.mubr.f32.gmra.mxu0 %v505
        %v3421 = vpop.f32.mrf.mxu0
        %v3422 = vadd.f32 0.0, %v3421
        %v3423 = vpop.f32.mrf.mxu0
        %v3424 = vadd.f32 0.0, %v3423
        %3425 = vmatprep.mubr.f32.mxu0 0.0
        %3426 = vmatmul.mubr.f32.gmra.mxu0 %v508
        %v3427 = vpop.f32.mrf.mxu0
        %v3428 = vadd.f32 0.0, %v3427
        %v3429 = vpop.f32.mrf.mxu0
        %v3430 = vadd.f32 0.0, %v3429
        %3431 = vmatprep.mubr.f32.mxu0 0.0
        %3432 = vmatmul.mubr.f32.gmra.mxu0 %v511
        %v3433 = vpop.f32.mrf.mxu0
        %v3434 = vadd.f32 0.0, %v3433
        %v3435 = vpop.f32.mrf.mxu0
        %v3436 = vadd.f32 0.0, %v3435
        %3437 = vmatprep.mubr.f32.mxu0 0.0
        %3438 = vmatmul.mubr.f32.gmra.mxu0 %v514
        %v3439 = vpop.f32.mrf.mxu0
        %v3440 = vadd.f32 0.0, %v3439
        %v3441 = vpop.f32.mrf.mxu0
        %v3442 = vadd.f32 0.0, %v3441
        %3443 = vmatprep.mubr.f32.mxu0 0.0
        %3444 = vmatmul.mubr.f32.gmra.mxu0 %v517
        %v3445 = vpop.f32.mrf.mxu0
        %v3446 = vadd.f32 0.0, %v3445
        %v3447 = vpop.f32.mrf.mxu0
        %v3448 = vadd.f32 0.0, %v3447
        %3449 = vmatprep.mubr.f32.mxu0 0.0
        %3450 = vmatmul.mubr.f32.gmra.mxu0 %v520
        %v3451 = vpop.f32.mrf.mxu0
        %v3452 = vadd.f32 0.0, %v3451
        %v3453 = vpop.f32.mrf.mxu0
        %v3454 = vadd.f32 0.0, %v3453
        %3455 = vmatprep.mubr.f32.mxu0 0.0
        %3456 = vmatmul.mubr.f32.gmra.mxu0 %v523
        %v3457 = vpop.f32.mrf.mxu0
        %v3458 = vadd.f32 0.0, %v3457
        %v3459 = vpop.f32.mrf.mxu0
        %v3460 = vadd.f32 0.0, %v3459
        %3461 = vmatprep.mubr.f32.mxu0 0.0
        %3462 = vmatmul.mubr.f32.gmra.mxu0 %v526
        %v3463 = vpop.f32.mrf.mxu0
        %v3464 = vadd.f32 0.0, %v3463
        %v3465 = vpop.f32.mrf.mxu0
        %v3466 = vadd.f32 0.0, %v3465
        %3467 = vmatprep.mubr.f32.mxu0 0.0
        %3468 = vmatmul.mubr.f32.gmra.mxu0 %v529
        %v3469 = vpop.f32.mrf.mxu0
        %v3470 = vadd.f32 0.0, %v3469
        %v3471 = vpop.f32.mrf.mxu0
        %v3472 = vadd.f32 0.0, %v3471
        %3473 = vmatprep.mubr.f32.mxu0 0.0
        %3474 = vmatmul.mubr.f32.gmra.mxu0 %v532
        %v3475 = vpop.f32.mrf.mxu0
        %v3476 = vadd.f32 0.0, %v3475
        %v3477 = vpop.f32.mrf.mxu0
        %v3478 = vadd.f32 0.0, %v3477
        %3479 = vmatprep.mubr.f32.mxu0 0.0
        %3480 = vmatmul.mubr.f32.gmra.mxu0 %v535
        %v3481 = vpop.f32.mrf.mxu0
        %v3482 = vadd.f32 0.0, %v3481
        %v3483 = vpop.f32.mrf.mxu0
        %v3484 = vadd.f32 0.0, %v3483
        %3485 = vmatprep.mubr.f32.mxu0 0.0
        %3486 = vmatmul.mubr.f32.gmra.mxu0 %v538
        %v3487 = vpop.f32.mrf.mxu0
        %v3488 = vadd.f32 0.0, %v3487
        %v3489 = vpop.f32.mrf.mxu0
        %v3490 = vadd.f32 0.0, %v3489
        %3491 = vmatprep.mubr.f32.mxu0 0.0
        %3492 = vmatmul.mubr.f32.gmra.mxu0 %v541
        %v3493 = vpop.f32.mrf.mxu0
        %v3494 = vadd.f32 0.0, %v3493
        %v3495 = vpop.f32.mrf.mxu0
        %v3496 = vadd.f32 0.0, %v3495
        %3497 = vmatprep.mubr.f32.mxu0 0.0
        %3498 = vmatmul.mubr.f32.gmra.mxu0 %v544
        %v3499 = vpop.f32.mrf.mxu0
        %v3500 = vadd.f32 0.0, %v3499
        %v3501 = vpop.f32.mrf.mxu0
        %v3502 = vadd.f32 0.0, %v3501
        %3503 = vdwg.mxu0
        %3504 = vmatprep.subr.mxu0 0.0
        %3505 = vmatpush1.msra.mxu0 0.0
        %3506 = vmatprep.subr.mxu0 0.0
        %3507 = vmatpush1.msra.mxu0 0.0
        %3508 = vmatprep.subr.mxu0 0.0
        %3509 = vmatpush1.msra.mxu0 0.0
        %3510 = vmatprep.subr.mxu0 0.0
        %3511 = vmatpush1.msra.mxu0 0.0
        %3512 = vmatprep.subr.mxu0 0.0
        %3513 = vmatpush1.msra.mxu0 0.0
        %3514 = vmatprep.subr.mxu0 0.0
        %3515 = vmatpush1.msra.mxu0 0.0
        %3516 = vmatprep.subr.mxu0 0.0
        %3517 = vmatpush1.msra.mxu0 0.0
        %3518 = vmatprep.subr.mxu0 0.0
        %3519 = vmatpush1.msra.mxu0 0.0
        %3520 = vmatprep.subr.mxu0 0.0
        %3521 = vmatpush1.msra.mxu0 0.0
        %3522 = vmatprep.subr.mxu0 0.0
        %3523 = vmatpush1.msra.mxu0 0.0
        %3524 = vmatprep.subr.mxu0 0.0
        %3525 = vmatpush1.msra.mxu0 0.0
        %3526 = vmatprep.subr.mxu0 0.0
        %3527 = vmatpush1.msra.mxu0 0.0
        %3528 = vmatprep.subr.mxu0 0.0
        %3529 = vmatpush1.msra.mxu0 0.0
        %3530 = vmatprep.subr.mxu0 0.0
        %3531 = vmatpush1.msra.mxu0 0.0
        %3532 = vmatprep.subr.mxu0 0.0
        %3533 = vmatpush1.msra.mxu0 %v3184
        %3534 = vmatprep.subr.mxu0 0.0
        %3535 = vmatpush1.msra.mxu0 %v3179
        %3536 = vmatprep.subr.mxu0 0.0
        %3537 = vmatpush2.msra.mxu0 0.0
        %3538 = vmatprep.subr.mxu0 0.0
        %3539 = vmatpush2.msra.mxu0 0.0
        %3540 = vmatprep.subr.mxu0 0.0
        %3541 = vmatpush2.msra.mxu0 0.0
        %3542 = vmatprep.subr.mxu0 0.0
        %3543 = vmatpush2.msra.mxu0 0.0
        %3544 = vmatprep.subr.mxu0 0.0
        %3545 = vmatpush2.msra.mxu0 0.0
        %3546 = vmatprep.subr.mxu0 0.0
        %3547 = vmatpush2.msra.mxu0 0.0
        %3548 = vmatprep.subr.mxu0 0.0
        %3549 = vmatpush2.msra.mxu0 0.0
        %3550 = vmatprep.subr.mxu0 0.0
        %3551 = vmatpush2.msra.mxu0 0.0
        %3552 = vmatprep.subr.mxu0 0.0
        %3553 = vmatpush2.msra.mxu0 0.0
        %3554 = vmatprep.subr.mxu0 0.0
        %3555 = vmatpush2.msra.mxu0 0.0
        %3556 = vmatprep.subr.mxu0 0.0
        %3557 = vmatpush2.msra.mxu0 0.0
        %3558 = vmatprep.subr.mxu0 0.0
        %3559 = vmatpush2.msra.mxu0 0.0
        %3560 = vmatprep.subr.mxu0 0.0
        %3561 = vmatpush2.msra.mxu0 0.0
        %3562 = vmatprep.subr.mxu0 0.0
        %3563 = vmatpush2.msra.mxu0 0.0
        %3564 = vmatprep.subr.mxu0 0.0
        %3565 = vmatpush2.msra.mxu0 0.0
        %3566 = vmatprep.subr.mxu0 0.0
        %3567 = vmatpush2.msra.mxu0 0.0
        %3568 = vmatprep.mubr.f32.mxu0 0.0
        %3569 = vmatmul.mubr.f32.gmra.mxu0 %v421
        %v3570 = vpop.f32.mrf.mxu0
        %v3571 = vadd.f32 0.0, %v3570
        %v3572 = vpop.f32.mrf.mxu0
        %3573 = vmatprep.mubr.f32.mxu0 0.0
        %3574 = vmatmul.mubr.f32.gmra.mxu0 %v424
        %v3575 = vpop.f32.mrf.mxu0
        %v3576 = vadd.f32 0.0, %v3575
        %v3577 = vpop.f32.mrf.mxu0
        %3578 = vmatprep.mubr.f32.mxu0 0.0
        %3579 = vmatmul.mubr.f32.gmra.mxu0 %v427
        %v3580 = vpop.f32.mrf.mxu0
        %v3581 = vadd.f32 0.0, %v3580
        %v3582 = vpop.f32.mrf.mxu0
        %3583 = vmatprep.mubr.f32.mxu0 0.0
        %3584 = vmatmul.mubr.f32.gmra.mxu0 %v430
        %v3585 = vpop.f32.mrf.mxu0
        %v3586 = vadd.f32 0.0, %v3585
        %v3587 = vpop.f32.mrf.mxu0
        %3588 = vmatprep.mubr.f32.mxu0 0.0
        %3589 = vmatmul.mubr.f32.gmra.mxu0 %v433
        %v3590 = vpop.f32.mrf.mxu0
        %v3591 = vadd.f32 0.0, %v3590
        %v3592 = vpop.f32.mrf.mxu0
        %3593 = vmatprep.mubr.f32.mxu0 0.0
        %3594 = vmatmul.mubr.f32.gmra.mxu0 %v436
        %v3595 = vpop.f32.mrf.mxu0
        %v3596 = vadd.f32 0.0, %v3595
        %v3597 = vpop.f32.mrf.mxu0
        %3598 = vmatprep.mubr.f32.mxu0 0.0
        %3599 = vmatmul.mubr.f32.gmra.mxu0 %v439
        %v3600 = vpop.f32.mrf.mxu0
        %v3601 = vadd.f32 0.0, %v3600
        %v3602 = vpop.f32.mrf.mxu0
        %3603 = vmatprep.mubr.f32.mxu0 0.0
        %3604 = vmatmul.mubr.f32.gmra.mxu0 %v442
        %v3605 = vpop.f32.mrf.mxu0
        %v3606 = vadd.f32 0.0, %v3605
        %v3607 = vpop.f32.mrf.mxu0
        %3608 = vmatprep.mubr.f32.mxu0 0.0
        %3609 = vmatmul.mubr.f32.gmra.mxu0 %v445
        %v3610 = vpop.f32.mrf.mxu0
        %v3611 = vadd.f32 0.0, %v3610
        %v3612 = vpop.f32.mrf.mxu0
        %3613 = vmatprep.mubr.f32.mxu0 0.0
        %3614 = vmatmul.mubr.f32.gmra.mxu0 %v448
        %v3615 = vpop.f32.mrf.mxu0
        %v3616 = vadd.f32 0.0, %v3615
        %v3617 = vpop.f32.mrf.mxu0
        %3618 = vmatprep.mubr.f32.mxu0 0.0
        %3619 = vmatmul.mubr.f32.gmra.mxu0 %v451
        %v3620 = vpop.f32.mrf.mxu0
        %v3621 = vadd.f32 0.0, %v3620
        %v3622 = vpop.f32.mrf.mxu0
        %3623 = vmatprep.mubr.f32.mxu0 0.0
        %3624 = vmatmul.mubr.f32.gmra.mxu0 %v454
        %v3625 = vpop.f32.mrf.mxu0
        %v3626 = vadd.f32 0.0, %v3625
        %v3627 = vpop.f32.mrf.mxu0
        %3628 = vmatprep.mubr.f32.mxu0 0.0
        %3629 = vmatmul.mubr.f32.gmra.mxu0 %v457
        %v3630 = vpop.f32.mrf.mxu0
        %v3631 = vadd.f32 0.0, %v3630
        %v3632 = vpop.f32.mrf.mxu0
        %3633 = vmatprep.mubr.f32.mxu0 0.0
        %3634 = vmatmul.mubr.f32.gmra.mxu0 %v460
        %v3635 = vpop.f32.mrf.mxu0
        %v3636 = vadd.f32 0.0, %v3635
        %v3637 = vpop.f32.mrf.mxu0
        %3638 = vmatprep.mubr.f32.mxu0 0.0
        %3639 = vmatmul.mubr.f32.gmra.mxu0 %v463
        %v3640 = vpop.f32.mrf.mxu0
        %v3641 = vadd.f32 0.0, %v3640
        %v3642 = vpop.f32.mrf.mxu0
        %3643 = vmatprep.mubr.f32.mxu0 0.0
        %3644 = vmatmul.mubr.f32.gmra.mxu0 %v466
        %v3645 = vpop.f32.mrf.mxu0
        %v3646 = vadd.f32 0.0, %v3645
        %v3647 = vpop.f32.mrf.mxu0
        %3648 = vmatprep.mubr.f32.mxu0 0.0
        %3649 = vmatmul.mubr.f32.gmra.mxu0 %v469
        %v3650 = vpop.f32.mrf.mxu0
        %v3651 = vadd.f32 0.0, %v3650
        %v3652 = vpop.f32.mrf.mxu0
        %3653 = vmatprep.mubr.f32.mxu0 0.0
        %3654 = vmatmul.mubr.f32.gmra.mxu0 %v472
        %v3655 = vpop.f32.mrf.mxu0
        %v3656 = vadd.f32 0.0, %v3655
        %v3657 = vpop.f32.mrf.mxu0
        %3658 = vmatprep.mubr.f32.mxu0 0.0
        %3659 = vmatmul.mubr.f32.gmra.mxu0 %v475
        %v3660 = vpop.f32.mrf.mxu0
        %v3661 = vadd.f32 0.0, %v3660
        %v3662 = vpop.f32.mrf.mxu0
        %3663 = vmatprep.mubr.f32.mxu0 0.0
        %3664 = vmatmul.mubr.f32.gmra.mxu0 %v478
        %v3665 = vpop.f32.mrf.mxu0
        %v3666 = vadd.f32 0.0, %v3665
        %v3667 = vpop.f32.mrf.mxu0
        %3668 = vmatprep.mubr.f32.mxu0 0.0
        %3669 = vmatmul.mubr.f32.gmra.mxu0 %v481
        %v3670 = vpop.f32.mrf.mxu0
        %v3671 = vadd.f32 0.0, %v3670
        %v3672 = vpop.f32.mrf.mxu0
        %3673 = vmatprep.mubr.f32.mxu0 0.0
        %3674 = vmatmul.mubr.f32.gmra.mxu0 %v484
        %v3675 = vpop.f32.mrf.mxu0
        %v3676 = vadd.f32 0.0, %v3675
        %v3677 = vpop.f32.mrf.mxu0
        %3678 = vmatprep.mubr.f32.mxu0 0.0
        %3679 = vmatmul.mubr.f32.gmra.mxu0 %v487
        %v3680 = vpop.f32.mrf.mxu0
        %v3681 = vadd.f32 0.0, %v3680
        %v3682 = vpop.f32.mrf.mxu0
        %3683 = vmatprep.mubr.f32.mxu0 0.0
        %3684 = vmatmul.mubr.f32.gmra.mxu0 %v490
        %v3685 = vpop.f32.mrf.mxu0
        %v3686 = vadd.f32 0.0, %v3685
        %v3687 = vpop.f32.mrf.mxu0
        %3688 = vmatprep.mubr.f32.mxu0 0.0
        %3689 = vmatmul.mubr.f32.gmra.mxu0 %v493
        %v3690 = vpop.f32.mrf.mxu0
        %v3691 = vadd.f32 0.0, %v3690
        %v3692 = vpop.f32.mrf.mxu0
        %3693 = vmatprep.mubr.f32.mxu0 0.0
        %3694 = vmatmul.mubr.f32.gmra.mxu0 %v496
        %v3695 = vpop.f32.mrf.mxu0
        %v3696 = vadd.f32 0.0, %v3695
        %v3697 = vpop.f32.mrf.mxu0
        %3698 = vmatprep.mubr.f32.mxu0 0.0
        %3699 = vmatmul.mubr.f32.gmra.mxu0 %v499
        %v3700 = vpop.f32.mrf.mxu0
        %v3701 = vadd.f32 0.0, %v3700
        %v3702 = vpop.f32.mrf.mxu0
        %3703 = vmatprep.mubr.f32.mxu0 0.0
        %3704 = vmatmul.mubr.f32.gmra.mxu0 %v502
        %v3705 = vpop.f32.mrf.mxu0
        %v3706 = vadd.f32 0.0, %v3705
        %v3707 = vpop.f32.mrf.mxu0
        %3708 = vmatprep.mubr.f32.mxu0 0.0
        %3709 = vmatmul.mubr.f32.gmra.mxu0 %v505
        %v3710 = vpop.f32.mrf.mxu0
        %v3711 = vadd.f32 0.0, %v3710
        %v3712 = vpop.f32.mrf.mxu0
        %3713 = vmatprep.mubr.f32.mxu0 0.0
        %3714 = vmatmul.mubr.f32.gmra.mxu0 %v508
        %v3715 = vpop.f32.mrf.mxu0
        %v3716 = vadd.f32 0.0, %v3715
        %v3717 = vpop.f32.mrf.mxu0
        %3718 = vmatprep.mubr.f32.mxu0 0.0
        %3719 = vmatmul.mubr.f32.gmra.mxu0 %v511
        %v3720 = vpop.f32.mrf.mxu0
        %v3721 = vadd.f32 0.0, %v3720
        %v3722 = vpop.f32.mrf.mxu0
        %3723 = vmatprep.mubr.f32.mxu0 0.0
        %3724 = vmatmul.mubr.f32.gmra.mxu0 %v514
        %v3725 = vpop.f32.mrf.mxu0
        %v3726 = vadd.f32 0.0, %v3725
        %v3727 = vpop.f32.mrf.mxu0
        %3728 = vmatprep.mubr.f32.mxu0 0.0
        %3729 = vmatmul.mubr.f32.gmra.mxu0 %v517
        %v3730 = vpop.f32.mrf.mxu0
        %v3731 = vadd.f32 0.0, %v3730
        %v3732 = vpop.f32.mrf.mxu0
        %3733 = vmatprep.mubr.f32.mxu0 0.0
        %3734 = vmatmul.mubr.f32.gmra.mxu0 %v520
        %v3735 = vpop.f32.mrf.mxu0
        %v3736 = vadd.f32 0.0, %v3735
        %v3737 = vpop.f32.mrf.mxu0
        %3738 = vmatprep.mubr.f32.mxu0 0.0
        %3739 = vmatmul.mubr.f32.gmra.mxu0 %v523
        %v3740 = vpop.f32.mrf.mxu0
        %v3741 = vadd.f32 0.0, %v3740
        %v3742 = vpop.f32.mrf.mxu0
        %3743 = vmatprep.mubr.f32.mxu0 0.0
        %3744 = vmatmul.mubr.f32.gmra.mxu0 %v526
        %v3745 = vpop.f32.mrf.mxu0
        %v3746 = vadd.f32 0.0, %v3745
        %v3747 = vpop.f32.mrf.mxu0
        %3748 = vmatprep.mubr.f32.mxu0 0.0
        %3749 = vmatmul.mubr.f32.gmra.mxu0 %v529
        %v3750 = vpop.f32.mrf.mxu0
        %v3751 = vadd.f32 0.0, %v3750
        %v3752 = vpop.f32.mrf.mxu0
        %3753 = vmatprep.mubr.f32.mxu0 0.0
        %3754 = vmatmul.mubr.f32.gmra.mxu0 %v532
        %v3755 = vpop.f32.mrf.mxu0
        %v3756 = vadd.f32 0.0, %v3755
        %v3757 = vpop.f32.mrf.mxu0
        %3758 = vmatprep.mubr.f32.mxu0 0.0
        %3759 = vmatmul.mubr.f32.gmra.mxu0 %v535
        %v3760 = vpop.f32.mrf.mxu0
        %v3761 = vadd.f32 0.0, %v3760
        %v3762 = vpop.f32.mrf.mxu0
        %3763 = vmatprep.mubr.f32.mxu0 0.0
        %3764 = vmatmul.mubr.f32.gmra.mxu0 %v538
        %v3765 = vpop.f32.mrf.mxu0
        %v3766 = vadd.f32 0.0, %v3765
        %v3767 = vpop.f32.mrf.mxu0
        %3768 = vmatprep.mubr.f32.mxu0 0.0
        %3769 = vmatmul.mubr.f32.gmra.mxu0 %v541
        %v3770 = vpop.f32.mrf.mxu0
        %v3771 = vadd.f32 0.0, %v3770
        %v3772 = vpop.f32.mrf.mxu0
        %3773 = vmatprep.mubr.f32.mxu0 0.0
        %3774 = vmatmul.mubr.f32.gmra.mxu0 %v544
        %v3775 = vpop.f32.mrf.mxu0
        %v3776 = vadd.f32 0.0, %v3775
        %v3777 = vpop.f32.mrf.mxu0
        %3778 = vdwg.mxu0
        %s3779 = scalar_lea.vmem %s209, 3024
        %3780 = vst [vmem:[%s3779] sm:$0xff] %v3254
        %3781 = vst [vmem:[%s3779 + $0x8] sm:$0xff] %v3256
        %3782 = vst.msk [vmem:[%s3779 + $0x10] sm:$0xff] %vm1140, %v3571
        %3783 = vst [vmem:[%s3779 + $0x18] sm:$0xff] %v3260
        %3784 = vst [vmem:[%s3779 + $0x20] sm:$0xff] %v3262
        %3785 = vst.msk [vmem:[%s3779 + $0x28] sm:$0xff] %vm1140, %v3576
        %3786 = vst [vmem:[%s3779 + $0x30] sm:$0xff] %v3266
        %3787 = vst [vmem:[%s3779 + $0x38] sm:$0xff] %v3268
        %3788 = vst.msk [vmem:[%s3779 + $0x40] sm:$0xff] %vm1140, %v3581
        %3789 = vst [vmem:[%s3779 + $0x48] sm:$0xff] %v3272
        %3790 = vst [vmem:[%s3779 + $0x50] sm:$0xff] %v3274
        %3791 = vst.msk [vmem:[%s3779 + $0x58] sm:$0xff] %vm1140, %v3586
        %3792 = vst [vmem:[%s3779 + $0x60] sm:$0xff] %v3278
        %3793 = vst [vmem:[%s3779 + $0x68] sm:$0xff] %v3280
        %3794 = vst.msk [vmem:[%s3779 + $0x70] sm:$0xff] %vm1140, %v3591
        %3795 = vst [vmem:[%s3779 + $0x78] sm:$0xff] %v3284
        %3796 = vst [vmem:[%s3779 + $0x80] sm:$0xff] %v3286
        %3797 = vst.msk [vmem:[%s3779 + $0x88] sm:$0xff] %vm1140, %v3596
        %3798 = vst [vmem:[%s3779 + $0x90] sm:$0xff] %v3290
        %3799 = vst [vmem:[%s3779 + $0x98] sm:$0xff] %v3292
        %3800 = vst.msk [vmem:[%s3779 + $0xa0] sm:$0xff] %vm1140, %v3601
        %3801 = vst [vmem:[%s3779 + $0xa8] sm:$0xff] %v3296
        %3802 = vst [vmem:[%s3779 + $0xb0] sm:$0xff] %v3298
        %3803 = vst.msk [vmem:[%s3779 + $0xb8] sm:$0xff] %vm1140, %v3606
        %3804 = vst [vmem:[%s3779 + $0xc0] sm:$0xff] %v3302
        %3805 = vst [vmem:[%s3779 + $0xc8] sm:$0xff] %v3304
        %3806 = vst.msk [vmem:[%s3779 + $0xd0] sm:$0xff] %vm1140, %v3611
        %3807 = vst [vmem:[%s3779 + $0xd8] sm:$0xff] %v3308
        %3808 = vst [vmem:[%s3779 + $0xe0] sm:$0xff] %v3310
        %3809 = vst.msk [vmem:[%s3779 + $0xe8] sm:$0xff] %vm1140, %v3616
        %3810 = vst [vmem:[%s3779 + $0xf0] sm:$0xff] %v3314
        %3811 = vst [vmem:[%s3779 + $0xf8] sm:$0xff] %v3316
        %3812 = vst.msk [vmem:[%s3779 + $0x100] sm:$0xff] %vm1140, %v3621
        %3813 = vst [vmem:[%s3779 + $0x108] sm:$0xff] %v3320
        %3814 = vst [vmem:[%s3779 + $0x110] sm:$0xff] %v3322
        %3815 = vst.msk [vmem:[%s3779 + $0x118] sm:$0xff] %vm1140, %v3626
        %3816 = vst [vmem:[%s3779 + $0x120] sm:$0xff] %v3326
        %3817 = vst [vmem:[%s3779 + $0x128] sm:$0xff] %v3328
        %3818 = vst.msk [vmem:[%s3779 + $0x130] sm:$0xff] %vm1140, %v3631
        %3819 = vst [vmem:[%s3779 + $0x138] sm:$0xff] %v3332
        %3820 = vst [vmem:[%s3779 + $0x140] sm:$0xff] %v3334
        %3821 = vst.msk [vmem:[%s3779 + $0x148] sm:$0xff] %vm1140, %v3636
        %3822 = vst [vmem:[%s3779 + $0x150] sm:$0xff] %v3338
        %3823 = vst [vmem:[%s3779 + $0x158] sm:$0xff] %v3340
        %3824 = vst.msk [vmem:[%s3779 + $0x160] sm:$0xff] %vm1140, %v3641
        %3825 = vst [vmem:[%s3779 + $0x168] sm:$0xff] %v3344
        %3826 = vst [vmem:[%s3779 + $0x170] sm:$0xff] %v3346
        %3827 = vst.msk [vmem:[%s3779 + $0x178] sm:$0xff] %vm1140, %v3646
        %3828 = vst [vmem:[%s3779 + $0x180] sm:$0xff] %v3350
        %3829 = vst [vmem:[%s3779 + $0x188] sm:$0xff] %v3352
        %3830 = vst.msk [vmem:[%s3779 + $0x190] sm:$0xff] %vm1140, %v3651
        %3831 = vst [vmem:[%s3779 + $0x198] sm:$0xff] %v3356
        %3832 = vst [vmem:[%s3779 + $0x1a0] sm:$0xff] %v3358
        %3833 = vst.msk [vmem:[%s3779 + $0x1a8] sm:$0xff] %vm1140, %v3656
        %3834 = vst [vmem:[%s3779 + $0x1b0] sm:$0xff] %v3362
        %3835 = vst [vmem:[%s3779 + $0x1b8] sm:$0xff] %v3364
        %3836 = vst.msk [vmem:[%s3779 + $0x1c0] sm:$0xff] %vm1140, %v3661
        %3837 = vst [vmem:[%s3779 + $0x1c8] sm:$0xff] %v3368
        %3838 = vst [vmem:[%s3779 + $0x1d0] sm:$0xff] %v3370
        %3839 = vst.msk [vmem:[%s3779 + $0x1d8] sm:$0xff] %vm1140, %v3666
        %3840 = vst [vmem:[%s3779 + $0x1e0] sm:$0xff] %v3374
        %3841 = vst [vmem:[%s3779 + $0x1e8] sm:$0xff] %v3376
        %3842 = vst.msk [vmem:[%s3779 + $0x1f0] sm:$0xff] %vm1140, %v3671
        %3843 = vst [vmem:[%s3779 + $0x1f8] sm:$0xff] %v3380
        %3844 = vst [vmem:[%s3779 + $0x200] sm:$0xff] %v3382
        %3845 = vst.msk [vmem:[%s3779 + $0x208] sm:$0xff] %vm1140, %v3676
        %3846 = vst [vmem:[%s3779 + $0x210] sm:$0xff] %v3386
        %3847 = vst [vmem:[%s3779 + $0x218] sm:$0xff] %v3388
        %3848 = vst.msk [vmem:[%s3779 + $0x220] sm:$0xff] %vm1140, %v3681
        %3849 = vst [vmem:[%s3779 + $0x228] sm:$0xff] %v3392
        %3850 = vst [vmem:[%s3779 + $0x230] sm:$0xff] %v3394
        %3851 = vst.msk [vmem:[%s3779 + $0x238] sm:$0xff] %vm1140, %v3686
        %3852 = vst [vmem:[%s3779 + $0x240] sm:$0xff] %v3398
        %3853 = vst [vmem:[%s3779 + $0x248] sm:$0xff] %v3400
        %3854 = vst.msk [vmem:[%s3779 + $0x250] sm:$0xff] %vm1140, %v3691
        %3855 = vst [vmem:[%s3779 + $0x258] sm:$0xff] %v3404
        %3856 = vst [vmem:[%s3779 + $0x260] sm:$0xff] %v3406
        %3857 = vst.msk [vmem:[%s3779 + $0x268] sm:$0xff] %vm1140, %v3696
        %3858 = vst [vmem:[%s3779 + $0x270] sm:$0xff] %v3410
        %3859 = vst [vmem:[%s3779 + $0x278] sm:$0xff] %v3412
        %3860 = vst.msk [vmem:[%s3779 + $0x280] sm:$0xff] %vm1140, %v3701
        %3861 = vst [vmem:[%s3779 + $0x288] sm:$0xff] %v3416
        %3862 = vst [vmem:[%s3779 + $0x290] sm:$0xff] %v3418
        %3863 = vst.msk [vmem:[%s3779 + $0x298] sm:$0xff] %vm1140, %v3706
        %3864 = vst [vmem:[%s3779 + $0x2a0] sm:$0xff] %v3422
        %3865 = vst [vmem:[%s3779 + $0x2a8] sm:$0xff] %v3424
        %3866 = vst.msk [vmem:[%s3779 + $0x2b0] sm:$0xff] %vm1140, %v3711
        %3867 = vst [vmem:[%s3779 + $0x2b8] sm:$0xff] %v3428
        %3868 = vst [vmem:[%s3779 + $0x2c0] sm:$0xff] %v3430
        %3869 = vst.msk [vmem:[%s3779 + $0x2c8] sm:$0xff] %vm1140, %v3716
        %3870 = vst [vmem:[%s3779 + $0x2d0] sm:$0xff] %v3434
        %3871 = vst [vmem:[%s3779 + $0x2d8] sm:$0xff] %v3436
        %3872 = vst.msk [vmem:[%s3779 + $0x2e0] sm:$0xff] %vm1140, %v3721
        %3873 = vst [vmem:[%s3779 + $0x2e8] sm:$0xff] %v3440
        %3874 = vst [vmem:[%s3779 + $0x2f0] sm:$0xff] %v3442
        %3875 = vst.msk [vmem:[%s3779 + $0x2f8] sm:$0xff] %vm1140, %v3726
        %3876 = vst [vmem:[%s3779 + $0x300] sm:$0xff] %v3446
        %3877 = vst [vmem:[%s3779 + $0x308] sm:$0xff] %v3448
        %3878 = vst.msk [vmem:[%s3779 + $0x310] sm:$0xff] %vm1140, %v3731
        %3879 = vst [vmem:[%s3779 + $0x318] sm:$0xff] %v3452
        %3880 = vst [vmem:[%s3779 + $0x320] sm:$0xff] %v3454
        %3881 = vst.msk [vmem:[%s3779 + $0x328] sm:$0xff] %vm1140, %v3736
        %3882 = vst [vmem:[%s3779 + $0x330] sm:$0xff] %v3458
        %3883 = vst [vmem:[%s3779 + $0x338] sm:$0xff] %v3460
        %3884 = vst.msk [vmem:[%s3779 + $0x340] sm:$0xff] %vm1140, %v3741
        %3885 = vst [vmem:[%s3779 + $0x348] sm:$0xff] %v3464
        %3886 = vst [vmem:[%s3779 + $0x350] sm:$0xff] %v3466
        %3887 = vst.msk [vmem:[%s3779 + $0x358] sm:$0xff] %vm1140, %v3746
        %3888 = vst [vmem:[%s3779 + $0x360] sm:$0xff] %v3470
        %3889 = vst [vmem:[%s3779 + $0x368] sm:$0xff] %v3472
        %3890 = vst.msk [vmem:[%s3779 + $0x370] sm:$0xff] %vm1140, %v3751
        %3891 = vst [vmem:[%s3779 + $0x378] sm:$0xff] %v3476
        %3892 = vst [vmem:[%s3779 + $0x380] sm:$0xff] %v3478
        %3893 = vst.msk [vmem:[%s3779 + $0x388] sm:$0xff] %vm1140, %v3756
        %3894 = vst [vmem:[%s3779 + $0x390] sm:$0xff] %v3482
        %3895 = vst [vmem:[%s3779 + $0x398] sm:$0xff] %v3484
        %3896 = vst.msk [vmem:[%s3779 + $0x3a0] sm:$0xff] %vm1140, %v3761
        %3897 = vst [vmem:[%s3779 + $0x3a8] sm:$0xff] %v3488
        %3898 = vst [vmem:[%s3779 + $0x3b0] sm:$0xff] %v3490
        %3899 = vst.msk [vmem:[%s3779 + $0x3b8] sm:$0xff] %vm1140, %v3766
        %3900 = vst [vmem:[%s3779 + $0x3c0] sm:$0xff] %v3494
        %3901 = vst [vmem:[%s3779 + $0x3c8] sm:$0xff] %v3496
        %3902 = vst.msk [vmem:[%s3779 + $0x3d0] sm:$0xff] %vm1140, %v3771
        %3903 = vst [vmem:[%s3779 + $0x3d8] sm:$0x7] %v3500
        %3904 = vst [vmem:[%s3779 + $0x3e0] sm:$0x7] %v3502
        %3905 = vst.msk [vmem:[%s3779 + $0x3e8] sm:$0x7] %vm1264, %v3776
        %s3906 = smul.u32 4, %s18
        %p3907 = scmp.lt.s32.totalorder %s3906, 7
        %s3908 = scalar_select %p3907, %s3906, 7
        %s3909 = smul.addr %s3908, 126
        %s3910 = smul.addr %s3909, 8
        %s3911 = scalar_lea.vmem %s3, %s3910
        // Predicated region
        $region41: #{tpu_custom_call.1} parent=31 // pred_check
          %p3912 = pneg %p104
        $region42: #{tpu_custom_call.1} parent=31 // pred_check_branch
          %3914 = sbr.rel (%p3912) target = $region44
        $region43: #{tpu_custom_call.1} parent=31 // pred_region
          %s3915 = smul.u32 4, %s18
        $region44: #{tpu_custom_call.1} parent=31 // pred_fallthru
          _
      $region32: #{tpu_custom_call.1} parent=5 // pred_fallthru
        _
      %p3916 = scmp.le.s32.totalorder 2, %s13
      // Predicated region
      $region45: #{tpu_custom_call.1} parent=5 // pred_check
        %p3917 = pneg %p3916
      $region46: #{tpu_custom_call.1} parent=5 // pred_check_branch
        %3919 = sbr.rel (%p3917) target = $region48
      $region47: #{tpu_custom_call.1} parent=5 // pred_region
        %s3920 = ssub.s32 %s13, 2
        // Predicated region
        $region49: #{tpu_custom_call.1} parent=47 // pred_check
          %p3921 = pneg %p110
        $region50: #{tpu_custom_call.1} parent=47 // pred_check_branch
          %3923 = sbr.rel (%p3921) target = $region52
        $region51: #{tpu_custom_call.1} parent=47 // pred_region
          %s3924 = smul.u32 4, %s19
          %p3925 = scmp.lt.s32.totalorder %s3924, 7
          %s3926 = scalar_select %p3925, %s3924, 7
          %s3927 = smul.addr %s3926, 126
          %s3928 = smul.addr %s3927, 8
          %s3929 = scalar_lea.vmem %s3, %s3928
        $region52: #{tpu_custom_call.1} parent=47 // pred_fallthru
          _
      $region48: #{tpu_custom_call.1} parent=5 // pred_fallthru
        _
    $region6: #{tpu_custom_call.1} parent=1 // loop_footer
      %s17 = sadd.s32 1, %s13
    $region7: #{tpu_custom_call.1} parent=1 // loop_footer_branch
      %12 = sbr.rel target = $region3
    $region8: #{tpu_custom_call.1} parent=1 // loop_exit
      _
    %3930 = vsyncpa [#allocation3], 1
    %s3931 = scalar_lea.sflag [#allocation3], 1
    %3932 = vsyncpa %s3931, 1
    %3933 = vsyncpa [#allocation5], 1

</llo_original>
